<compile_context>
chip_gen: v6e
topology: v6e:2x2x1
jax: 0.10.0
libtpu: 0.0.40
codegen_flags: <defaults>
</compile_context>

<pallas_src>
import jax
import jax.numpy as jnp
from jax.experimental import pallas as pl
from jax.experimental.pallas import tpu as pltpu

EPS = 1e-5
NUM_CLASSES = 16          # num_classes is a constructor arg; small value chosen
K_IN = 512 * 3 * 3        # 4608 = 36 * 128 (lane aligned)


def _vgg_head_kernel(x_ref, w1_ref, c1_ref, w2_ref, c2_ref, w3_ref, c3_ref,
                     out_ref, feat_ref):
    # x arrives f32; cast to bf16 in VMEM (avoids a separate HBM cast pass).
    x = x_ref[...].astype(jnp.bfloat16)
    # BN2d(512) folded into w1/c1; Conv2d(512,256,3) on a 3x3 input == matmul.
    y = jnp.dot(x, w1_ref[...], preferred_element_type=jnp.float32) + c1_ref[...]
    # ReLU -> Flatten (already (tn,256)) -> Dropout (identity) -> BN1d(256)
    # folded into w2/c2 -> Linear(256,128) = `feat` (returned pre-ReLU).
    y = jnp.maximum(y, 0.0)
    feat = jnp.dot(y.astype(jnp.bfloat16), w2_ref[...],
                   preferred_element_type=jnp.float32) + c2_ref[...]
    feat_ref[...] = feat.astype(feat_ref.dtype)
    # classifier: ReLU -> Dropout (identity) -> BN1d(128) folded into w3/c3
    # -> Linear(128, num_classes) (zero-padded to 128 output lanes).
    z = jnp.maximum(feat, 0.0)
    out = jnp.dot(z.astype(jnp.bfloat16), w3_ref[...],
                  preferred_element_type=jnp.float32) + c3_ref[...]
    out_ref[...] = out.astype(out_ref.dtype)


def _fold_bn(gamma, beta, running_mean, running_var):
    scale = gamma / jnp.sqrt(running_var + EPS)
    bias = beta - running_mean * scale
    return scale.astype(jnp.float32), bias.astype(jnp.float32)


def init_params(key, num_classes=NUM_CLASSES):
    """Returns folded weights: (w1, c1, w2, c2, w3, c3); matmul weights bf16."""
    k_conv, k_lin2, k_lin3 = jax.random.split(key, 3)

    # ---- BN2d(512) -> folded into conv ----------------------------------
    bn2d_s, bn2d_b = _fold_bn(jnp.ones((512,)), jnp.zeros((512,)),
                              jnp.zeros((512,)), jnp.ones((512,)))
    s1 = jnp.repeat(bn2d_s, 9)            # (4608,) in (c, h, w) order
    b1 = jnp.repeat(bn2d_b, 9)

    # Conv2d(512, 256, 3): kaiming_normal_ fan_out/relu; bias = 0
    fan_out = 256 * 3 * 3
    std = (2.0 / fan_out) ** 0.5
    w_conv = jax.random.normal(k_conv, (256, 512, 3, 3), jnp.float32) * std
    w1 = w_conv.reshape(256, K_IN).T      # (4608, 256)
    c1 = jnp.zeros((256,), jnp.float32)
    w1f = w1 * s1[:, None]                # fold in f32
    c1f = c1 + b1 @ w1

    # ---- BN1d(256) -> folded into Linear(256, 128) -----------------------
    s2, b2 = _fold_bn(jnp.ones((256,)), jnp.zeros((256,)),
                      jnp.zeros((256,)), jnp.ones((256,)))
    w2 = (jax.random.normal(k_lin2, (128, 256), jnp.float32) * 0.01).T  # (256,128)
    c2 = jnp.zeros((128,), jnp.float32)
    w2f = w2 * s2[:, None]
    c2f = c2 + b2 @ w2

    # ---- BN1d(128) -> folded into Linear(128, num_classes) ---------------
    s3, b3 = _fold_bn(jnp.ones((128,)), jnp.zeros((128,)),
                      jnp.zeros((128,)), jnp.ones((128,)))
    w3 = (jax.random.normal(k_lin3, (num_classes, 128), jnp.float32) * 0.01).T
    c3 = jnp.zeros((num_classes,), jnp.float32)
    w3f = w3 * s3[:, None]                # (128, num_classes)
    c3f = c3 + b3 @ w3
    # zero-pad classifier to a lane-dense 128-wide output slab
    w3p = jnp.zeros((128, 128), jnp.float32).at[:, :num_classes].set(w3f)
    c3p = jnp.zeros((128,), jnp.float32).at[:num_classes].set(c3f)

    return (w1f.astype(jnp.bfloat16), c1f.reshape(1, 256),
            w2f.astype(jnp.bfloat16), c2f.reshape(1, 128),
            w3p.astype(jnp.bfloat16), c3p.reshape(1, 128))


def _round_up(x, m):
    return ((x + m - 1) // m) * m


def vgg_forward(x_nchw, params, num_classes=NUM_CLASSES):
    """x_nchw: (N, 512, 3, 3) f32. Returns (logits (N, num_classes), feat (N, 128))."""
    w1, c1, w2, c2, w3, c3 = params
    n = x_nchw.shape[0]

    # Free (contiguous) reshape; keep f32 — the bf16 cast happens in-kernel.
    x_flat = x_nchw.reshape(n, K_IN)

    # Batch tile: multiple of 16 (bf16 sublane packing of outputs), capped at
    # 512 rows (~19 MB of double-buffered f32 x + resident bf16 weights), and
    # sized so large batches give >= 2 grid steps for v7x's two TensorCores.
    n16 = _round_up(max(n, 1), 16)
    tn = min(512, _round_up((n16 + 1) // 2, 16))
    n_pad = _round_up(n, tn)
    if n_pad != n:
        x_flat = jnp.pad(x_flat, ((0, n_pad - n), (0, 0)))

    const = lambda i: (0, 0)   # weights/biases stay VMEM-resident across tiles

    flops = 2 * n_pad * (K_IN * 256 + 256 * 128 + 128 * 128)
    bytes_accessed = (n_pad * K_IN * 4                               # x (f32)
                      + (K_IN * 256 + 256 * 128 + 128 * 128) * 2     # bf16 weights
                      + (256 + 128 + 128) * 4                        # f32 biases
                      + 2 * n_pad * 128 * 2)                         # bf16 outputs

    out_pad, feat_pad = pl.pallas_call(
        _vgg_head_kernel,
        out_shape=(jax.ShapeDtypeStruct((n_pad, 128), jnp.bfloat16),
                   jax.ShapeDtypeStruct((n_pad, 128), jnp.bfloat16)),
        grid=(n_pad // tn,),
        in_specs=[
            pl.BlockSpec((tn, K_IN), lambda i: (i, 0)),   # x (batch-tiled, f32)
            pl.BlockSpec((K_IN, 256), const),             # w1
            pl.BlockSpec((1, 256), const),                # c1
            pl.BlockSpec((256, 128), const),              # w2
            pl.BlockSpec((1, 128), const),                # c2
            pl.BlockSpec((128, 128), const),              # w3 (padded)
            pl.BlockSpec((1, 128), const),                # c3 (padded)
        ],
        out_specs=(pl.BlockSpec((tn, 128), lambda i: (i, 0)),
                   pl.BlockSpec((tn, 128), lambda i: (i, 0))),
        compiler_params=pltpu.CompilerParams(
            dimension_semantics=("parallel",),
            vmem_limit_bytes=48 * 1024 * 1024),
        cost_estimate=pl.CostEstimate(flops=flops, transcendentals=0,
                                      bytes_accessed=bytes_accessed),
    )(x_flat, w1, c1, w2, c2, w3, c3)

    logits = out_pad[:n, :num_classes]
    feat = feat_pad[:n]
    return logits, feat


if __name__ == "__main__":
    key = jax.random.PRNGKey(0)
    k_x, k_p = jax.random.split(key)

    # Post-`features` tensor shape implied by the module: (N, 512, 3, 3).
    x = jax.random.normal(k_x, (2, 512, 3, 3), jnp.float32)
    params = init_params(k_p, NUM_CLASSES)

    logits, feat = vgg_forward(x, params, NUM_CLASSES)
    jax.block_until_ready((logits, feat))

    assert logits.shape == (2, NUM_CLASSES) and feat.shape == (2, 128)
    assert jnp.all(jnp.isfinite(logits.astype(jnp.float32)))
    assert jnp.all(jnp.isfinite(feat.astype(jnp.float32)))
    print("KERNEL_OK")
</pallas_src>

<mosaic_0001>
module attributes {stable_mosaic.version = 11 : i64} {
  func.func @_vgg_head_kernel(%arg0: i32, %arg1: memref<16x4608xf32, #tpu.memory_space<vmem>>, %arg2: memref<4608x256xbf16, #tpu.memory_space<vmem>>, %arg3: memref<1x256xf32, #tpu.memory_space<vmem>>, %arg4: memref<256x128xbf16, #tpu.memory_space<vmem>>, %arg5: memref<1x128xf32, #tpu.memory_space<vmem>>, %arg6: memref<128x128xbf16, #tpu.memory_space<vmem>>, %arg7: memref<1x128xf32, #tpu.memory_space<vmem>>, %arg8: memref<16x128xbf16, #tpu.memory_space<vmem>>, %arg9: memref<16x128xbf16, #tpu.memory_space<vmem>>) attributes {dimension_semantics = [#tpu.dimension_semantics<parallel>], iteration_bounds = array<i64: 1>, scalar_prefetch = 0 : i64, scratch_operands = 0 : i64, tpu.core_type = #tpu.core_type<tc>, window_params = [{transform_indices = @transform_0, window_bounds = array<i64: 16, 4608>}, {pipeline_mode = #tpu.pipeline_mode<synchronous>, transform_indices = @transform_1, window_bounds = array<i64: 4608, 256>}, {pipeline_mode = #tpu.pipeline_mode<synchronous>, transform_indices = @transform_2, window_bounds = array<i64: 1, 256>}, {pipeline_mode = #tpu.pipeline_mode<synchronous>, transform_indices = @transform_3, window_bounds = array<i64: 256, 128>}, {pipeline_mode = #tpu.pipeline_mode<synchronous>, transform_indices = @transform_4, window_bounds = array<i64: 1, 128>}, {pipeline_mode = #tpu.pipeline_mode<synchronous>, transform_indices = @transform_5, window_bounds = array<i64: 128, 128>}, {pipeline_mode = #tpu.pipeline_mode<synchronous>, transform_indices = @transform_6, window_bounds = array<i64: 1, 128>}, {transform_indices = @transform_7, window_bounds = array<i64: 16, 128>}, {transform_indices = @transform_8, window_bounds = array<i64: 16, 128>}]} {
    %c0 = arith.constant 0 : index
    %c0_0 = arith.constant 0 : index
    %0 = vector.load %arg1[%c0, %c0_0] : memref<16x4608xf32, #tpu.memory_space<vmem>>, vector<16x4608xf32>
    %1 = arith.truncf %0 : vector<16x4608xf32> to vector<16x4608xbf16>
    %c0_1 = arith.constant 0 : index
    %c0_2 = arith.constant 0 : index
    %2 = vector.load %arg2[%c0_1, %c0_2] : memref<4608x256xbf16, #tpu.memory_space<vmem>>, vector<4608x256xbf16>
    %cst = arith.constant dense<0.000000e+00> : vector<16x256xf32>
    %3 = tpu.matmul %1, %2, %cst {dimension_numbers = #tpu.dot_dimension_numbers<[1], [0], [0], [1], [0, 0, 1, 1], [], []>} : vector<16x4608xbf16>, vector<4608x256xbf16>, vector<16x256xf32> -> vector<16x256xf32>
    %c0_3 = arith.constant 0 : index
    %c0_4 = arith.constant 0 : index
    %4 = vector.load %arg3[%c0_3, %c0_4] : memref<1x256xf32, #tpu.memory_space<vmem>>, vector<1x256xf32>
    %5 = vector.broadcast %4 : vector<1x256xf32> to vector<16x256xf32>
    %6 = arith.addf %3, %5 : vector<16x256xf32>
    %cst_5 = arith.constant 0.000000e+00 : f32
    %7 = vector.broadcast %cst_5 : f32 to vector<16x256xf32>
    %8 = arith.maximumf %6, %7 : vector<16x256xf32>
    %9 = arith.truncf %8 : vector<16x256xf32> to vector<16x256xbf16>
    %c0_6 = arith.constant 0 : index
    %c0_7 = arith.constant 0 : index
    %10 = vector.load %arg4[%c0_6, %c0_7] : memref<256x128xbf16, #tpu.memory_space<vmem>>, vector<256x128xbf16>
    %cst_8 = arith.constant dense<0.000000e+00> : vector<16x128xf32>
    %11 = tpu.matmul %9, %10, %cst_8 {dimension_numbers = #tpu.dot_dimension_numbers<[1], [0], [0], [1], [0, 0, 1, 1], [], []>} : vector<16x256xbf16>, vector<256x128xbf16>, vector<16x128xf32> -> vector<16x128xf32>
    %c0_9 = arith.constant 0 : index
    %c0_10 = arith.constant 0 : index
    %12 = vector.load %arg5[%c0_9, %c0_10] : memref<1x128xf32, #tpu.memory_space<vmem>>, vector<1x128xf32>
    %13 = vector.broadcast %12 : vector<1x128xf32> to vector<16x128xf32>
    %14 = arith.addf %11, %13 : vector<16x128xf32>
    %15 = arith.truncf %14 : vector<16x128xf32> to vector<16x128xbf16>
    %c0_11 = arith.constant 0 : index
    %c0_12 = arith.constant 0 : index
    %16 = vector.load %arg9[%c0_11, %c0_12] : memref<16x128xbf16, #tpu.memory_space<vmem>>, vector<16x128xbf16>
    tpu.vector_store %arg9[%c0_11, %c0_12], %15 {strides = array<i32>} : memref<16x128xbf16, #tpu.memory_space<vmem>>, vector<16x128xbf16>,
    %cst_13 = arith.constant 0.000000e+00 : f32
    %17 = vector.broadcast %cst_13 : f32 to vector<16x128xf32>
    %18 = arith.maximumf %14, %17 : vector<16x128xf32>
    %19 = arith.truncf %18 : vector<16x128xf32> to vector<16x128xbf16>
    %c0_14 = arith.constant 0 : index
    %c0_15 = arith.constant 0 : index
    %20 = vector.load %arg6[%c0_14, %c0_15] : memref<128x128xbf16, #tpu.memory_space<vmem>>, vector<128x128xbf16>
    %cst_16 = arith.constant dense<0.000000e+00> : vector<16x128xf32>
    %21 = tpu.matmul %19, %20, %cst_16 {dimension_numbers = #tpu.dot_dimension_numbers<[1], [0], [0], [1], [0, 0, 1, 1], [], []>} : vector<16x128xbf16>, vector<128x128xbf16>, vector<16x128xf32> -> vector<16x128xf32>
    %c0_17 = arith.constant 0 : index
    %c0_18 = arith.constant 0 : index
    %22 = vector.load %arg7[%c0_17, %c0_18] : memref<1x128xf32, #tpu.memory_space<vmem>>, vector<1x128xf32>
    %23 = vector.broadcast %22 : vector<1x128xf32> to vector<16x128xf32>
    %24 = arith.addf %21, %23 : vector<16x128xf32>
    %25 = arith.truncf %24 : vector<16x128xf32> to vector<16x128xbf16>
    %c0_19 = arith.constant 0 : index
    %c0_20 = arith.constant 0 : index
    %26 = vector.load %arg8[%c0_19, %c0_20] : memref<16x128xbf16, #tpu.memory_space<vmem>>, vector<16x128xbf16>
    tpu.vector_store %arg8[%c0_19, %c0_20], %25 {strides = array<i32>} : memref<16x128xbf16, #tpu.memory_space<vmem>>, vector<16x128xbf16>,
    return
  }
  func.func @transform_0(%arg0: i32) -> (i32, i32) {
    %c0_i32 = arith.constant 0 : i32
    %c0_i32_0 = arith.constant 0 : i32
    return %arg0, %c0_i32 : i32, i32
  }
  func.func @transform_1(%arg0: i32) -> (i32, i32) {
    %c0_i32 = arith.constant 0 : i32
    %c0_i32_0 = arith.constant 0 : i32
    %c0_i32_1 = arith.constant 0 : i32
    return %c0_i32, %c0_i32_0 : i32, i32
  }
  func.func @transform_2(%arg0: i32) -> (i32, i32) {
    %c0_i32 = arith.constant 0 : i32
    %c0_i32_0 = arith.constant 0 : i32
    %c0_i32_1 = arith.constant 0 : i32
    return %c0_i32, %c0_i32_0 : i32, i32
  }
  func.func @transform_3(%arg0: i32) -> (i32, i32) {
    %c0_i32 = arith.constant 0 : i32
    %c0_i32_0 = arith.constant 0 : i32
    %c0_i32_1 = arith.constant 0 : i32
    return %c0_i32, %c0_i32_0 : i32, i32
  }
  func.func @transform_4(%arg0: i32) -> (i32, i32) {
    %c0_i32 = arith.constant 0 : i32
    %c0_i32_0 = arith.constant 0 : i32
    %c0_i32_1 = arith.constant 0 : i32
    return %c0_i32, %c0_i32_0 : i32, i32
  }
  func.func @transform_5(%arg0: i32) -> (i32, i32) {
    %c0_i32 = arith.constant 0 : i32
    %c0_i32_0 = arith.constant 0 : i32
    %c0_i32_1 = arith.constant 0 : i32
    return %c0_i32, %c0_i32_0 : i32, i32
  }
  func.func @transform_6(%arg0: i32) -> (i32, i32) {
    %c0_i32 = arith.constant 0 : i32
    %c0_i32_0 = arith.constant 0 : i32
    %c0_i32_1 = arith.constant 0 : i32
    return %c0_i32, %c0_i32_0 : i32, i32
  }
  func.func @transform_7(%arg0: i32) -> (i32, i32) {
    %c0_i32 = arith.constant 0 : i32
    %c0_i32_0 = arith.constant 0 : i32
    return %arg0, %c0_i32 : i32, i32
  }
  func.func @transform_8(%arg0: i32) -> (i32, i32) {
    %c0_i32 = arith.constant 0 : i32
    %c0_i32_0 = arith.constant 0 : i32
    return %arg0, %c0_i32 : i32, i32
  }
}

</mosaic_0001>

<llo_original>
// kernel: tpu_custom_call.1
$region0: #{tpu_custom_call.1}
  #allocation0 [shape = 'u32[]', space=smem, size = 0x4, offset = 0x4, fixed_abs, tag = 'smem constant byte address 0x4 - core index']
  #allocation1 [shape = 'u32[144,128]{1,0:T(1,128)}', space=vmem, size = 0x12000, scoped, tag = 'internal scratch']
  %s0 = inlined_call_operand.hbm [shape: f32[16,4608], index: 0, kind: input, shape index: {}]
  %s1 = inlined_call_operand.hbm [shape: bf16[4608,256], index: 1, kind: input, shape index: {}]
  %s2 = inlined_call_operand.hbm [shape: f32[1,256], index: 2, kind: input, shape index: {}]
  %s3 = inlined_call_operand.hbm [shape: bf16[256,128], index: 3, kind: input, shape index: {}]
  %s4 = inlined_call_operand.hbm [shape: f32[1,128], index: 4, kind: input, shape index: {}]
  %s5 = inlined_call_operand.hbm [shape: bf16[128,128], index: 5, kind: input, shape index: {}]
  %s6 = inlined_call_operand.hbm [shape: f32[1,128], index: 6, kind: input, shape index: {}]
  %s7 = inlined_call_operand.hbm [shape: bf16[16,128], index: 7, kind: output, shape index: {0}]
  %s8 = inlined_call_operand.hbm [shape: bf16[16,128], index: 8, kind: output, shape index: {1}]
  %9 = xla_tuple %s7, %s8
  %s10 = sld [smem:[#allocation0]]
  $region74: #{tpu_custom_call.1} parent=0
    _
  %s12 = ssub.s32 1, %s10
  %s13 = scalar_select 0, %s12, %s10
  $region1: #{tpu_custom_call.1} parent=0
    #allocation2 [shape = 'u8[294912]{0}', space=vmem, size = 0x48000, scoped, tag = 'input window, operand 0, single buffered']
    #allocation3 [shape = 's32[1]{0}', space=sflag, size = 0x4, scoped, tag = 'scoped memory for tpu_custom_call.1']
    #allocation4 [shape = 's32[1]{0}', space=sflag, size = 0x4, scoped, tag = 'scoped memory for tpu_custom_call.1']
    #allocation5 [shape = 'u8[2359296]{0}', space=vmem, size = 0x240000, scoped, tag = 'input window, operand 1, single buffered']
    #allocation6 [shape = 's32[1]{0}', space=sflag, size = 0x4, scoped, tag = 'scoped memory for tpu_custom_call.1']
    #allocation7 [shape = 'u8[1024]{0}', space=vmem, size = 0x400, scoped, tag = 'input window, operand 2, single buffered']
    #allocation8 [shape = 'u8[65536]{0}', space=vmem, size = 0x10000, scoped, tag = 'input window, operand 3, single buffered']
    #allocation9 [shape = 's32[1]{0}', space=sflag, size = 0x4, scoped, tag = 'scoped memory for tpu_custom_call.1']
    #allocation10 [shape = 'u8[512]{0}', space=vmem, size = 0x400, scoped, tag = 'input window, operand 4, single buffered']
    #allocation11 [shape = 'u8[32768]{0}', space=vmem, size = 0x8000, scoped, tag = 'input window, operand 5, single buffered']
    #allocation12 [shape = 's32[1]{0}', space=sflag, size = 0x4, scoped, tag = 'scoped memory for tpu_custom_call.1']
    #allocation13 [shape = 'u8[512]{0}', space=vmem, size = 0x400, scoped, tag = 'input window, operand 6, single buffered']
    #allocation14 [shape = 'u8[4096]{0}', space=vmem, size = 0x1000, scoped, tag = 'output window, operand 0, single buffered']
    #allocation15 [shape = 'u8[4096]{0}', space=vmem, size = 0x1000, scoped, tag = 'output window, operand 1, single buffered']
    #allocation16 [shape = 's32[1]{0}', space=sflag, size = 0x4, scoped, tag = 'scoped memory for tpu_custom_call.1']
    %14 = vsyncpa [#allocation3], 0
    %15 = vsyncpa [#allocation6], 0
    %16 = vsyncpa [#allocation9], 0
    %17 = vsyncpa [#allocation12], 0
    %18 = vsyncpa [#allocation4], 0
    %19 = vsyncpa [#allocation16], 0
    // Predicated region
    $region2: #{tpu_custom_call.1} parent=1 // pred_check
      _
    $region3: #{tpu_custom_call.1} parent=1 // pred_check_branch
      %21 = sbr.rel (0) target = $region5
    $region4: #{tpu_custom_call.1} parent=1 // pred_region
      %s23 = ssub.s32 9216, 9216
      %24 = vsyncadd [#allocation3], %s23
      %s25 = sshll.u32 [#allocation2], 4
      %s26 = int_to_ptr.vmem [resolvable:$true] %s25
      %31 = dma.hbm_to_vmem [thread:$0]  %s0, 9216, %s26, [#allocation3], 4608, 4608, 288
    $region5: #{tpu_custom_call.1} parent=1 // pred_fallthru
      _
    // Predicated region
    $region6: #{tpu_custom_call.1} parent=1 // pred_check
      _
    $region7: #{tpu_custom_call.1} parent=1 // pred_check_branch
      %33 = sbr.rel (0) target = $region9
    $region8: #{tpu_custom_call.1} parent=1 // pred_region
      %s35 = ssub.s32 73728, 73728
      %36 = vsyncadd [#allocation6], %s35
      %s37 = sshll.u32 [#allocation5], 4
      %s38 = int_to_ptr.vmem [resolvable:$true] %s37
      %43 = dma.hbm_to_vmem [thread:$0]  %s1, 73728, %s38, [#allocation6], 128, 128, 8
    $region9: #{tpu_custom_call.1} parent=1 // pred_fallthru
      _
    // Predicated region
    $region10: #{tpu_custom_call.1} parent=1 // pred_check
      _
    $region11: #{tpu_custom_call.1} parent=1 // pred_check_branch
      %45 = sbr.rel (0) target = $region13
    $region12: #{tpu_custom_call.1} parent=1 // pred_region
      %s47 = ssub.s32 32, 32
      %48 = vsyncadd [#allocation6], %s47
      %s50 = sshll.u32 [#allocation7], 4
      %s51 = int_to_ptr.vmem [resolvable:$true] %s50
      %53 = dma.hbm_to_vmem [thread:$0]  %s2, 32, %s51, [#allocation6]
    $region13: #{tpu_custom_call.1} parent=1 // pred_fallthru
      _
    // Predicated region
    $region14: #{tpu_custom_call.1} parent=1 // pred_check
      _
    $region15: #{tpu_custom_call.1} parent=1 // pred_check_branch
      %55 = sbr.rel (0) target = $region17
    $region16: #{tpu_custom_call.1} parent=1 // pred_region
      %s57 = ssub.s32 2048, 2048
      %58 = vsyncadd [#allocation9], %s57
      %s59 = sshll.u32 [#allocation8], 4
      %s60 = int_to_ptr.vmem [resolvable:$true] %s59
      %65 = dma.hbm_to_vmem [thread:$0]  %s3, 2048, %s60, [#allocation9], 64, 64, 4
    $region17: #{tpu_custom_call.1} parent=1 // pred_fallthru
      _
    // Predicated region
    $region18: #{tpu_custom_call.1} parent=1 // pred_check
      _
    $region19: #{tpu_custom_call.1} parent=1 // pred_check_branch
      %67 = sbr.rel (0) target = $region21
    $region20: #{tpu_custom_call.1} parent=1 // pred_region
      %s69 = ssub.s32 16, 16
      %70 = vsyncadd [#allocation9], %s69
      %s72 = sshll.u32 [#allocation10], 4
      %s73 = int_to_ptr.vmem [resolvable:$true] %s72
      %75 = dma.hbm_to_vmem [thread:$0]  %s4, 16, %s73, [#allocation9]
    $region21: #{tpu_custom_call.1} parent=1 // pred_fallthru
      _
    // Predicated region
    $region22: #{tpu_custom_call.1} parent=1 // pred_check
      _
    $region23: #{tpu_custom_call.1} parent=1 // pred_check_branch
      %77 = sbr.rel (0) target = $region25
    $region24: #{tpu_custom_call.1} parent=1 // pred_region
      %s79 = ssub.s32 1024, 1024
      %80 = vsyncadd [#allocation12], %s79
      %s81 = sshll.u32 [#allocation11], 4
      %s82 = int_to_ptr.vmem [resolvable:$true] %s81
      %87 = dma.hbm_to_vmem [thread:$0]  %s5, 1024, %s82, [#allocation12], 64, 64, 4
    $region25: #{tpu_custom_call.1} parent=1 // pred_fallthru
      _
    // Predicated region
    $region26: #{tpu_custom_call.1} parent=1 // pred_check
      _
    $region27: #{tpu_custom_call.1} parent=1 // pred_check_branch
      %89 = sbr.rel (0) target = $region29
    $region28: #{tpu_custom_call.1} parent=1 // pred_region
      %s91 = ssub.s32 16, 16
      %92 = vsyncadd [#allocation12], %s91
      %s94 = sshll.u32 [#allocation13], 4
      %s95 = int_to_ptr.vmem [resolvable:$true] %s94
      %97 = dma.hbm_to_vmem [thread:$0]  %s6, 16, %s95, [#allocation12]
    $region29: #{tpu_custom_call.1} parent=1 // pred_fallthru
      _
    // Predicated region
    $region30: #{tpu_custom_call.1} parent=1 // pred_check
      _
    $region31: #{tpu_custom_call.1} parent=1 // pred_check_branch
      %99 = sbr.rel (0) target = $region33
    $region32: #{tpu_custom_call.1} parent=1 // pred_region
      %100 = dma.done [#allocation3], 9216
    $region33: #{tpu_custom_call.1} parent=1 // pred_fallthru
      _
    // Predicated region
    $region34: #{tpu_custom_call.1} parent=1 // pred_check
      _
    $region35: #{tpu_custom_call.1} parent=1 // pred_check_branch
      %102 = sbr.rel (0) target = $region37
    $region36: #{tpu_custom_call.1} parent=1 // pred_region
      %103 = dma.done [#allocation6], 73728
    $region37: #{tpu_custom_call.1} parent=1 // pred_fallthru
      _
    // Predicated region
    $region38: #{tpu_custom_call.1} parent=1 // pred_check
      _
    $region39: #{tpu_custom_call.1} parent=1 // pred_check_branch
      %105 = sbr.rel (0) target = $region41
    $region40: #{tpu_custom_call.1} parent=1 // pred_region
      %106 = dma.done [#allocation6], 32
    $region41: #{tpu_custom_call.1} parent=1 // pred_fallthru
      _
    // Predicated region
    $region42: #{tpu_custom_call.1} parent=1 // pred_check
      _
    $region43: #{tpu_custom_call.1} parent=1 // pred_check_branch
      %108 = sbr.rel (0) target = $region45
    $region44: #{tpu_custom_call.1} parent=1 // pred_region
      %109 = dma.done [#allocation9], 2048
    $region45: #{tpu_custom_call.1} parent=1 // pred_fallthru
      _
    // Predicated region
    $region46: #{tpu_custom_call.1} parent=1 // pred_check
      _
    $region47: #{tpu_custom_call.1} parent=1 // pred_check_branch
      %111 = sbr.rel (0) target = $region49
    $region48: #{tpu_custom_call.1} parent=1 // pred_region
      %112 = dma.done [#allocation9], 16
    $region49: #{tpu_custom_call.1} parent=1 // pred_fallthru
      _
    // Predicated region
    $region50: #{tpu_custom_call.1} parent=1 // pred_check
      _
    $region51: #{tpu_custom_call.1} parent=1 // pred_check_branch
      %114 = sbr.rel (0) target = $region53
    $region52: #{tpu_custom_call.1} parent=1 // pred_region
      %115 = dma.done [#allocation12], 1024
    $region53: #{tpu_custom_call.1} parent=1 // pred_fallthru
      _
    // Predicated region
    $region54: #{tpu_custom_call.1} parent=1 // pred_check
      _
    $region55: #{tpu_custom_call.1} parent=1 // pred_check_branch
      %117 = sbr.rel (0) target = $region57
    $region56: #{tpu_custom_call.1} parent=1 // pred_region
      %118 = dma.done [#allocation12], 16
    $region57: #{tpu_custom_call.1} parent=1 // pred_fallthru
      _
    %v120 = vld [vmem:[#allocation2] sm:$0xff]
    %v121 = vld [vmem:[#allocation2 + $0x8] sm:$0xff]
    %v122 = vld [vmem:[#allocation2 + $0x10] sm:$0xff]
    %v123 = vld [vmem:[#allocation2 + $0x18] sm:$0xff]
    %v124 = vld [vmem:[#allocation2 + $0x20] sm:$0xff]
    %v125 = vld [vmem:[#allocation2 + $0x28] sm:$0xff]
    %v126 = vld [vmem:[#allocation2 + $0x30] sm:$0xff]
    %v127 = vld [vmem:[#allocation2 + $0x38] sm:$0xff]
    %v128 = vld [vmem:[#allocation2 + $0x40] sm:$0xff]
    %v129 = vld [vmem:[#allocation2 + $0x48] sm:$0xff]
    %v130 = vld [vmem:[#allocation2 + $0x50] sm:$0xff]
    %v131 = vld [vmem:[#allocation2 + $0x58] sm:$0xff]
    %v132 = vld [vmem:[#allocation2 + $0x60] sm:$0xff]
    %v133 = vld [vmem:[#allocation2 + $0x68] sm:$0xff]
    %v134 = vld [vmem:[#allocation2 + $0x70] sm:$0xff]
    %v135 = vld [vmem:[#allocation2 + $0x78] sm:$0xff]
    %v136 = vld [vmem:[#allocation2 + $0x80] sm:$0xff]
    %v137 = vld [vmem:[#allocation2 + $0x88] sm:$0xff]
    %v138 = vld [vmem:[#allocation2 + $0x90] sm:$0xff]
    %v139 = vld [vmem:[#allocation2 + $0x98] sm:$0xff]
    %v140 = vld [vmem:[#allocation2 + $0xa0] sm:$0xff]
    %v141 = vld [vmem:[#allocation2 + $0xa8] sm:$0xff]
    %v142 = vld [vmem:[#allocation2 + $0xb0] sm:$0xff]
    %v143 = vld [vmem:[#allocation2 + $0xb8] sm:$0xff]
    %v144 = vld [vmem:[#allocation2 + $0xc0] sm:$0xff]
    %v145 = vld [vmem:[#allocation2 + $0xc8] sm:$0xff]
    %v146 = vld [vmem:[#allocation2 + $0xd0] sm:$0xff]
    %v147 = vld [vmem:[#allocation2 + $0xd8] sm:$0xff]
    %v148 = vld [vmem:[#allocation2 + $0xe0] sm:$0xff]
    %v149 = vld [vmem:[#allocation2 + $0xe8] sm:$0xff]
    %v150 = vld [vmem:[#allocation2 + $0xf0] sm:$0xff]
    %v151 = vld [vmem:[#allocation2 + $0xf8] sm:$0xff]
    %v152 = vld [vmem:[#allocation2 + $0x100] sm:$0xff]
    %v153 = vld [vmem:[#allocation2 + $0x108] sm:$0xff]
    %v154 = vld [vmem:[#allocation2 + $0x110] sm:$0xff]
    %v155 = vld [vmem:[#allocation2 + $0x118] sm:$0xff]
    %v156 = vld [vmem:[#allocation2 + $0x120] sm:$0xff]
    %v157 = vld [vmem:[#allocation2 + $0x128] sm:$0xff]
    %v158 = vld [vmem:[#allocation2 + $0x130] sm:$0xff]
    %v159 = vld [vmem:[#allocation2 + $0x138] sm:$0xff]
    %v160 = vld [vmem:[#allocation2 + $0x140] sm:$0xff]
    %v161 = vld [vmem:[#allocation2 + $0x148] sm:$0xff]
    %v162 = vld [vmem:[#allocation2 + $0x150] sm:$0xff]
    %v163 = vld [vmem:[#allocation2 + $0x158] sm:$0xff]
    %v164 = vld [vmem:[#allocation2 + $0x160] sm:$0xff]
    %v165 = vld [vmem:[#allocation2 + $0x168] sm:$0xff]
    %v166 = vld [vmem:[#allocation2 + $0x170] sm:$0xff]
    %v167 = vld [vmem:[#allocation2 + $0x178] sm:$0xff]
    %v168 = vld [vmem:[#allocation2 + $0x180] sm:$0xff]
    %v169 = vld [vmem:[#allocation2 + $0x188] sm:$0xff]
    %v170 = vld [vmem:[#allocation2 + $0x190] sm:$0xff]
    %v171 = vld [vmem:[#allocation2 + $0x198] sm:$0xff]
    %v172 = vld [vmem:[#allocation2 + $0x1a0] sm:$0xff]
    %v173 = vld [vmem:[#allocation2 + $0x1a8] sm:$0xff]
    %v174 = vld [vmem:[#allocation2 + $0x1b0] sm:$0xff]
    %v175 = vld [vmem:[#allocation2 + $0x1b8] sm:$0xff]
    %v176 = vld [vmem:[#allocation2 + $0x1c0] sm:$0xff]
    %v177 = vld [vmem:[#allocation2 + $0x1c8] sm:$0xff]
    %v178 = vld [vmem:[#allocation2 + $0x1d0] sm:$0xff]
    %v179 = vld [vmem:[#allocation2 + $0x1d8] sm:$0xff]
    %v180 = vld [vmem:[#allocation2 + $0x1e0] sm:$0xff]
    %v181 = vld [vmem:[#allocation2 + $0x1e8] sm:$0xff]
    %v182 = vld [vmem:[#allocation2 + $0x1f0] sm:$0xff]
    %v183 = vld [vmem:[#allocation2 + $0x1f8] sm:$0xff]
    %v184 = vld [vmem:[#allocation2 + $0x200] sm:$0xff]
    %v185 = vld [vmem:[#allocation2 + $0x208] sm:$0xff]
    %v186 = vld [vmem:[#allocation2 + $0x210] sm:$0xff]
    %v187 = vld [vmem:[#allocation2 + $0x218] sm:$0xff]
    %v188 = vld [vmem:[#allocation2 + $0x220] sm:$0xff]
    %v189 = vld [vmem:[#allocation2 + $0x228] sm:$0xff]
    %v190 = vld [vmem:[#allocation2 + $0x230] sm:$0xff]
    %v191 = vld [vmem:[#allocation2 + $0x238] sm:$0xff]
    %v192 = vpack.c.bf16 %v156, %v120
    %v193 = vpack.c.bf16 %v157, %v121
    %v194 = vpack.c.bf16 %v158, %v122
    %v195 = vpack.c.bf16 %v159, %v123
    %v196 = vpack.c.bf16 %v160, %v124
    %v197 = vpack.c.bf16 %v161, %v125
    %v198 = vpack.c.bf16 %v162, %v126
    %v199 = vpack.c.bf16 %v163, %v127
    %v200 = vpack.c.bf16 %v164, %v128
    %v201 = vpack.c.bf16 %v165, %v129
    %v202 = vpack.c.bf16 %v166, %v130
    %v203 = vpack.c.bf16 %v167, %v131
    %v204 = vpack.c.bf16 %v168, %v132
    %v205 = vpack.c.bf16 %v169, %v133
    %v206 = vpack.c.bf16 %v170, %v134
    %v207 = vpack.c.bf16 %v171, %v135
    %v208 = vpack.c.bf16 %v172, %v136
    %v209 = vpack.c.bf16 %v173, %v137
    %v210 = vpack.c.bf16 %v174, %v138
    %v211 = vpack.c.bf16 %v175, %v139
    %v212 = vpack.c.bf16 %v176, %v140
    %v213 = vpack.c.bf16 %v177, %v141
    %v214 = vpack.c.bf16 %v178, %v142
    %v215 = vpack.c.bf16 %v179, %v143
    %v216 = vpack.c.bf16 %v180, %v144
    %v217 = vpack.c.bf16 %v181, %v145
    %v218 = vpack.c.bf16 %v182, %v146
    %v219 = vpack.c.bf16 %v183, %v147
    %v220 = vpack.c.bf16 %v184, %v148
    %v221 = vpack.c.bf16 %v185, %v149
    %v222 = vpack.c.bf16 %v186, %v150
    %v223 = vpack.c.bf16 %v187, %v151
    %v224 = vpack.c.bf16 %v188, %v152
    %v225 = vpack.c.bf16 %v189, %v153
    %v226 = vpack.c.bf16 %v190, %v154
    %v227 = vpack.c.bf16 %v191, %v155
    %v228 = vld [vmem:[#allocation5] sm:$0xff]
    %v229 = vld [vmem:[#allocation5 + $0x8] sm:$0xff]
    %v230 = vld [vmem:[#allocation5 + $0x10] sm:$0xff]
    %v231 = vld [vmem:[#allocation5 + $0x18] sm:$0xff]
    %v232 = vld [vmem:[#allocation5 + $0x20] sm:$0xff]
    %v233 = vld [vmem:[#allocation5 + $0x28] sm:$0xff]
    %v234 = vld [vmem:[#allocation5 + $0x30] sm:$0xff]
    %v235 = vld [vmem:[#allocation5 + $0x38] sm:$0xff]
    %v236 = vld [vmem:[#allocation5 + $0x40] sm:$0xff]
    %v237 = vld [vmem:[#allocation5 + $0x48] sm:$0xff]
    %v238 = vld [vmem:[#allocation5 + $0x50] sm:$0xff]
    %v239 = vld [vmem:[#allocation5 + $0x58] sm:$0xff]
    %v240 = vld [vmem:[#allocation5 + $0x60] sm:$0xff]
    %v241 = vld [vmem:[#allocation5 + $0x68] sm:$0xff]
    %v242 = vld [vmem:[#allocation5 + $0x70] sm:$0xff]
    %v243 = vld [vmem:[#allocation5 + $0x78] sm:$0xff]
    %v244 = vld [vmem:[#allocation5 + $0x80] sm:$0xff]
    %v245 = vld [vmem:[#allocation5 + $0x88] sm:$0xff]
    %v246 = vld [vmem:[#allocation5 + $0x90] sm:$0xff]
    %v247 = vld [vmem:[#allocation5 + $0x98] sm:$0xff]
    %v248 = vld [vmem:[#allocation5 + $0xa0] sm:$0xff]
    %v249 = vld [vmem:[#allocation5 + $0xa8] sm:$0xff]
    %v250 = vld [vmem:[#allocation5 + $0xb0] sm:$0xff]
    %v251 = vld [vmem:[#allocation5 + $0xb8] sm:$0xff]
    %v252 = vld [vmem:[#allocation5 + $0xc0] sm:$0xff]
    %v253 = vld [vmem:[#allocation5 + $0xc8] sm:$0xff]
    %v254 = vld [vmem:[#allocation5 + $0xd0] sm:$0xff]
    %v255 = vld [vmem:[#allocation5 + $0xd8] sm:$0xff]
    %v256 = vld [vmem:[#allocation5 + $0xe0] sm:$0xff]
    %v257 = vld [vmem:[#allocation5 + $0xe8] sm:$0xff]
    %v258 = vld [vmem:[#allocation5 + $0xf0] sm:$0xff]
    %v259 = vld [vmem:[#allocation5 + $0xf8] sm:$0xff]
    %v260 = vld [vmem:[#allocation5 + $0x100] sm:$0xff]
    %v261 = vld [vmem:[#allocation5 + $0x108] sm:$0xff]
    %v262 = vld [vmem:[#allocation5 + $0x110] sm:$0xff]
    %v263 = vld [vmem:[#allocation5 + $0x118] sm:$0xff]
    %v264 = vld [vmem:[#allocation5 + $0x120] sm:$0xff]
    %v265 = vld [vmem:[#allocation5 + $0x128] sm:$0xff]
    %v266 = vld [vmem:[#allocation5 + $0x130] sm:$0xff]
    %v267 = vld [vmem:[#allocation5 + $0x138] sm:$0xff]
    %v268 = vld [vmem:[#allocation5 + $0x140] sm:$0xff]
    %v269 = vld [vmem:[#allocation5 + $0x148] sm:$0xff]
    %v270 = vld [vmem:[#allocation5 + $0x150] sm:$0xff]
    %v271 = vld [vmem:[#allocation5 + $0x158] sm:$0xff]
    %v272 = vld [vmem:[#allocation5 + $0x160] sm:$0xff]
    %v273 = vld [vmem:[#allocation5 + $0x168] sm:$0xff]
    %v274 = vld [vmem:[#allocation5 + $0x170] sm:$0xff]
    %v275 = vld [vmem:[#allocation5 + $0x178] sm:$0xff]
    %v276 = vld [vmem:[#allocation5 + $0x180] sm:$0xff]
    %v277 = vld [vmem:[#allocation5 + $0x188] sm:$0xff]
    %v278 = vld [vmem:[#allocation5 + $0x190] sm:$0xff]
    %v279 = vld [vmem:[#allocation5 + $0x198] sm:$0xff]
    %v280 = vld [vmem:[#allocation5 + $0x1a0] sm:$0xff]
    %v281 = vld [vmem:[#allocation5 + $0x1a8] sm:$0xff]
    %v282 = vld [vmem:[#allocation5 + $0x1b0] sm:$0xff]
    %v283 = vld [vmem:[#allocation5 + $0x1b8] sm:$0xff]
    %v284 = vld [vmem:[#allocation5 + $0x1c0] sm:$0xff]
    %v285 = vld [vmem:[#allocation5 + $0x1c8] sm:$0xff]
    %v286 = vld [vmem:[#allocation5 + $0x1d0] sm:$0xff]
    %v287 = vld [vmem:[#allocation5 + $0x1d8] sm:$0xff]
    %v288 = vld [vmem:[#allocation5 + $0x1e0] sm:$0xff]
    %v289 = vld [vmem:[#allocation5 + $0x1e8] sm:$0xff]
    %v290 = vld [vmem:[#allocation5 + $0x1f0] sm:$0xff]
    %v291 = vld [vmem:[#allocation5 + $0x1f8] sm:$0xff]
    %v292 = vld [vmem:[#allocation5 + $0x200] sm:$0xff]
    %v293 = vld [vmem:[#allocation5 + $0x208] sm:$0xff]
    %v294 = vld [vmem:[#allocation5 + $0x210] sm:$0xff]
    %v295 = vld [vmem:[#allocation5 + $0x218] sm:$0xff]
    %v296 = vld [vmem:[#allocation5 + $0x220] sm:$0xff]
    %v297 = vld [vmem:[#allocation5 + $0x228] sm:$0xff]
    %v298 = vld [vmem:[#allocation5 + $0x230] sm:$0xff]
    %v299 = vld [vmem:[#allocation5 + $0x238] sm:$0xff]
    %v300 = vld [vmem:[#allocation5 + $0x240] sm:$0xff]
    %v301 = vld [vmem:[#allocation5 + $0x248] sm:$0xff]
    %v302 = vld [vmem:[#allocation5 + $0x250] sm:$0xff]
    %v303 = vld [vmem:[#allocation5 + $0x258] sm:$0xff]
    %v304 = vld [vmem:[#allocation5 + $0x260] sm:$0xff]
    %v305 = vld [vmem:[#allocation5 + $0x268] sm:$0xff]
    %v306 = vld [vmem:[#allocation5 + $0x270] sm:$0xff]
    %v307 = vld [vmem:[#allocation5 + $0x278] sm:$0xff]
    %v308 = vld [vmem:[#allocation5 + $0x280] sm:$0xff]
    %v309 = vld [vmem:[#allocation5 + $0x288] sm:$0xff]
    %v310 = vld [vmem:[#allocation5 + $0x290] sm:$0xff]
    %v311 = vld [vmem:[#allocation5 + $0x298] sm:$0xff]
    %v312 = vld [vmem:[#allocation5 + $0x2a0] sm:$0xff]
    %v313 = vld [vmem:[#allocation5 + $0x2a8] sm:$0xff]
    %v314 = vld [vmem:[#allocation5 + $0x2b0] sm:$0xff]
    %v315 = vld [vmem:[#allocation5 + $0x2b8] sm:$0xff]
    %v316 = vld [vmem:[#allocation5 + $0x2c0] sm:$0xff]
    %v317 = vld [vmem:[#allocation5 + $0x2c8] sm:$0xff]
    %v318 = vld [vmem:[#allocation5 + $0x2d0] sm:$0xff]
    %v319 = vld [vmem:[#allocation5 + $0x2d8] sm:$0xff]
    %v320 = vld [vmem:[#allocation5 + $0x2e0] sm:$0xff]
    %v321 = vld [vmem:[#allocation5 + $0x2e8] sm:$0xff]
    %v322 = vld [vmem:[#allocation5 + $0x2f0] sm:$0xff]
    %v323 = vld [vmem:[#allocation5 + $0x2f8] sm:$0xff]
    %v324 = vld [vmem:[#allocation5 + $0x300] sm:$0xff]
    %v325 = vld [vmem:[#allocation5 + $0x308] sm:$0xff]
    %v326 = vld [vmem:[#allocation5 + $0x310] sm:$0xff]
    %v327 = vld [vmem:[#allocation5 + $0x318] sm:$0xff]
    %v328 = vld [vmem:[#allocation5 + $0x320] sm:$0xff]
    %v329 = vld [vmem:[#allocation5 + $0x328] sm:$0xff]
    %v330 = vld [vmem:[#allocation5 + $0x330] sm:$0xff]
    %v331 = vld [vmem:[#allocation5 + $0x338] sm:$0xff]
    %v332 = vld [vmem:[#allocation5 + $0x340] sm:$0xff]
    %v333 = vld [vmem:[#allocation5 + $0x348] sm:$0xff]
    %v334 = vld [vmem:[#allocation5 + $0x350] sm:$0xff]
    %v335 = vld [vmem:[#allocation5 + $0x358] sm:$0xff]
    %v336 = vld [vmem:[#allocation5 + $0x360] sm:$0xff]
    %v337 = vld [vmem:[#allocation5 + $0x368] sm:$0xff]
    %v338 = vld [vmem:[#allocation5 + $0x370] sm:$0xff]
    %v339 = vld [vmem:[#allocation5 + $0x378] sm:$0xff]
    %v340 = vld [vmem:[#allocation5 + $0x380] sm:$0xff]
    %v341 = vld [vmem:[#allocation5 + $0x388] sm:$0xff]
    %v342 = vld [vmem:[#allocation5 + $0x390] sm:$0xff]
    %v343 = vld [vmem:[#allocation5 + $0x398] sm:$0xff]
    %v344 = vld [vmem:[#allocation5 + $0x3a0] sm:$0xff]
    %v345 = vld [vmem:[#allocation5 + $0x3a8] sm:$0xff]
    %v346 = vld [vmem:[#allocation5 + $0x3b0] sm:$0xff]
    %v347 = vld [vmem:[#allocation5 + $0x3b8] sm:$0xff]
    %v348 = vld [vmem:[#allocation5 + $0x3c0] sm:$0xff]
    %v349 = vld [vmem:[#allocation5 + $0x3c8] sm:$0xff]
    %v350 = vld [vmem:[#allocation5 + $0x3d0] sm:$0xff]
    %v351 = vld [vmem:[#allocation5 + $0x3d8] sm:$0xff]
    %v352 = vld [vmem:[#allocation5 + $0x3e0] sm:$0xff]
    %v353 = vld [vmem:[#allocation5 + $0x3e8] sm:$0xff]
    %v354 = vld [vmem:[#allocation5 + $0x3f0] sm:$0xff]
    %v355 = vld [vmem:[#allocation5 + $0x3f8] sm:$0xff]
    %v356 = vld [vmem:[#allocation5 + $0x400] sm:$0xff]
    %v357 = vld [vmem:[#allocation5 + $0x408] sm:$0xff]
    %v358 = vld [vmem:[#allocation5 + $0x410] sm:$0xff]
    %v359 = vld [vmem:[#allocation5 + $0x418] sm:$0xff]
    %v360 = vld [vmem:[#allocation5 + $0x420] sm:$0xff]
    %v361 = vld [vmem:[#allocation5 + $0x428] sm:$0xff]
    %v362 = vld [vmem:[#allocation5 + $0x430] sm:$0xff]
    %v363 = vld [vmem:[#allocation5 + $0x438] sm:$0xff]
    %v364 = vld [vmem:[#allocation5 + $0x440] sm:$0xff]
    %v365 = vld [vmem:[#allocation5 + $0x448] sm:$0xff]
    %v366 = vld [vmem:[#allocation5 + $0x450] sm:$0xff]
    %v367 = vld [vmem:[#allocation5 + $0x458] sm:$0xff]
    %v368 = vld [vmem:[#allocation5 + $0x460] sm:$0xff]
    %v369 = vld [vmem:[#allocation5 + $0x468] sm:$0xff]
    %v370 = vld [vmem:[#allocation5 + $0x470] sm:$0xff]
    %v371 = vld [vmem:[#allocation5 + $0x478] sm:$0xff]
    %v372 = vld [vmem:[#allocation5 + $0x480] sm:$0xff]
    %v373 = vld [vmem:[#allocation5 + $0x488] sm:$0xff]
    %v374 = vld [vmem:[#allocation5 + $0x490] sm:$0xff]
    %v375 = vld [vmem:[#allocation5 + $0x498] sm:$0xff]
    %v376 = vld [vmem:[#allocation5 + $0x4a0] sm:$0xff]
    %v377 = vld [vmem:[#allocation5 + $0x4a8] sm:$0xff]
    %v378 = vld [vmem:[#allocation5 + $0x4b0] sm:$0xff]
    %v379 = vld [vmem:[#allocation5 + $0x4b8] sm:$0xff]
    %v380 = vld [vmem:[#allocation5 + $0x4c0] sm:$0xff]
    %v381 = vld [vmem:[#allocation5 + $0x4c8] sm:$0xff]
    %v382 = vld [vmem:[#allocation5 + $0x4d0] sm:$0xff]
    %v383 = vld [vmem:[#allocation5 + $0x4d8] sm:$0xff]
    %v384 = vld [vmem:[#allocation5 + $0x4e0] sm:$0xff]
    %v385 = vld [vmem:[#allocation5 + $0x4e8] sm:$0xff]
    %v386 = vld [vmem:[#allocation5 + $0x4f0] sm:$0xff]
    %v387 = vld [vmem:[#allocation5 + $0x4f8] sm:$0xff]
    %v388 = vld [vmem:[#allocation5 + $0x500] sm:$0xff]
    %v389 = vld [vmem:[#allocation5 + $0x508] sm:$0xff]
    %v390 = vld [vmem:[#allocation5 + $0x510] sm:$0xff]
    %v391 = vld [vmem:[#allocation5 + $0x518] sm:$0xff]
    %v392 = vld [vmem:[#allocation5 + $0x520] sm:$0xff]
    %v393 = vld [vmem:[#allocation5 + $0x528] sm:$0xff]
    %v394 = vld [vmem:[#allocation5 + $0x530] sm:$0xff]
    %v395 = vld [vmem:[#allocation5 + $0x538] sm:$0xff]
    %v396 = vld [vmem:[#allocation5 + $0x540] sm:$0xff]
    %v397 = vld [vmem:[#allocation5 + $0x548] sm:$0xff]
    %v398 = vld [vmem:[#allocation5 + $0x550] sm:$0xff]
    %v399 = vld [vmem:[#allocation5 + $0x558] sm:$0xff]
    %v400 = vld [vmem:[#allocation5 + $0x560] sm:$0xff]
    %v401 = vld [vmem:[#allocation5 + $0x568] sm:$0xff]
    %v402 = vld [vmem:[#allocation5 + $0x570] sm:$0xff]
    %v403 = vld [vmem:[#allocation5 + $0x578] sm:$0xff]
    %v404 = vld [vmem:[#allocation5 + $0x580] sm:$0xff]
    %v405 = vld [vmem:[#allocation5 + $0x588] sm:$0xff]
    %v406 = vld [vmem:[#allocation5 + $0x590] sm:$0xff]
    %v407 = vld [vmem:[#allocation5 + $0x598] sm:$0xff]
    %v408 = vld [vmem:[#allocation5 + $0x5a0] sm:$0xff]
    %v409 = vld [vmem:[#allocation5 + $0x5a8] sm:$0xff]
    %v410 = vld [vmem:[#allocation5 + $0x5b0] sm:$0xff]
    %v411 = vld [vmem:[#allocation5 + $0x5b8] sm:$0xff]
    %v412 = vld [vmem:[#allocation5 + $0x5c0] sm:$0xff]
    %v413 = vld [vmem:[#allocation5 + $0x5c8] sm:$0xff]
    %v414 = vld [vmem:[#allocation5 + $0x5d0] sm:$0xff]
    %v415 = vld [vmem:[#allocation5 + $0x5d8] sm:$0xff]
    %v416 = vld [vmem:[#allocation5 + $0x5e0] sm:$0xff]
    %v417 = vld [vmem:[#allocation5 + $0x5e8] sm:$0xff]
    %v418 = vld [vmem:[#allocation5 + $0x5f0] sm:$0xff]
    %v419 = vld [vmem:[#allocation5 + $0x5f8] sm:$0xff]
    %v420 = vld [vmem:[#allocation5 + $0x600] sm:$0xff]
    %v421 = vld [vmem:[#allocation5 + $0x608] sm:$0xff]
    %v422 = vld [vmem:[#allocation5 + $0x610] sm:$0xff]
    %v423 = vld [vmem:[#allocation5 + $0x618] sm:$0xff]
    %v424 = vld [vmem:[#allocation5 + $0x620] sm:$0xff]
    %v425 = vld [vmem:[#allocation5 + $0x628] sm:$0xff]
    %v426 = vld [vmem:[#allocation5 + $0x630] sm:$0xff]
    %v427 = vld [vmem:[#allocation5 + $0x638] sm:$0xff]
    %v428 = vld [vmem:[#allocation5 + $0x640] sm:$0xff]
    %v429 = vld [vmem:[#allocation5 + $0x648] sm:$0xff]
    %v430 = vld [vmem:[#allocation5 + $0x650] sm:$0xff]
    %v431 = vld [vmem:[#allocation5 + $0x658] sm:$0xff]
    %v432 = vld [vmem:[#allocation5 + $0x660] sm:$0xff]
    %v433 = vld [vmem:[#allocation5 + $0x668] sm:$0xff]
    %v434 = vld [vmem:[#allocation5 + $0x670] sm:$0xff]
    %v435 = vld [vmem:[#allocation5 + $0x678] sm:$0xff]
    %v436 = vld [vmem:[#allocation5 + $0x680] sm:$0xff]
    %v437 = vld [vmem:[#allocation5 + $0x688] sm:$0xff]
    %v438 = vld [vmem:[#allocation5 + $0x690] sm:$0xff]
    %v439 = vld [vmem:[#allocation5 + $0x698] sm:$0xff]
    %v440 = vld [vmem:[#allocation5 + $0x6a0] sm:$0xff]
    %v441 = vld [vmem:[#allocation5 + $0x6a8] sm:$0xff]
    %v442 = vld [vmem:[#allocation5 + $0x6b0] sm:$0xff]
    %v443 = vld [vmem:[#allocation5 + $0x6b8] sm:$0xff]
    %v444 = vld [vmem:[#allocation5 + $0x6c0] sm:$0xff]
    %v445 = vld [vmem:[#allocation5 + $0x6c8] sm:$0xff]
    %v446 = vld [vmem:[#allocation5 + $0x6d0] sm:$0xff]
    %v447 = vld [vmem:[#allocation5 + $0x6d8] sm:$0xff]
    %v448 = vld [vmem:[#allocation5 + $0x6e0] sm:$0xff]
    %v449 = vld [vmem:[#allocation5 + $0x6e8] sm:$0xff]
    %v450 = vld [vmem:[#allocation5 + $0x6f0] sm:$0xff]
    %v451 = vld [vmem:[#allocation5 + $0x6f8] sm:$0xff]
    %v452 = vld [vmem:[#allocation5 + $0x700] sm:$0xff]
    %v453 = vld [vmem:[#allocation5 + $0x708] sm:$0xff]
    %v454 = vld [vmem:[#allocation5 + $0x710] sm:$0xff]
    %v455 = vld [vmem:[#allocation5 + $0x718] sm:$0xff]
    %v456 = vld [vmem:[#allocation5 + $0x720] sm:$0xff]
    %v457 = vld [vmem:[#allocation5 + $0x728] sm:$0xff]
    %v458 = vld [vmem:[#allocation5 + $0x730] sm:$0xff]
    %v459 = vld [vmem:[#allocation5 + $0x738] sm:$0xff]
    %v460 = vld [vmem:[#allocation5 + $0x740] sm:$0xff]
    %v461 = vld [vmem:[#allocation5 + $0x748] sm:$0xff]
    %v462 = vld [vmem:[#allocation5 + $0x750] sm:$0xff]
    %v463 = vld [vmem:[#allocation5 + $0x758] sm:$0xff]
    %v464 = vld [vmem:[#allocation5 + $0x760] sm:$0xff]
    %v465 = vld [vmem:[#allocation5 + $0x768] sm:$0xff]
    %v466 = vld [vmem:[#allocation5 + $0x770] sm:$0xff]
    %v467 = vld [vmem:[#allocation5 + $0x778] sm:$0xff]
    %v468 = vld [vmem:[#allocation5 + $0x780] sm:$0xff]
    %v469 = vld [vmem:[#allocation5 + $0x788] sm:$0xff]
    %v470 = vld [vmem:[#allocation5 + $0x790] sm:$0xff]
    %v471 = vld [vmem:[#allocation5 + $0x798] sm:$0xff]
    %v472 = vld [vmem:[#allocation5 + $0x7a0] sm:$0xff]
    %v473 = vld [vmem:[#allocation5 + $0x7a8] sm:$0xff]
    %v474 = vld [vmem:[#allocation5 + $0x7b0] sm:$0xff]
    %v475 = vld [vmem:[#allocation5 + $0x7b8] sm:$0xff]
    %v476 = vld [vmem:[#allocation5 + $0x7c0] sm:$0xff]
    %v477 = vld [vmem:[#allocation5 + $0x7c8] sm:$0xff]
    %v478 = vld [vmem:[#allocation5 + $0x7d0] sm:$0xff]
    %v479 = vld [vmem:[#allocation5 + $0x7d8] sm:$0xff]
    %v480 = vld [vmem:[#allocation5 + $0x7e0] sm:$0xff]
    %v481 = vld [vmem:[#allocation5 + $0x7e8] sm:$0xff]
    %v482 = vld [vmem:[#allocation5 + $0x7f0] sm:$0xff]
    %v483 = vld [vmem:[#allocation5 + $0x7f8] sm:$0xff]
    %v484 = vld [vmem:[#allocation5 + $0x800] sm:$0xff]
    %v485 = vld [vmem:[#allocation5 + $0x808] sm:$0xff]
    %v486 = vld [vmem:[#allocation5 + $0x810] sm:$0xff]
    %v487 = vld [vmem:[#allocation5 + $0x818] sm:$0xff]
    %v488 = vld [vmem:[#allocation5 + $0x820] sm:$0xff]
    %v489 = vld [vmem:[#allocation5 + $0x828] sm:$0xff]
    %v490 = vld [vmem:[#allocation5 + $0x830] sm:$0xff]
    %v491 = vld [vmem:[#allocation5 + $0x838] sm:$0xff]
    %v492 = vld [vmem:[#allocation5 + $0x840] sm:$0xff]
    %v493 = vld [vmem:[#allocation5 + $0x848] sm:$0xff]
    %v494 = vld [vmem:[#allocation5 + $0x850] sm:$0xff]
    %v495 = vld [vmem:[#allocation5 + $0x858] sm:$0xff]
    %v496 = vld [vmem:[#allocation5 + $0x860] sm:$0xff]
    %v497 = vld [vmem:[#allocation5 + $0x868] sm:$0xff]
    %v498 = vld [vmem:[#allocation5 + $0x870] sm:$0xff]
    %v499 = vld [vmem:[#allocation5 + $0x878] sm:$0xff]
    %v500 = vld [vmem:[#allocation5 + $0x880] sm:$0xff]
    %v501 = vld [vmem:[#allocation5 + $0x888] sm:$0xff]
    %v502 = vld [vmem:[#allocation5 + $0x890] sm:$0xff]
    %v503 = vld [vmem:[#allocation5 + $0x898] sm:$0xff]
    %v504 = vld [vmem:[#allocation5 + $0x8a0] sm:$0xff]
    %v505 = vld [vmem:[#allocation5 + $0x8a8] sm:$0xff]
    %v506 = vld [vmem:[#allocation5 + $0x8b0] sm:$0xff]
    %v507 = vld [vmem:[#allocation5 + $0x8b8] sm:$0xff]
    %v508 = vld [vmem:[#allocation5 + $0x8c0] sm:$0xff]
    %v509 = vld [vmem:[#allocation5 + $0x8c8] sm:$0xff]
    %v510 = vld [vmem:[#allocation5 + $0x8d0] sm:$0xff]
    %v511 = vld [vmem:[#allocation5 + $0x8d8] sm:$0xff]
    %v512 = vld [vmem:[#allocation5 + $0x8e0] sm:$0xff]
    %v513 = vld [vmem:[#allocation5 + $0x8e8] sm:$0xff]
    %v514 = vld [vmem:[#allocation5 + $0x8f0] sm:$0xff]
    %v515 = vld [vmem:[#allocation5 + $0x8f8] sm:$0xff]
    %v516 = vld [vmem:[#allocation5 + $0x900] sm:$0xff]
    %v517 = vld [vmem:[#allocation5 + $0x908] sm:$0xff]
    %v518 = vld [vmem:[#allocation5 + $0x910] sm:$0xff]
    %v519 = vld [vmem:[#allocation5 + $0x918] sm:$0xff]
    %v520 = vld [vmem:[#allocation5 + $0x920] sm:$0xff]
    %v521 = vld [vmem:[#allocation5 + $0x928] sm:$0xff]
    %v522 = vld [vmem:[#allocation5 + $0x930] sm:$0xff]
    %v523 = vld [vmem:[#allocation5 + $0x938] sm:$0xff]
    %v524 = vld [vmem:[#allocation5 + $0x940] sm:$0xff]
    %v525 = vld [vmem:[#allocation5 + $0x948] sm:$0xff]
    %v526 = vld [vmem:[#allocation5 + $0x950] sm:$0xff]
    %v527 = vld [vmem:[#allocation5 + $0x958] sm:$0xff]
    %v528 = vld [vmem:[#allocation5 + $0x960] sm:$0xff]
    %v529 = vld [vmem:[#allocation5 + $0x968] sm:$0xff]
    %v530 = vld [vmem:[#allocation5 + $0x970] sm:$0xff]
    %v531 = vld [vmem:[#allocation5 + $0x978] sm:$0xff]
    %v532 = vld [vmem:[#allocation5 + $0x980] sm:$0xff]
    %v533 = vld [vmem:[#allocation5 + $0x988] sm:$0xff]
    %v534 = vld [vmem:[#allocation5 + $0x990] sm:$0xff]
    %v535 = vld [vmem:[#allocation5 + $0x998] sm:$0xff]
    %v536 = vld [vmem:[#allocation5 + $0x9a0] sm:$0xff]
    %v537 = vld [vmem:[#allocation5 + $0x9a8] sm:$0xff]
    %v538 = vld [vmem:[#allocation5 + $0x9b0] sm:$0xff]
    %v539 = vld [vmem:[#allocation5 + $0x9b8] sm:$0xff]
    %v540 = vld [vmem:[#allocation5 + $0x9c0] sm:$0xff]
    %v541 = vld [vmem:[#allocation5 + $0x9c8] sm:$0xff]
    %v542 = vld [vmem:[#allocation5 + $0x9d0] sm:$0xff]
    %v543 = vld [vmem:[#allocation5 + $0x9d8] sm:$0xff]
    %v544 = vld [vmem:[#allocation5 + $0x9e0] sm:$0xff]
    %v545 = vld [vmem:[#allocation5 + $0x9e8] sm:$0xff]
    %v546 = vld [vmem:[#allocation5 + $0x9f0] sm:$0xff]
    %v547 = vld [vmem:[#allocation5 + $0x9f8] sm:$0xff]
    %v548 = vld [vmem:[#allocation5 + $0xa00] sm:$0xff]
    %v549 = vld [vmem:[#allocation5 + $0xa08] sm:$0xff]
    %v550 = vld [vmem:[#allocation5 + $0xa10] sm:$0xff]
    %v551 = vld [vmem:[#allocation5 + $0xa18] sm:$0xff]
    %v552 = vld [vmem:[#allocation5 + $0xa20] sm:$0xff]
    %v553 = vld [vmem:[#allocation5 + $0xa28] sm:$0xff]
    %v554 = vld [vmem:[#allocation5 + $0xa30] sm:$0xff]
    %v555 = vld [vmem:[#allocation5 + $0xa38] sm:$0xff]
    %v556 = vld [vmem:[#allocation5 + $0xa40] sm:$0xff]
    %v557 = vld [vmem:[#allocation5 + $0xa48] sm:$0xff]
    %v558 = vld [vmem:[#allocation5 + $0xa50] sm:$0xff]
    %v559 = vld [vmem:[#allocation5 + $0xa58] sm:$0xff]
    %v560 = vld [vmem:[#allocation5 + $0xa60] sm:$0xff]
    %v561 = vld [vmem:[#allocation5 + $0xa68] sm:$0xff]
    %v562 = vld [vmem:[#allocation5 + $0xa70] sm:$0xff]
    %v563 = vld [vmem:[#allocation5 + $0xa78] sm:$0xff]
    %v564 = vld [vmem:[#allocation5 + $0xa80] sm:$0xff]
    %v565 = vld [vmem:[#allocation5 + $0xa88] sm:$0xff]
    %v566 = vld [vmem:[#allocation5 + $0xa90] sm:$0xff]
    %v567 = vld [vmem:[#allocation5 + $0xa98] sm:$0xff]
    %v568 = vld [vmem:[#allocation5 + $0xaa0] sm:$0xff]
    %v569 = vld [vmem:[#allocation5 + $0xaa8] sm:$0xff]
    %v570 = vld [vmem:[#allocation5 + $0xab0] sm:$0xff]
    %v571 = vld [vmem:[#allocation5 + $0xab8] sm:$0xff]
    %v572 = vld [vmem:[#allocation5 + $0xac0] sm:$0xff]
    %v573 = vld [vmem:[#allocation5 + $0xac8] sm:$0xff]
    %v574 = vld [vmem:[#allocation5 + $0xad0] sm:$0xff]
    %v575 = vld [vmem:[#allocation5 + $0xad8] sm:$0xff]
    %v576 = vld [vmem:[#allocation5 + $0xae0] sm:$0xff]
    %v577 = vld [vmem:[#allocation5 + $0xae8] sm:$0xff]
    %v578 = vld [vmem:[#allocation5 + $0xaf0] sm:$0xff]
    %v579 = vld [vmem:[#allocation5 + $0xaf8] sm:$0xff]
    %v580 = vld [vmem:[#allocation5 + $0xb00] sm:$0xff]
    %v581 = vld [vmem:[#allocation5 + $0xb08] sm:$0xff]
    %v582 = vld [vmem:[#allocation5 + $0xb10] sm:$0xff]
    %v583 = vld [vmem:[#allocation5 + $0xb18] sm:$0xff]
    %v584 = vld [vmem:[#allocation5 + $0xb20] sm:$0xff]
    %v585 = vld [vmem:[#allocation5 + $0xb28] sm:$0xff]
    %v586 = vld [vmem:[#allocation5 + $0xb30] sm:$0xff]
    %v587 = vld [vmem:[#allocation5 + $0xb38] sm:$0xff]
    %v588 = vld [vmem:[#allocation5 + $0xb40] sm:$0xff]
    %v589 = vld [vmem:[#allocation5 + $0xb48] sm:$0xff]
    %v590 = vld [vmem:[#allocation5 + $0xb50] sm:$0xff]
    %v591 = vld [vmem:[#allocation5 + $0xb58] sm:$0xff]
    %v592 = vld [vmem:[#allocation5 + $0xb60] sm:$0xff]
    %v593 = vld [vmem:[#allocation5 + $0xb68] sm:$0xff]
    %v594 = vld [vmem:[#allocation5 + $0xb70] sm:$0xff]
    %v595 = vld [vmem:[#allocation5 + $0xb78] sm:$0xff]
    %v596 = vld [vmem:[#allocation5 + $0xb80] sm:$0xff]
    %v597 = vld [vmem:[#allocation5 + $0xb88] sm:$0xff]
    %v598 = vld [vmem:[#allocation5 + $0xb90] sm:$0xff]
    %v599 = vld [vmem:[#allocation5 + $0xb98] sm:$0xff]
    %v600 = vld [vmem:[#allocation5 + $0xba0] sm:$0xff]
    %v601 = vld [vmem:[#allocation5 + $0xba8] sm:$0xff]
    %v602 = vld [vmem:[#allocation5 + $0xbb0] sm:$0xff]
    %v603 = vld [vmem:[#allocation5 + $0xbb8] sm:$0xff]
    %v604 = vld [vmem:[#allocation5 + $0xbc0] sm:$0xff]
    %v605 = vld [vmem:[#allocation5 + $0xbc8] sm:$0xff]
    %v606 = vld [vmem:[#allocation5 + $0xbd0] sm:$0xff]
    %v607 = vld [vmem:[#allocation5 + $0xbd8] sm:$0xff]
    %v608 = vld [vmem:[#allocation5 + $0xbe0] sm:$0xff]
    %v609 = vld [vmem:[#allocation5 + $0xbe8] sm:$0xff]
    %v610 = vld [vmem:[#allocation5 + $0xbf0] sm:$0xff]
    %v611 = vld [vmem:[#allocation5 + $0xbf8] sm:$0xff]
    %v612 = vld [vmem:[#allocation5 + $0xc00] sm:$0xff]
    %v613 = vld [vmem:[#allocation5 + $0xc08] sm:$0xff]
    %v614 = vld [vmem:[#allocation5 + $0xc10] sm:$0xff]
    %v615 = vld [vmem:[#allocation5 + $0xc18] sm:$0xff]
    %v616 = vld [vmem:[#allocation5 + $0xc20] sm:$0xff]
    %v617 = vld [vmem:[#allocation5 + $0xc28] sm:$0xff]
    %v618 = vld [vmem:[#allocation5 + $0xc30] sm:$0xff]
    %v619 = vld [vmem:[#allocation5 + $0xc38] sm:$0xff]
    %v620 = vld [vmem:[#allocation5 + $0xc40] sm:$0xff]
    %v621 = vld [vmem:[#allocation5 + $0xc48] sm:$0xff]
    %v622 = vld [vmem:[#allocation5 + $0xc50] sm:$0xff]
    %v623 = vld [vmem:[#allocation5 + $0xc58] sm:$0xff]
    %v624 = vld [vmem:[#allocation5 + $0xc60] sm:$0xff]
    %v625 = vld [vmem:[#allocation5 + $0xc68] sm:$0xff]
    %v626 = vld [vmem:[#allocation5 + $0xc70] sm:$0xff]
    %v627 = vld [vmem:[#allocation5 + $0xc78] sm:$0xff]
    %v628 = vld [vmem:[#allocation5 + $0xc80] sm:$0xff]
    %v629 = vld [vmem:[#allocation5 + $0xc88] sm:$0xff]
    %v630 = vld [vmem:[#allocation5 + $0xc90] sm:$0xff]
    %v631 = vld [vmem:[#allocation5 + $0xc98] sm:$0xff]
    %v632 = vld [vmem:[#allocation5 + $0xca0] sm:$0xff]
    %v633 = vld [vmem:[#allocation5 + $0xca8] sm:$0xff]
    %v634 = vld [vmem:[#allocation5 + $0xcb0] sm:$0xff]
    %v635 = vld [vmem:[#allocation5 + $0xcb8] sm:$0xff]
    %v636 = vld [vmem:[#allocation5 + $0xcc0] sm:$0xff]
    %v637 = vld [vmem:[#allocation5 + $0xcc8] sm:$0xff]
    %v638 = vld [vmem:[#allocation5 + $0xcd0] sm:$0xff]
    %v639 = vld [vmem:[#allocation5 + $0xcd8] sm:$0xff]
    %v640 = vld [vmem:[#allocation5 + $0xce0] sm:$0xff]
    %v641 = vld [vmem:[#allocation5 + $0xce8] sm:$0xff]
    %v642 = vld [vmem:[#allocation5 + $0xcf0] sm:$0xff]
    %v643 = vld [vmem:[#allocation5 + $0xcf8] sm:$0xff]
    %v644 = vld [vmem:[#allocation5 + $0xd00] sm:$0xff]
    %v645 = vld [vmem:[#allocation5 + $0xd08] sm:$0xff]
    %v646 = vld [vmem:[#allocation5 + $0xd10] sm:$0xff]
    %v647 = vld [vmem:[#allocation5 + $0xd18] sm:$0xff]
    %v648 = vld [vmem:[#allocation5 + $0xd20] sm:$0xff]
    %v649 = vld [vmem:[#allocation5 + $0xd28] sm:$0xff]
    %v650 = vld [vmem:[#allocation5 + $0xd30] sm:$0xff]
    %v651 = vld [vmem:[#allocation5 + $0xd38] sm:$0xff]
    %v652 = vld [vmem:[#allocation5 + $0xd40] sm:$0xff]
    %v653 = vld [vmem:[#allocation5 + $0xd48] sm:$0xff]
    %v654 = vld [vmem:[#allocation5 + $0xd50] sm:$0xff]
    %v655 = vld [vmem:[#allocation5 + $0xd58] sm:$0xff]
    %v656 = vld [vmem:[#allocation5 + $0xd60] sm:$0xff]
    %v657 = vld [vmem:[#allocation5 + $0xd68] sm:$0xff]
    %v658 = vld [vmem:[#allocation5 + $0xd70] sm:$0xff]
    %v659 = vld [vmem:[#allocation5 + $0xd78] sm:$0xff]
    %v660 = vld [vmem:[#allocation5 + $0xd80] sm:$0xff]
    %v661 = vld [vmem:[#allocation5 + $0xd88] sm:$0xff]
    %v662 = vld [vmem:[#allocation5 + $0xd90] sm:$0xff]
    %v663 = vld [vmem:[#allocation5 + $0xd98] sm:$0xff]
    %v664 = vld [vmem:[#allocation5 + $0xda0] sm:$0xff]
    %v665 = vld [vmem:[#allocation5 + $0xda8] sm:$0xff]
    %v666 = vld [vmem:[#allocation5 + $0xdb0] sm:$0xff]
    %v667 = vld [vmem:[#allocation5 + $0xdb8] sm:$0xff]
    %v668 = vld [vmem:[#allocation5 + $0xdc0] sm:$0xff]
    %v669 = vld [vmem:[#allocation5 + $0xdc8] sm:$0xff]
    %v670 = vld [vmem:[#allocation5 + $0xdd0] sm:$0xff]
    %v671 = vld [vmem:[#allocation5 + $0xdd8] sm:$0xff]
    %v672 = vld [vmem:[#allocation5 + $0xde0] sm:$0xff]
    %v673 = vld [vmem:[#allocation5 + $0xde8] sm:$0xff]
    %v674 = vld [vmem:[#allocation5 + $0xdf0] sm:$0xff]
    %v675 = vld [vmem:[#allocation5 + $0xdf8] sm:$0xff]
    %v676 = vld [vmem:[#allocation5 + $0xe00] sm:$0xff]
    %v677 = vld [vmem:[#allocation5 + $0xe08] sm:$0xff]
    %v678 = vld [vmem:[#allocation5 + $0xe10] sm:$0xff]
    %v679 = vld [vmem:[#allocation5 + $0xe18] sm:$0xff]
    %v680 = vld [vmem:[#allocation5 + $0xe20] sm:$0xff]
    %v681 = vld [vmem:[#allocation5 + $0xe28] sm:$0xff]
    %v682 = vld [vmem:[#allocation5 + $0xe30] sm:$0xff]
    %v683 = vld [vmem:[#allocation5 + $0xe38] sm:$0xff]
    %v684 = vld [vmem:[#allocation5 + $0xe40] sm:$0xff]
    %v685 = vld [vmem:[#allocation5 + $0xe48] sm:$0xff]
    %v686 = vld [vmem:[#allocation5 + $0xe50] sm:$0xff]
    %v687 = vld [vmem:[#allocation5 + $0xe58] sm:$0xff]
    %v688 = vld [vmem:[#allocation5 + $0xe60] sm:$0xff]
    %v689 = vld [vmem:[#allocation5 + $0xe68] sm:$0xff]
    %v690 = vld [vmem:[#allocation5 + $0xe70] sm:$0xff]
    %v691 = vld [vmem:[#allocation5 + $0xe78] sm:$0xff]
    %v692 = vld [vmem:[#allocation5 + $0xe80] sm:$0xff]
    %v693 = vld [vmem:[#allocation5 + $0xe88] sm:$0xff]
    %v694 = vld [vmem:[#allocation5 + $0xe90] sm:$0xff]
    %v695 = vld [vmem:[#allocation5 + $0xe98] sm:$0xff]
    %v696 = vld [vmem:[#allocation5 + $0xea0] sm:$0xff]
    %v697 = vld [vmem:[#allocation5 + $0xea8] sm:$0xff]
    %v698 = vld [vmem:[#allocation5 + $0xeb0] sm:$0xff]
    %v699 = vld [vmem:[#allocation5 + $0xeb8] sm:$0xff]
    %v700 = vld [vmem:[#allocation5 + $0xec0] sm:$0xff]
    %v701 = vld [vmem:[#allocation5 + $0xec8] sm:$0xff]
    %v702 = vld [vmem:[#allocation5 + $0xed0] sm:$0xff]
    %v703 = vld [vmem:[#allocation5 + $0xed8] sm:$0xff]
    %v704 = vld [vmem:[#allocation5 + $0xee0] sm:$0xff]
    %v705 = vld [vmem:[#allocation5 + $0xee8] sm:$0xff]
    %v706 = vld [vmem:[#allocation5 + $0xef0] sm:$0xff]
    %v707 = vld [vmem:[#allocation5 + $0xef8] sm:$0xff]
    %v708 = vld [vmem:[#allocation5 + $0xf00] sm:$0xff]
    %v709 = vld [vmem:[#allocation5 + $0xf08] sm:$0xff]
    %v710 = vld [vmem:[#allocation5 + $0xf10] sm:$0xff]
    %v711 = vld [vmem:[#allocation5 + $0xf18] sm:$0xff]
    %v712 = vld [vmem:[#allocation5 + $0xf20] sm:$0xff]
    %v713 = vld [vmem:[#allocation5 + $0xf28] sm:$0xff]
    %v714 = vld [vmem:[#allocation5 + $0xf30] sm:$0xff]
    %v715 = vld [vmem:[#allocation5 + $0xf38] sm:$0xff]
    %v716 = vld [vmem:[#allocation5 + $0xf40] sm:$0xff]
    %v717 = vld [vmem:[#allocation5 + $0xf48] sm:$0xff]
    %v718 = vld [vmem:[#allocation5 + $0xf50] sm:$0xff]
    %v719 = vld [vmem:[#allocation5 + $0xf58] sm:$0xff]
    %v720 = vld [vmem:[#allocation5 + $0xf60] sm:$0xff]
    %v721 = vld [vmem:[#allocation5 + $0xf68] sm:$0xff]
    %v722 = vld [vmem:[#allocation5 + $0xf70] sm:$0xff]
    %v723 = vld [vmem:[#allocation5 + $0xf78] sm:$0xff]
    %v724 = vld [vmem:[#allocation5 + $0xf80] sm:$0xff]
    %v725 = vld [vmem:[#allocation5 + $0xf88] sm:$0xff]
    %v726 = vld [vmem:[#allocation5 + $0xf90] sm:$0xff]
    %v727 = vld [vmem:[#allocation5 + $0xf98] sm:$0xff]
    %v728 = vld [vmem:[#allocation5 + $0xfa0] sm:$0xff]
    %v729 = vld [vmem:[#allocation5 + $0xfa8] sm:$0xff]
    %v730 = vld [vmem:[#allocation5 + $0xfb0] sm:$0xff]
    %v731 = vld [vmem:[#allocation5 + $0xfb8] sm:$0xff]
    %v732 = vld [vmem:[#allocation5 + $0xfc0] sm:$0xff]
    %v733 = vld [vmem:[#allocation5 + $0xfc8] sm:$0xff]
    %v734 = vld [vmem:[#allocation5 + $0xfd0] sm:$0xff]
    %v735 = vld [vmem:[#allocation5 + $0xfd8] sm:$0xff]
    %v736 = vld [vmem:[#allocation5 + $0xfe0] sm:$0xff]
    %v737 = vld [vmem:[#allocation5 + $0xfe8] sm:$0xff]
    %v738 = vld [vmem:[#allocation5 + $0xff0] sm:$0xff]
    %v739 = vld [vmem:[#allocation5 + $0xff8] sm:$0xff]
    %v740 = vld [vmem:[#allocation5 + $0x1000] sm:$0xff]
    %v741 = vld [vmem:[#allocation5 + $0x1008] sm:$0xff]
    %v742 = vld [vmem:[#allocation5 + $0x1010] sm:$0xff]
    %v743 = vld [vmem:[#allocation5 + $0x1018] sm:$0xff]
    %v744 = vld [vmem:[#allocation5 + $0x1020] sm:$0xff]
    %v745 = vld [vmem:[#allocation5 + $0x1028] sm:$0xff]
    %v746 = vld [vmem:[#allocation5 + $0x1030] sm:$0xff]
    %v747 = vld [vmem:[#allocation5 + $0x1038] sm:$0xff]
    %v748 = vld [vmem:[#allocation5 + $0x1040] sm:$0xff]
    %v749 = vld [vmem:[#allocation5 + $0x1048] sm:$0xff]
    %v750 = vld [vmem:[#allocation5 + $0x1050] sm:$0xff]
    %v751 = vld [vmem:[#allocation5 + $0x1058] sm:$0xff]
    %v752 = vld [vmem:[#allocation5 + $0x1060] sm:$0xff]
    %v753 = vld [vmem:[#allocation5 + $0x1068] sm:$0xff]
    %v754 = vld [vmem:[#allocation5 + $0x1070] sm:$0xff]
    %v755 = vld [vmem:[#allocation5 + $0x1078] sm:$0xff]
    %v756 = vld [vmem:[#allocation5 + $0x1080] sm:$0xff]
    %v757 = vld [vmem:[#allocation5 + $0x1088] sm:$0xff]
    %v758 = vld [vmem:[#allocation5 + $0x1090] sm:$0xff]
    %v759 = vld [vmem:[#allocation5 + $0x1098] sm:$0xff]
    %v760 = vld [vmem:[#allocation5 + $0x10a0] sm:$0xff]
    %v761 = vld [vmem:[#allocation5 + $0x10a8] sm:$0xff]
    %v762 = vld [vmem:[#allocation5 + $0x10b0] sm:$0xff]
    %v763 = vld [vmem:[#allocation5 + $0x10b8] sm:$0xff]
    %v764 = vld [vmem:[#allocation5 + $0x10c0] sm:$0xff]
    %v765 = vld [vmem:[#allocation5 + $0x10c8] sm:$0xff]
    %v766 = vld [vmem:[#allocation5 + $0x10d0] sm:$0xff]
    %v767 = vld [vmem:[#allocation5 + $0x10d8] sm:$0xff]
    %v768 = vld [vmem:[#allocation5 + $0x10e0] sm:$0xff]
    %v769 = vld [vmem:[#allocation5 + $0x10e8] sm:$0xff]
    %v770 = vld [vmem:[#allocation5 + $0x10f0] sm:$0xff]
    %v771 = vld [vmem:[#allocation5 + $0x10f8] sm:$0xff]
    %v772 = vld [vmem:[#allocation5 + $0x1100] sm:$0xff]
    %v773 = vld [vmem:[#allocation5 + $0x1108] sm:$0xff]
    %v774 = vld [vmem:[#allocation5 + $0x1110] sm:$0xff]
    %v775 = vld [vmem:[#allocation5 + $0x1118] sm:$0xff]
    %v776 = vld [vmem:[#allocation5 + $0x1120] sm:$0xff]
    %v777 = vld [vmem:[#allocation5 + $0x1128] sm:$0xff]
    %v778 = vld [vmem:[#allocation5 + $0x1130] sm:$0xff]
    %v779 = vld [vmem:[#allocation5 + $0x1138] sm:$0xff]
    %v780 = vld [vmem:[#allocation5 + $0x1140] sm:$0xff]
    %v781 = vld [vmem:[#allocation5 + $0x1148] sm:$0xff]
    %v782 = vld [vmem:[#allocation5 + $0x1150] sm:$0xff]
    %v783 = vld [vmem:[#allocation5 + $0x1158] sm:$0xff]
    %v784 = vld [vmem:[#allocation5 + $0x1160] sm:$0xff]
    %v785 = vld [vmem:[#allocation5 + $0x1168] sm:$0xff]
    %v786 = vld [vmem:[#allocation5 + $0x1170] sm:$0xff]
    %v787 = vld [vmem:[#allocation5 + $0x1178] sm:$0xff]
    %v788 = vld [vmem:[#allocation5 + $0x1180] sm:$0xff]
    %v789 = vld [vmem:[#allocation5 + $0x1188] sm:$0xff]
    %v790 = vld [vmem:[#allocation5 + $0x1190] sm:$0xff]
    %v791 = vld [vmem:[#allocation5 + $0x1198] sm:$0xff]
    %v792 = vld [vmem:[#allocation5 + $0x11a0] sm:$0xff]
    %v793 = vld [vmem:[#allocation5 + $0x11a8] sm:$0xff]
    %v794 = vld [vmem:[#allocation5 + $0x11b0] sm:$0xff]
    %v795 = vld [vmem:[#allocation5 + $0x11b8] sm:$0xff]
    %v796 = vld [vmem:[#allocation5 + $0x11c0] sm:$0xff]
    %v797 = vld [vmem:[#allocation5 + $0x11c8] sm:$0xff]
    %v798 = vld [vmem:[#allocation5 + $0x11d0] sm:$0xff]
    %v799 = vld [vmem:[#allocation5 + $0x11d8] sm:$0xff]
    %v800 = vld [vmem:[#allocation5 + $0x11e0] sm:$0xff]
    %v801 = vld [vmem:[#allocation5 + $0x11e8] sm:$0xff]
    %v802 = vld [vmem:[#allocation5 + $0x11f0] sm:$0xff]
    %v803 = vld [vmem:[#allocation5 + $0x11f8] sm:$0xff]
    %v804 = vld [vmem:[#allocation7] sm:$0x3]
    %v806 = vlaneseq
    %v807 = vshrl.u32 %v806, 7
    %v808 = vsub.s32 0, %v807
    %v809 = vrot.slane %v804, %v808
    %v810 = vlaneseq
    %v811 = vshrl.u32 %v810, 7
    %v812 = vsub.s32 1, %v811
    %v813 = vrot.slane %v804, %v812
    %v1392 = vunpack.c.l.b16 %v228
    %v1393 = vunpack.c.h.b16 %v228
    %v1394 = vunpack.c.l.b16 %v229
    %v1395 = vunpack.c.h.b16 %v229
    %v1396 = vunpack.c.l.b16 %v230
    %v1397 = vunpack.c.h.b16 %v230
    %v1398 = vunpack.c.l.b16 %v231
    %v1399 = vunpack.c.h.b16 %v231
    %v1400 = vunpack.c.l.b16 %v232
    %v1401 = vunpack.c.h.b16 %v232
    %v1402 = vunpack.c.l.b16 %v233
    %v1403 = vunpack.c.h.b16 %v233
    %v1404 = vunpack.c.l.b16 %v234
    %v1405 = vunpack.c.h.b16 %v234
    %v1406 = vunpack.c.l.b16 %v235
    %v1407 = vunpack.c.h.b16 %v235
    %v1408 = vunpack.c.l.b16 %v236
    %v1409 = vunpack.c.h.b16 %v236
    %v1410 = vunpack.c.l.b16 %v237
    %v1411 = vunpack.c.h.b16 %v237
    %v1412 = vunpack.c.l.b16 %v238
    %v1413 = vunpack.c.h.b16 %v238
    %v1414 = vunpack.c.l.b16 %v239
    %v1415 = vunpack.c.h.b16 %v239
    %v1416 = vunpack.c.l.b16 %v240
    %v1417 = vunpack.c.h.b16 %v240
    %v1418 = vunpack.c.l.b16 %v241
    %v1419 = vunpack.c.h.b16 %v241
    %v1420 = vunpack.c.l.b16 %v242
    %v1421 = vunpack.c.h.b16 %v242
    %v1422 = vunpack.c.l.b16 %v243
    %v1423 = vunpack.c.h.b16 %v243
    %v1424 = vunpack.c.l.b16 %v244
    %v1425 = vunpack.c.h.b16 %v244
    %v1426 = vunpack.c.l.b16 %v245
    %v1427 = vunpack.c.h.b16 %v245
    %v1428 = vunpack.c.l.b16 %v246
    %v1429 = vunpack.c.h.b16 %v246
    %v1430 = vunpack.c.l.b16 %v247
    %v1431 = vunpack.c.h.b16 %v247
    %v1432 = vunpack.c.l.b16 %v248
    %v1433 = vunpack.c.h.b16 %v248
    %v1434 = vunpack.c.l.b16 %v249
    %v1435 = vunpack.c.h.b16 %v249
    %v1436 = vunpack.c.l.b16 %v250
    %v1437 = vunpack.c.h.b16 %v250
    %v1438 = vunpack.c.l.b16 %v251
    %v1439 = vunpack.c.h.b16 %v251
    %v1440 = vunpack.c.l.b16 %v252
    %v1441 = vunpack.c.h.b16 %v252
    %v1442 = vunpack.c.l.b16 %v253
    %v1443 = vunpack.c.h.b16 %v253
    %v1444 = vunpack.c.l.b16 %v254
    %v1445 = vunpack.c.h.b16 %v254
    %v1446 = vunpack.c.l.b16 %v255
    %v1447 = vunpack.c.h.b16 %v255
    %v1448 = vunpack.c.l.b16 %v256
    %v1449 = vunpack.c.h.b16 %v256
    %v1450 = vunpack.c.l.b16 %v257
    %v1451 = vunpack.c.h.b16 %v257
    %v1452 = vunpack.c.l.b16 %v258
    %v1453 = vunpack.c.h.b16 %v258
    %v1454 = vunpack.c.l.b16 %v259
    %v1455 = vunpack.c.h.b16 %v259
    %v1456 = vunpack.c.l.b16 %v260
    %v1457 = vunpack.c.h.b16 %v260
    %v1458 = vunpack.c.l.b16 %v261
    %v1459 = vunpack.c.h.b16 %v261
    %v1460 = vunpack.c.l.b16 %v262
    %v1461 = vunpack.c.h.b16 %v262
    %v1462 = vunpack.c.l.b16 %v263
    %v1463 = vunpack.c.h.b16 %v263
    %v1464 = vunpack.c.l.b16 %v264
    %v1465 = vunpack.c.h.b16 %v264
    %v1466 = vunpack.c.l.b16 %v265
    %v1467 = vunpack.c.h.b16 %v265
    %v1468 = vunpack.c.l.b16 %v266
    %v1469 = vunpack.c.h.b16 %v266
    %v1470 = vunpack.c.l.b16 %v267
    %v1471 = vunpack.c.h.b16 %v267
    %v1472 = vunpack.c.l.b16 %v268
    %v1473 = vunpack.c.h.b16 %v268
    %v1474 = vunpack.c.l.b16 %v269
    %v1475 = vunpack.c.h.b16 %v269
    %v1476 = vunpack.c.l.b16 %v270
    %v1477 = vunpack.c.h.b16 %v270
    %v1478 = vunpack.c.l.b16 %v271
    %v1479 = vunpack.c.h.b16 %v271
    %v1480 = vunpack.c.l.b16 %v272
    %v1481 = vunpack.c.h.b16 %v272
    %v1482 = vunpack.c.l.b16 %v273
    %v1483 = vunpack.c.h.b16 %v273
    %v1484 = vunpack.c.l.b16 %v274
    %v1485 = vunpack.c.h.b16 %v274
    %v1486 = vunpack.c.l.b16 %v275
    %v1487 = vunpack.c.h.b16 %v275
    %v1488 = vunpack.c.l.b16 %v276
    %v1489 = vunpack.c.h.b16 %v276
    %v1490 = vunpack.c.l.b16 %v277
    %v1491 = vunpack.c.h.b16 %v277
    %v1492 = vunpack.c.l.b16 %v278
    %v1493 = vunpack.c.h.b16 %v278
    %v1494 = vunpack.c.l.b16 %v279
    %v1495 = vunpack.c.h.b16 %v279
    %v1496 = vunpack.c.l.b16 %v280
    %v1497 = vunpack.c.h.b16 %v280
    %v1498 = vunpack.c.l.b16 %v281
    %v1499 = vunpack.c.h.b16 %v281
    %v1500 = vunpack.c.l.b16 %v282
    %v1501 = vunpack.c.h.b16 %v282
    %v1502 = vunpack.c.l.b16 %v283
    %v1503 = vunpack.c.h.b16 %v283
    %v1504 = vunpack.c.l.b16 %v284
    %v1505 = vunpack.c.h.b16 %v284
    %v1506 = vunpack.c.l.b16 %v285
    %v1507 = vunpack.c.h.b16 %v285
    %v1508 = vunpack.c.l.b16 %v286
    %v1509 = vunpack.c.h.b16 %v286
    %v1510 = vunpack.c.l.b16 %v287
    %v1511 = vunpack.c.h.b16 %v287
    %v1512 = vunpack.c.l.b16 %v288
    %v1513 = vunpack.c.h.b16 %v288
    %v1514 = vunpack.c.l.b16 %v289
    %v1515 = vunpack.c.h.b16 %v289
    %v1516 = vunpack.c.l.b16 %v290
    %v1517 = vunpack.c.h.b16 %v290
    %v1518 = vunpack.c.l.b16 %v291
    %v1519 = vunpack.c.h.b16 %v291
    %v1520 = vunpack.c.l.b16 %v292
    %v1521 = vunpack.c.h.b16 %v292
    %v1522 = vunpack.c.l.b16 %v293
    %v1523 = vunpack.c.h.b16 %v293
    %v1524 = vunpack.c.l.b16 %v294
    %v1525 = vunpack.c.h.b16 %v294
    %v1526 = vunpack.c.l.b16 %v295
    %v1527 = vunpack.c.h.b16 %v295
    %v1528 = vunpack.c.l.b16 %v296
    %v1529 = vunpack.c.h.b16 %v296
    %v1530 = vunpack.c.l.b16 %v297
    %v1531 = vunpack.c.h.b16 %v297
    %v1532 = vunpack.c.l.b16 %v298
    %v1533 = vunpack.c.h.b16 %v298
    %v1534 = vunpack.c.l.b16 %v299
    %v1535 = vunpack.c.h.b16 %v299
    %v1536 = vunpack.c.l.b16 %v300
    %v1537 = vunpack.c.h.b16 %v300
    %v1538 = vunpack.c.l.b16 %v301
    %v1539 = vunpack.c.h.b16 %v301
    %v1540 = vunpack.c.l.b16 %v302
    %v1541 = vunpack.c.h.b16 %v302
    %v1542 = vunpack.c.l.b16 %v303
    %v1543 = vunpack.c.h.b16 %v303
    %v1544 = vunpack.c.l.b16 %v304
    %v1545 = vunpack.c.h.b16 %v304
    %v1546 = vunpack.c.l.b16 %v305
    %v1547 = vunpack.c.h.b16 %v305
    %v1548 = vunpack.c.l.b16 %v306
    %v1549 = vunpack.c.h.b16 %v306
    %v1550 = vunpack.c.l.b16 %v307
    %v1551 = vunpack.c.h.b16 %v307
    %v1552 = vunpack.c.l.b16 %v308
    %v1553 = vunpack.c.h.b16 %v308
    %v1554 = vunpack.c.l.b16 %v309
    %v1555 = vunpack.c.h.b16 %v309
    %v1556 = vunpack.c.l.b16 %v310
    %v1557 = vunpack.c.h.b16 %v310
    %v1558 = vunpack.c.l.b16 %v311
    %v1559 = vunpack.c.h.b16 %v311
    %v1560 = vunpack.c.l.b16 %v312
    %v1561 = vunpack.c.h.b16 %v312
    %v1562 = vunpack.c.l.b16 %v313
    %v1563 = vunpack.c.h.b16 %v313
    %v1564 = vunpack.c.l.b16 %v314
    %v1565 = vunpack.c.h.b16 %v314
    %v1566 = vunpack.c.l.b16 %v315
    %v1567 = vunpack.c.h.b16 %v315
    %v1568 = vunpack.c.l.b16 %v316
    %v1569 = vunpack.c.h.b16 %v316
    %v1570 = vunpack.c.l.b16 %v317
    %v1571 = vunpack.c.h.b16 %v317
    %v1572 = vunpack.c.l.b16 %v318
    %v1573 = vunpack.c.h.b16 %v318
    %v1574 = vunpack.c.l.b16 %v319
    %v1575 = vunpack.c.h.b16 %v319
    %v1576 = vunpack.c.l.b16 %v320
    %v1577 = vunpack.c.h.b16 %v320
    %v1578 = vunpack.c.l.b16 %v321
    %v1579 = vunpack.c.h.b16 %v321
    %v1580 = vunpack.c.l.b16 %v322
    %v1581 = vunpack.c.h.b16 %v322
    %v1582 = vunpack.c.l.b16 %v323
    %v1583 = vunpack.c.h.b16 %v323
    %v1584 = vunpack.c.l.b16 %v324
    %v1585 = vunpack.c.h.b16 %v324
    %v1586 = vunpack.c.l.b16 %v325
    %v1587 = vunpack.c.h.b16 %v325
    %v1588 = vunpack.c.l.b16 %v326
    %v1589 = vunpack.c.h.b16 %v326
    %v1590 = vunpack.c.l.b16 %v327
    %v1591 = vunpack.c.h.b16 %v327
    %v1592 = vunpack.c.l.b16 %v328
    %v1593 = vunpack.c.h.b16 %v328
    %v1594 = vunpack.c.l.b16 %v329
    %v1595 = vunpack.c.h.b16 %v329
    %v1596 = vunpack.c.l.b16 %v330
    %v1597 = vunpack.c.h.b16 %v330
    %v1598 = vunpack.c.l.b16 %v331
    %v1599 = vunpack.c.h.b16 %v331
    %v1600 = vunpack.c.l.b16 %v332
    %v1601 = vunpack.c.h.b16 %v332
    %v1602 = vunpack.c.l.b16 %v333
    %v1603 = vunpack.c.h.b16 %v333
    %v1604 = vunpack.c.l.b16 %v334
    %v1605 = vunpack.c.h.b16 %v334
    %v1606 = vunpack.c.l.b16 %v335
    %v1607 = vunpack.c.h.b16 %v335
    %v1608 = vunpack.c.l.b16 %v336
    %v1609 = vunpack.c.h.b16 %v336
    %v1610 = vunpack.c.l.b16 %v337
    %v1611 = vunpack.c.h.b16 %v337
    %v1612 = vunpack.c.l.b16 %v338
    %v1613 = vunpack.c.h.b16 %v338
    %v1614 = vunpack.c.l.b16 %v339
    %v1615 = vunpack.c.h.b16 %v339
    %v1616 = vunpack.c.l.b16 %v340
    %v1617 = vunpack.c.h.b16 %v340
    %v1618 = vunpack.c.l.b16 %v341
    %v1619 = vunpack.c.h.b16 %v341
    %v1620 = vunpack.c.l.b16 %v342
    %v1621 = vunpack.c.h.b16 %v342
    %v1622 = vunpack.c.l.b16 %v343
    %v1623 = vunpack.c.h.b16 %v343
    %v1624 = vunpack.c.l.b16 %v344
    %v1625 = vunpack.c.h.b16 %v344
    %v1626 = vunpack.c.l.b16 %v345
    %v1627 = vunpack.c.h.b16 %v345
    %v1628 = vunpack.c.l.b16 %v346
    %v1629 = vunpack.c.h.b16 %v346
    %v1630 = vunpack.c.l.b16 %v347
    %v1631 = vunpack.c.h.b16 %v347
    %v1632 = vunpack.c.l.b16 %v348
    %v1633 = vunpack.c.h.b16 %v348
    %v1634 = vunpack.c.l.b16 %v349
    %v1635 = vunpack.c.h.b16 %v349
    %v1636 = vunpack.c.l.b16 %v350
    %v1637 = vunpack.c.h.b16 %v350
    %v1638 = vunpack.c.l.b16 %v351
    %v1639 = vunpack.c.h.b16 %v351
    %v1640 = vunpack.c.l.b16 %v352
    %v1641 = vunpack.c.h.b16 %v352
    %v1642 = vunpack.c.l.b16 %v353
    %v1643 = vunpack.c.h.b16 %v353
    %v1644 = vunpack.c.l.b16 %v354
    %v1645 = vunpack.c.h.b16 %v354
    %v1646 = vunpack.c.l.b16 %v355
    %v1647 = vunpack.c.h.b16 %v355
    %v1648 = vunpack.c.l.b16 %v356
    %v1649 = vunpack.c.h.b16 %v356
    %v1650 = vunpack.c.l.b16 %v357
    %v1651 = vunpack.c.h.b16 %v357
    %v1652 = vunpack.c.l.b16 %v358
    %v1653 = vunpack.c.h.b16 %v358
    %v1654 = vunpack.c.l.b16 %v359
    %v1655 = vunpack.c.h.b16 %v359
    %v1656 = vunpack.c.l.b16 %v360
    %v1657 = vunpack.c.h.b16 %v360
    %v1658 = vunpack.c.l.b16 %v361
    %v1659 = vunpack.c.h.b16 %v361
    %v1660 = vunpack.c.l.b16 %v362
    %v1661 = vunpack.c.h.b16 %v362
    %v1662 = vunpack.c.l.b16 %v363
    %v1663 = vunpack.c.h.b16 %v363
    %v1664 = vunpack.c.l.b16 %v364
    %v1665 = vunpack.c.h.b16 %v364
    %v1666 = vunpack.c.l.b16 %v365
    %v1667 = vunpack.c.h.b16 %v365
    %v1668 = vunpack.c.l.b16 %v366
    %v1669 = vunpack.c.h.b16 %v366
    %v1670 = vunpack.c.l.b16 %v367
    %v1671 = vunpack.c.h.b16 %v367
    %v1672 = vunpack.c.l.b16 %v368
    %v1673 = vunpack.c.h.b16 %v368
    %v1674 = vunpack.c.l.b16 %v369
    %v1675 = vunpack.c.h.b16 %v369
    %v1676 = vunpack.c.l.b16 %v370
    %v1677 = vunpack.c.h.b16 %v370
    %v1678 = vunpack.c.l.b16 %v371
    %v1679 = vunpack.c.h.b16 %v371
    %v1680 = vunpack.c.l.b16 %v372
    %v1681 = vunpack.c.h.b16 %v372
    %v1682 = vunpack.c.l.b16 %v373
    %v1683 = vunpack.c.h.b16 %v373
    %v1684 = vunpack.c.l.b16 %v374
    %v1685 = vunpack.c.h.b16 %v374
    %v1686 = vunpack.c.l.b16 %v375
    %v1687 = vunpack.c.h.b16 %v375
    %v1688 = vunpack.c.l.b16 %v376
    %v1689 = vunpack.c.h.b16 %v376
    %v1690 = vunpack.c.l.b16 %v377
    %v1691 = vunpack.c.h.b16 %v377
    %v1692 = vunpack.c.l.b16 %v378
    %v1693 = vunpack.c.h.b16 %v378
    %v1694 = vunpack.c.l.b16 %v379
    %v1695 = vunpack.c.h.b16 %v379
    %v1696 = vunpack.c.l.b16 %v380
    %v1697 = vunpack.c.h.b16 %v380
    %v1698 = vunpack.c.l.b16 %v381
    %v1699 = vunpack.c.h.b16 %v381
    %v1700 = vunpack.c.l.b16 %v382
    %v1701 = vunpack.c.h.b16 %v382
    %v1702 = vunpack.c.l.b16 %v383
    %v1703 = vunpack.c.h.b16 %v383
    %v1704 = vunpack.c.l.b16 %v384
    %v1705 = vunpack.c.h.b16 %v384
    %v1706 = vunpack.c.l.b16 %v385
    %v1707 = vunpack.c.h.b16 %v385
    %v1708 = vunpack.c.l.b16 %v386
    %v1709 = vunpack.c.h.b16 %v386
    %v1710 = vunpack.c.l.b16 %v387
    %v1711 = vunpack.c.h.b16 %v387
    %v1712 = vunpack.c.l.b16 %v388
    %v1713 = vunpack.c.h.b16 %v388
    %v1714 = vunpack.c.l.b16 %v389
    %v1715 = vunpack.c.h.b16 %v389
    %v1716 = vunpack.c.l.b16 %v390
    %v1717 = vunpack.c.h.b16 %v390
    %v1718 = vunpack.c.l.b16 %v391
    %v1719 = vunpack.c.h.b16 %v391
    %v1720 = vunpack.c.l.b16 %v392
    %v1721 = vunpack.c.h.b16 %v392
    %v1722 = vunpack.c.l.b16 %v393
    %v1723 = vunpack.c.h.b16 %v393
    %v1724 = vunpack.c.l.b16 %v394
    %v1725 = vunpack.c.h.b16 %v394
    %v1726 = vunpack.c.l.b16 %v395
    %v1727 = vunpack.c.h.b16 %v395
    %v1728 = vunpack.c.l.b16 %v396
    %v1729 = vunpack.c.h.b16 %v396
    %v1730 = vunpack.c.l.b16 %v397
    %v1731 = vunpack.c.h.b16 %v397
    %v1732 = vunpack.c.l.b16 %v398
    %v1733 = vunpack.c.h.b16 %v398
    %v1734 = vunpack.c.l.b16 %v399
    %v1735 = vunpack.c.h.b16 %v399
    %v1736 = vunpack.c.l.b16 %v400
    %v1737 = vunpack.c.h.b16 %v400
    %v1738 = vunpack.c.l.b16 %v401
    %v1739 = vunpack.c.h.b16 %v401
    %v1740 = vunpack.c.l.b16 %v402
    %v1741 = vunpack.c.h.b16 %v402
    %v1742 = vunpack.c.l.b16 %v403
    %v1743 = vunpack.c.h.b16 %v403
    %v1744 = vunpack.c.l.b16 %v404
    %v1745 = vunpack.c.h.b16 %v404
    %v1746 = vunpack.c.l.b16 %v405
    %v1747 = vunpack.c.h.b16 %v405
    %v1748 = vunpack.c.l.b16 %v406
    %v1749 = vunpack.c.h.b16 %v406
    %v1750 = vunpack.c.l.b16 %v407
    %v1751 = vunpack.c.h.b16 %v407
    %v1752 = vunpack.c.l.b16 %v408
    %v1753 = vunpack.c.h.b16 %v408
    %v1754 = vunpack.c.l.b16 %v409
    %v1755 = vunpack.c.h.b16 %v409
    %v1756 = vunpack.c.l.b16 %v410
    %v1757 = vunpack.c.h.b16 %v410
    %v1758 = vunpack.c.l.b16 %v411
    %v1759 = vunpack.c.h.b16 %v411
    %v1760 = vunpack.c.l.b16 %v412
    %v1761 = vunpack.c.h.b16 %v412
    %v1762 = vunpack.c.l.b16 %v413
    %v1763 = vunpack.c.h.b16 %v413
    %v1764 = vunpack.c.l.b16 %v414
    %v1765 = vunpack.c.h.b16 %v414
    %v1766 = vunpack.c.l.b16 %v415
    %v1767 = vunpack.c.h.b16 %v415
    %v1768 = vunpack.c.l.b16 %v416
    %v1769 = vunpack.c.h.b16 %v416
    %v1770 = vunpack.c.l.b16 %v417
    %v1771 = vunpack.c.h.b16 %v417
    %v1772 = vunpack.c.l.b16 %v418
    %v1773 = vunpack.c.h.b16 %v418
    %v1774 = vunpack.c.l.b16 %v419
    %v1775 = vunpack.c.h.b16 %v419
    %v1776 = vunpack.c.l.b16 %v420
    %v1777 = vunpack.c.h.b16 %v420
    %v1778 = vunpack.c.l.b16 %v421
    %v1779 = vunpack.c.h.b16 %v421
    %v1780 = vunpack.c.l.b16 %v422
    %v1781 = vunpack.c.h.b16 %v422
    %v1782 = vunpack.c.l.b16 %v423
    %v1783 = vunpack.c.h.b16 %v423
    %v1784 = vunpack.c.l.b16 %v424
    %v1785 = vunpack.c.h.b16 %v424
    %v1786 = vunpack.c.l.b16 %v425
    %v1787 = vunpack.c.h.b16 %v425
    %v1788 = vunpack.c.l.b16 %v426
    %v1789 = vunpack.c.h.b16 %v426
    %v1790 = vunpack.c.l.b16 %v427
    %v1791 = vunpack.c.h.b16 %v427
    %v1792 = vunpack.c.l.b16 %v428
    %v1793 = vunpack.c.h.b16 %v428
    %v1794 = vunpack.c.l.b16 %v429
    %v1795 = vunpack.c.h.b16 %v429
    %v1796 = vunpack.c.l.b16 %v430
    %v1797 = vunpack.c.h.b16 %v430
    %v1798 = vunpack.c.l.b16 %v431
    %v1799 = vunpack.c.h.b16 %v431
    %v1800 = vunpack.c.l.b16 %v432
    %v1801 = vunpack.c.h.b16 %v432
    %v1802 = vunpack.c.l.b16 %v433
    %v1803 = vunpack.c.h.b16 %v433
    %v1804 = vunpack.c.l.b16 %v434
    %v1805 = vunpack.c.h.b16 %v434
    %v1806 = vunpack.c.l.b16 %v435
    %v1807 = vunpack.c.h.b16 %v435
    %v1808 = vunpack.c.l.b16 %v436
    %v1809 = vunpack.c.h.b16 %v436
    %v1810 = vunpack.c.l.b16 %v437
    %v1811 = vunpack.c.h.b16 %v437
    %v1812 = vunpack.c.l.b16 %v438
    %v1813 = vunpack.c.h.b16 %v438
    %v1814 = vunpack.c.l.b16 %v439
    %v1815 = vunpack.c.h.b16 %v439
    %v1816 = vunpack.c.l.b16 %v440
    %v1817 = vunpack.c.h.b16 %v440
    %v1818 = vunpack.c.l.b16 %v441
    %v1819 = vunpack.c.h.b16 %v441
    %v1820 = vunpack.c.l.b16 %v442
    %v1821 = vunpack.c.h.b16 %v442
    %v1822 = vunpack.c.l.b16 %v443
    %v1823 = vunpack.c.h.b16 %v443
    %v1824 = vunpack.c.l.b16 %v444
    %v1825 = vunpack.c.h.b16 %v444
    %v1826 = vunpack.c.l.b16 %v445
    %v1827 = vunpack.c.h.b16 %v445
    %v1828 = vunpack.c.l.b16 %v446
    %v1829 = vunpack.c.h.b16 %v446
    %v1830 = vunpack.c.l.b16 %v447
    %v1831 = vunpack.c.h.b16 %v447
    %v1832 = vunpack.c.l.b16 %v448
    %v1833 = vunpack.c.h.b16 %v448
    %v1834 = vunpack.c.l.b16 %v449
    %v1835 = vunpack.c.h.b16 %v449
    %v1836 = vunpack.c.l.b16 %v450
    %v1837 = vunpack.c.h.b16 %v450
    %v1838 = vunpack.c.l.b16 %v451
    %v1839 = vunpack.c.h.b16 %v451
    %v1840 = vunpack.c.l.b16 %v452
    %v1841 = vunpack.c.h.b16 %v452
    %v1842 = vunpack.c.l.b16 %v453
    %v1843 = vunpack.c.h.b16 %v453
    %v1844 = vunpack.c.l.b16 %v454
    %v1845 = vunpack.c.h.b16 %v454
    %v1846 = vunpack.c.l.b16 %v455
    %v1847 = vunpack.c.h.b16 %v455
    %v1848 = vunpack.c.l.b16 %v456
    %v1849 = vunpack.c.h.b16 %v456
    %v1850 = vunpack.c.l.b16 %v457
    %v1851 = vunpack.c.h.b16 %v457
    %v1852 = vunpack.c.l.b16 %v458
    %v1853 = vunpack.c.h.b16 %v458
    %v1854 = vunpack.c.l.b16 %v459
    %v1855 = vunpack.c.h.b16 %v459
    %v1856 = vunpack.c.l.b16 %v460
    %v1857 = vunpack.c.h.b16 %v460
    %v1858 = vunpack.c.l.b16 %v461
    %v1859 = vunpack.c.h.b16 %v461
    %v1860 = vunpack.c.l.b16 %v462
    %v1861 = vunpack.c.h.b16 %v462
    %v1862 = vunpack.c.l.b16 %v463
    %v1863 = vunpack.c.h.b16 %v463
    %v1864 = vunpack.c.l.b16 %v464
    %v1865 = vunpack.c.h.b16 %v464
    %v1866 = vunpack.c.l.b16 %v465
    %v1867 = vunpack.c.h.b16 %v465
    %v1868 = vunpack.c.l.b16 %v466
    %v1869 = vunpack.c.h.b16 %v466
    %v1870 = vunpack.c.l.b16 %v467
    %v1871 = vunpack.c.h.b16 %v467
    %v1872 = vunpack.c.l.b16 %v468
    %v1873 = vunpack.c.h.b16 %v468
    %v1874 = vunpack.c.l.b16 %v469
    %v1875 = vunpack.c.h.b16 %v469
    %v1876 = vunpack.c.l.b16 %v470
    %v1877 = vunpack.c.h.b16 %v470
    %v1878 = vunpack.c.l.b16 %v471
    %v1879 = vunpack.c.h.b16 %v471
    %v1880 = vunpack.c.l.b16 %v472
    %v1881 = vunpack.c.h.b16 %v472
    %v1882 = vunpack.c.l.b16 %v473
    %v1883 = vunpack.c.h.b16 %v473
    %v1884 = vunpack.c.l.b16 %v474
    %v1885 = vunpack.c.h.b16 %v474
    %v1886 = vunpack.c.l.b16 %v475
    %v1887 = vunpack.c.h.b16 %v475
    %v1888 = vunpack.c.l.b16 %v476
    %v1889 = vunpack.c.h.b16 %v476
    %v1890 = vunpack.c.l.b16 %v477
    %v1891 = vunpack.c.h.b16 %v477
    %v1892 = vunpack.c.l.b16 %v478
    %v1893 = vunpack.c.h.b16 %v478
    %v1894 = vunpack.c.l.b16 %v479
    %v1895 = vunpack.c.h.b16 %v479
    %v1896 = vunpack.c.l.b16 %v480
    %v1897 = vunpack.c.h.b16 %v480
    %v1898 = vunpack.c.l.b16 %v481
    %v1899 = vunpack.c.h.b16 %v481
    %v1900 = vunpack.c.l.b16 %v482
    %v1901 = vunpack.c.h.b16 %v482
    %v1902 = vunpack.c.l.b16 %v483
    %v1903 = vunpack.c.h.b16 %v483
    %v1904 = vunpack.c.l.b16 %v484
    %v1905 = vunpack.c.h.b16 %v484
    %v1906 = vunpack.c.l.b16 %v485
    %v1907 = vunpack.c.h.b16 %v485
    %v1908 = vunpack.c.l.b16 %v486
    %v1909 = vunpack.c.h.b16 %v486
    %v1910 = vunpack.c.l.b16 %v487
    %v1911 = vunpack.c.h.b16 %v487
    %v1912 = vunpack.c.l.b16 %v488
    %v1913 = vunpack.c.h.b16 %v488
    %v1914 = vunpack.c.l.b16 %v489
    %v1915 = vunpack.c.h.b16 %v489
    %v1916 = vunpack.c.l.b16 %v490
    %v1917 = vunpack.c.h.b16 %v490
    %v1918 = vunpack.c.l.b16 %v491
    %v1919 = vunpack.c.h.b16 %v491
    %v1920 = vunpack.c.l.b16 %v492
    %v1921 = vunpack.c.h.b16 %v492
    %v1922 = vunpack.c.l.b16 %v493
    %v1923 = vunpack.c.h.b16 %v493
    %v1924 = vunpack.c.l.b16 %v494
    %v1925 = vunpack.c.h.b16 %v494
    %v1926 = vunpack.c.l.b16 %v495
    %v1927 = vunpack.c.h.b16 %v495
    %v1928 = vunpack.c.l.b16 %v496
    %v1929 = vunpack.c.h.b16 %v496
    %v1930 = vunpack.c.l.b16 %v497
    %v1931 = vunpack.c.h.b16 %v497
    %v1932 = vunpack.c.l.b16 %v498
    %v1933 = vunpack.c.h.b16 %v498
    %v1934 = vunpack.c.l.b16 %v499
    %v1935 = vunpack.c.h.b16 %v499
    %v1936 = vunpack.c.l.b16 %v500
    %v1937 = vunpack.c.h.b16 %v500
    %v1938 = vunpack.c.l.b16 %v501
    %v1939 = vunpack.c.h.b16 %v501
    %v1940 = vunpack.c.l.b16 %v502
    %v1941 = vunpack.c.h.b16 %v502
    %v1942 = vunpack.c.l.b16 %v503
    %v1943 = vunpack.c.h.b16 %v503
    %v1944 = vunpack.c.l.b16 %v504
    %v1945 = vunpack.c.h.b16 %v504
    %v1946 = vunpack.c.l.b16 %v505
    %v1947 = vunpack.c.h.b16 %v505
    %v1948 = vunpack.c.l.b16 %v506
    %v1949 = vunpack.c.h.b16 %v506
    %v1950 = vunpack.c.l.b16 %v507
    %v1951 = vunpack.c.h.b16 %v507
    %v1952 = vunpack.c.l.b16 %v508
    %v1953 = vunpack.c.h.b16 %v508
    %v1954 = vunpack.c.l.b16 %v509
    %v1955 = vunpack.c.h.b16 %v509
    %v1956 = vunpack.c.l.b16 %v510
    %v1957 = vunpack.c.h.b16 %v510
    %v1958 = vunpack.c.l.b16 %v511
    %v1959 = vunpack.c.h.b16 %v511
    %v1960 = vunpack.c.l.b16 %v512
    %v1961 = vunpack.c.h.b16 %v512
    %v1962 = vunpack.c.l.b16 %v513
    %v1963 = vunpack.c.h.b16 %v513
    %v1964 = vunpack.c.l.b16 %v514
    %v1965 = vunpack.c.h.b16 %v514
    %v1966 = vunpack.c.l.b16 %v515
    %v1967 = vunpack.c.h.b16 %v515
    %v1968 = vunpack.c.l.b16 %v516
    %v1969 = vunpack.c.h.b16 %v516
    %v1970 = vunpack.c.l.b16 %v517
    %v1971 = vunpack.c.h.b16 %v517
    %v1972 = vunpack.c.l.b16 %v518
    %v1973 = vunpack.c.h.b16 %v518
    %v1974 = vunpack.c.l.b16 %v519
    %v1975 = vunpack.c.h.b16 %v519
    %v1976 = vunpack.c.l.b16 %v520
    %v1977 = vunpack.c.h.b16 %v520
    %v1978 = vunpack.c.l.b16 %v521
    %v1979 = vunpack.c.h.b16 %v521
    %v1980 = vunpack.c.l.b16 %v522
    %v1981 = vunpack.c.h.b16 %v522
    %v1982 = vunpack.c.l.b16 %v523
    %v1983 = vunpack.c.h.b16 %v523
    %v1984 = vunpack.c.l.b16 %v524
    %v1985 = vunpack.c.h.b16 %v524
    %v1986 = vunpack.c.l.b16 %v525
    %v1987 = vunpack.c.h.b16 %v525
    %v1988 = vunpack.c.l.b16 %v526
    %v1989 = vunpack.c.h.b16 %v526
    %v1990 = vunpack.c.l.b16 %v527
    %v1991 = vunpack.c.h.b16 %v527
    %v1992 = vunpack.c.l.b16 %v528
    %v1993 = vunpack.c.h.b16 %v528
    %v1994 = vunpack.c.l.b16 %v529
    %v1995 = vunpack.c.h.b16 %v529
    %v1996 = vunpack.c.l.b16 %v530
    %v1997 = vunpack.c.h.b16 %v530
    %v1998 = vunpack.c.l.b16 %v531
    %v1999 = vunpack.c.h.b16 %v531
    %v2000 = vunpack.c.l.b16 %v532
    %v2001 = vunpack.c.h.b16 %v532
    %v2002 = vunpack.c.l.b16 %v533
    %v2003 = vunpack.c.h.b16 %v533
    %v2004 = vunpack.c.l.b16 %v534
    %v2005 = vunpack.c.h.b16 %v534
    %v2006 = vunpack.c.l.b16 %v535
    %v2007 = vunpack.c.h.b16 %v535
    %v2008 = vunpack.c.l.b16 %v536
    %v2009 = vunpack.c.h.b16 %v536
    %v2010 = vunpack.c.l.b16 %v537
    %v2011 = vunpack.c.h.b16 %v537
    %v2012 = vunpack.c.l.b16 %v538
    %v2013 = vunpack.c.h.b16 %v538
    %v2014 = vunpack.c.l.b16 %v539
    %v2015 = vunpack.c.h.b16 %v539
    %v2016 = vunpack.c.l.b16 %v540
    %v2017 = vunpack.c.h.b16 %v540
    %v2018 = vunpack.c.l.b16 %v541
    %v2019 = vunpack.c.h.b16 %v541
    %v2020 = vunpack.c.l.b16 %v542
    %v2021 = vunpack.c.h.b16 %v542
    %v2022 = vunpack.c.l.b16 %v543
    %v2023 = vunpack.c.h.b16 %v543
    %v2024 = vunpack.c.l.b16 %v544
    %v2025 = vunpack.c.h.b16 %v544
    %v2026 = vunpack.c.l.b16 %v545
    %v2027 = vunpack.c.h.b16 %v545
    %v2028 = vunpack.c.l.b16 %v546
    %v2029 = vunpack.c.h.b16 %v546
    %v2030 = vunpack.c.l.b16 %v547
    %v2031 = vunpack.c.h.b16 %v547
    %v2032 = vunpack.c.l.b16 %v548
    %v2033 = vunpack.c.h.b16 %v548
    %v2034 = vunpack.c.l.b16 %v549
    %v2035 = vunpack.c.h.b16 %v549
    %v2036 = vunpack.c.l.b16 %v550
    %v2037 = vunpack.c.h.b16 %v550
    %v2038 = vunpack.c.l.b16 %v551
    %v2039 = vunpack.c.h.b16 %v551
    %v2040 = vunpack.c.l.b16 %v552
    %v2041 = vunpack.c.h.b16 %v552
    %v2042 = vunpack.c.l.b16 %v553
    %v2043 = vunpack.c.h.b16 %v553
    %v2044 = vunpack.c.l.b16 %v554
    %v2045 = vunpack.c.h.b16 %v554
    %v2046 = vunpack.c.l.b16 %v555
    %v2047 = vunpack.c.h.b16 %v555
    %v2048 = vunpack.c.l.b16 %v556
    %v2049 = vunpack.c.h.b16 %v556
    %v2050 = vunpack.c.l.b16 %v557
    %v2051 = vunpack.c.h.b16 %v557
    %v2052 = vunpack.c.l.b16 %v558
    %v2053 = vunpack.c.h.b16 %v558
    %v2054 = vunpack.c.l.b16 %v559
    %v2055 = vunpack.c.h.b16 %v559
    %v2056 = vunpack.c.l.b16 %v560
    %v2057 = vunpack.c.h.b16 %v560
    %v2058 = vunpack.c.l.b16 %v561
    %v2059 = vunpack.c.h.b16 %v561
    %v2060 = vunpack.c.l.b16 %v562
    %v2061 = vunpack.c.h.b16 %v562
    %v2062 = vunpack.c.l.b16 %v563
    %v2063 = vunpack.c.h.b16 %v563
    %v2064 = vunpack.c.l.b16 %v564
    %v2065 = vunpack.c.h.b16 %v564
    %v2066 = vunpack.c.l.b16 %v565
    %v2067 = vunpack.c.h.b16 %v565
    %v2068 = vunpack.c.l.b16 %v566
    %v2069 = vunpack.c.h.b16 %v566
    %v2070 = vunpack.c.l.b16 %v567
    %v2071 = vunpack.c.h.b16 %v567
    %v2072 = vunpack.c.l.b16 %v568
    %v2073 = vunpack.c.h.b16 %v568
    %v2074 = vunpack.c.l.b16 %v569
    %v2075 = vunpack.c.h.b16 %v569
    %v2076 = vunpack.c.l.b16 %v570
    %v2077 = vunpack.c.h.b16 %v570
    %v2078 = vunpack.c.l.b16 %v571
    %v2079 = vunpack.c.h.b16 %v571
    %v2080 = vunpack.c.l.b16 %v572
    %v2081 = vunpack.c.h.b16 %v572
    %v2082 = vunpack.c.l.b16 %v573
    %v2083 = vunpack.c.h.b16 %v573
    %v2084 = vunpack.c.l.b16 %v574
    %v2085 = vunpack.c.h.b16 %v574
    %v2086 = vunpack.c.l.b16 %v575
    %v2087 = vunpack.c.h.b16 %v575
    %v2088 = vunpack.c.l.b16 %v576
    %v2089 = vunpack.c.h.b16 %v576
    %v2090 = vunpack.c.l.b16 %v577
    %v2091 = vunpack.c.h.b16 %v577
    %v2092 = vunpack.c.l.b16 %v578
    %v2093 = vunpack.c.h.b16 %v578
    %v2094 = vunpack.c.l.b16 %v579
    %v2095 = vunpack.c.h.b16 %v579
    %v2096 = vunpack.c.l.b16 %v580
    %v2097 = vunpack.c.h.b16 %v580
    %v2098 = vunpack.c.l.b16 %v581
    %v2099 = vunpack.c.h.b16 %v581
    %v2100 = vunpack.c.l.b16 %v582
    %v2101 = vunpack.c.h.b16 %v582
    %v2102 = vunpack.c.l.b16 %v583
    %v2103 = vunpack.c.h.b16 %v583
    %v2104 = vunpack.c.l.b16 %v584
    %v2105 = vunpack.c.h.b16 %v584
    %v2106 = vunpack.c.l.b16 %v585
    %v2107 = vunpack.c.h.b16 %v585
    %v2108 = vunpack.c.l.b16 %v586
    %v2109 = vunpack.c.h.b16 %v586
    %v2110 = vunpack.c.l.b16 %v587
    %v2111 = vunpack.c.h.b16 %v587
    %v2112 = vunpack.c.l.b16 %v588
    %v2113 = vunpack.c.h.b16 %v588
    %v2114 = vunpack.c.l.b16 %v589
    %v2115 = vunpack.c.h.b16 %v589
    %v2116 = vunpack.c.l.b16 %v590
    %v2117 = vunpack.c.h.b16 %v590
    %v2118 = vunpack.c.l.b16 %v591
    %v2119 = vunpack.c.h.b16 %v591
    %v2120 = vunpack.c.l.b16 %v592
    %v2121 = vunpack.c.h.b16 %v592
    %v2122 = vunpack.c.l.b16 %v593
    %v2123 = vunpack.c.h.b16 %v593
    %v2124 = vunpack.c.l.b16 %v594
    %v2125 = vunpack.c.h.b16 %v594
    %v2126 = vunpack.c.l.b16 %v595
    %v2127 = vunpack.c.h.b16 %v595
    %v2128 = vunpack.c.l.b16 %v596
    %v2129 = vunpack.c.h.b16 %v596
    %v2130 = vunpack.c.l.b16 %v597
    %v2131 = vunpack.c.h.b16 %v597
    %v2132 = vunpack.c.l.b16 %v598
    %v2133 = vunpack.c.h.b16 %v598
    %v2134 = vunpack.c.l.b16 %v599
    %v2135 = vunpack.c.h.b16 %v599
    %v2136 = vunpack.c.l.b16 %v600
    %v2137 = vunpack.c.h.b16 %v600
    %v2138 = vunpack.c.l.b16 %v601
    %v2139 = vunpack.c.h.b16 %v601
    %v2140 = vunpack.c.l.b16 %v602
    %v2141 = vunpack.c.h.b16 %v602
    %v2142 = vunpack.c.l.b16 %v603
    %v2143 = vunpack.c.h.b16 %v603
    %v2144 = vunpack.c.l.b16 %v604
    %v2145 = vunpack.c.h.b16 %v604
    %v2146 = vunpack.c.l.b16 %v605
    %v2147 = vunpack.c.h.b16 %v605
    %v2148 = vunpack.c.l.b16 %v606
    %v2149 = vunpack.c.h.b16 %v606
    %v2150 = vunpack.c.l.b16 %v607
    %v2151 = vunpack.c.h.b16 %v607
    %v2152 = vunpack.c.l.b16 %v608
    %v2153 = vunpack.c.h.b16 %v608
    %v2154 = vunpack.c.l.b16 %v609
    %v2155 = vunpack.c.h.b16 %v609
    %v2156 = vunpack.c.l.b16 %v610
    %v2157 = vunpack.c.h.b16 %v610
    %v2158 = vunpack.c.l.b16 %v611
    %v2159 = vunpack.c.h.b16 %v611
    %v2160 = vunpack.c.l.b16 %v612
    %v2161 = vunpack.c.h.b16 %v612
    %v2162 = vunpack.c.l.b16 %v613
    %v2163 = vunpack.c.h.b16 %v613
    %v2164 = vunpack.c.l.b16 %v614
    %v2165 = vunpack.c.h.b16 %v614
    %v2166 = vunpack.c.l.b16 %v615
    %v2167 = vunpack.c.h.b16 %v615
    %v2168 = vunpack.c.l.b16 %v616
    %v2169 = vunpack.c.h.b16 %v616
    %v2170 = vunpack.c.l.b16 %v617
    %v2171 = vunpack.c.h.b16 %v617
    %v2172 = vunpack.c.l.b16 %v618
    %v2173 = vunpack.c.h.b16 %v618
    %v2174 = vunpack.c.l.b16 %v619
    %v2175 = vunpack.c.h.b16 %v619
    %v2176 = vunpack.c.l.b16 %v620
    %v2177 = vunpack.c.h.b16 %v620
    %v2178 = vunpack.c.l.b16 %v621
    %v2179 = vunpack.c.h.b16 %v621
    %v2180 = vunpack.c.l.b16 %v622
    %v2181 = vunpack.c.h.b16 %v622
    %v2182 = vunpack.c.l.b16 %v623
    %v2183 = vunpack.c.h.b16 %v623
    %v2184 = vunpack.c.l.b16 %v624
    %v2185 = vunpack.c.h.b16 %v624
    %v2186 = vunpack.c.l.b16 %v625
    %v2187 = vunpack.c.h.b16 %v625
    %v2188 = vunpack.c.l.b16 %v626
    %v2189 = vunpack.c.h.b16 %v626
    %v2190 = vunpack.c.l.b16 %v627
    %v2191 = vunpack.c.h.b16 %v627
    %v2192 = vunpack.c.l.b16 %v628
    %v2193 = vunpack.c.h.b16 %v628
    %v2194 = vunpack.c.l.b16 %v629
    %v2195 = vunpack.c.h.b16 %v629
    %v2196 = vunpack.c.l.b16 %v630
    %v2197 = vunpack.c.h.b16 %v630
    %v2198 = vunpack.c.l.b16 %v631
    %v2199 = vunpack.c.h.b16 %v631
    %v2200 = vunpack.c.l.b16 %v632
    %v2201 = vunpack.c.h.b16 %v632
    %v2202 = vunpack.c.l.b16 %v633
    %v2203 = vunpack.c.h.b16 %v633
    %v2204 = vunpack.c.l.b16 %v634
    %v2205 = vunpack.c.h.b16 %v634
    %v2206 = vunpack.c.l.b16 %v635
    %v2207 = vunpack.c.h.b16 %v635
    %v2208 = vunpack.c.l.b16 %v636
    %v2209 = vunpack.c.h.b16 %v636
    %v2210 = vunpack.c.l.b16 %v637
    %v2211 = vunpack.c.h.b16 %v637
    %v2212 = vunpack.c.l.b16 %v638
    %v2213 = vunpack.c.h.b16 %v638
    %v2214 = vunpack.c.l.b16 %v639
    %v2215 = vunpack.c.h.b16 %v639
    %v2216 = vunpack.c.l.b16 %v640
    %v2217 = vunpack.c.h.b16 %v640
    %v2218 = vunpack.c.l.b16 %v641
    %v2219 = vunpack.c.h.b16 %v641
    %v2220 = vunpack.c.l.b16 %v642
    %v2221 = vunpack.c.h.b16 %v642
    %v2222 = vunpack.c.l.b16 %v643
    %v2223 = vunpack.c.h.b16 %v643
    %v2224 = vunpack.c.l.b16 %v644
    %v2225 = vunpack.c.h.b16 %v644
    %v2226 = vunpack.c.l.b16 %v645
    %v2227 = vunpack.c.h.b16 %v645
    %v2228 = vunpack.c.l.b16 %v646
    %v2229 = vunpack.c.h.b16 %v646
    %v2230 = vunpack.c.l.b16 %v647
    %v2231 = vunpack.c.h.b16 %v647
    %v2232 = vunpack.c.l.b16 %v648
    %v2233 = vunpack.c.h.b16 %v648
    %v2234 = vunpack.c.l.b16 %v649
    %v2235 = vunpack.c.h.b16 %v649
    %v2236 = vunpack.c.l.b16 %v650
    %v2237 = vunpack.c.h.b16 %v650
    %v2238 = vunpack.c.l.b16 %v651
    %v2239 = vunpack.c.h.b16 %v651
    %v2240 = vunpack.c.l.b16 %v652
    %v2241 = vunpack.c.h.b16 %v652
    %v2242 = vunpack.c.l.b16 %v653
    %v2243 = vunpack.c.h.b16 %v653
    %v2244 = vunpack.c.l.b16 %v654
    %v2245 = vunpack.c.h.b16 %v654
    %v2246 = vunpack.c.l.b16 %v655
    %v2247 = vunpack.c.h.b16 %v655
    %v2248 = vunpack.c.l.b16 %v656
    %v2249 = vunpack.c.h.b16 %v656
    %v2250 = vunpack.c.l.b16 %v657
    %v2251 = vunpack.c.h.b16 %v657
    %v2252 = vunpack.c.l.b16 %v658
    %v2253 = vunpack.c.h.b16 %v658
    %v2254 = vunpack.c.l.b16 %v659
    %v2255 = vunpack.c.h.b16 %v659
    %v2256 = vunpack.c.l.b16 %v660
    %v2257 = vunpack.c.h.b16 %v660
    %v2258 = vunpack.c.l.b16 %v661
    %v2259 = vunpack.c.h.b16 %v661
    %v2260 = vunpack.c.l.b16 %v662
    %v2261 = vunpack.c.h.b16 %v662
    %v2262 = vunpack.c.l.b16 %v663
    %v2263 = vunpack.c.h.b16 %v663
    %v2264 = vunpack.c.l.b16 %v664
    %v2265 = vunpack.c.h.b16 %v664
    %v2266 = vunpack.c.l.b16 %v665
    %v2267 = vunpack.c.h.b16 %v665
    %v2268 = vunpack.c.l.b16 %v666
    %v2269 = vunpack.c.h.b16 %v666
    %v2270 = vunpack.c.l.b16 %v667
    %v2271 = vunpack.c.h.b16 %v667
    %v2272 = vunpack.c.l.b16 %v668
    %v2273 = vunpack.c.h.b16 %v668
    %v2274 = vunpack.c.l.b16 %v669
    %v2275 = vunpack.c.h.b16 %v669
    %v2276 = vunpack.c.l.b16 %v670
    %v2277 = vunpack.c.h.b16 %v670
    %v2278 = vunpack.c.l.b16 %v671
    %v2279 = vunpack.c.h.b16 %v671
    %v2280 = vunpack.c.l.b16 %v672
    %v2281 = vunpack.c.h.b16 %v672
    %v2282 = vunpack.c.l.b16 %v673
    %v2283 = vunpack.c.h.b16 %v673
    %v2284 = vunpack.c.l.b16 %v674
    %v2285 = vunpack.c.h.b16 %v674
    %v2286 = vunpack.c.l.b16 %v675
    %v2287 = vunpack.c.h.b16 %v675
    %v2288 = vunpack.c.l.b16 %v676
    %v2289 = vunpack.c.h.b16 %v676
    %v2290 = vunpack.c.l.b16 %v677
    %v2291 = vunpack.c.h.b16 %v677
    %v2292 = vunpack.c.l.b16 %v678
    %v2293 = vunpack.c.h.b16 %v678
    %v2294 = vunpack.c.l.b16 %v679
    %v2295 = vunpack.c.h.b16 %v679
    %v2296 = vunpack.c.l.b16 %v680
    %v2297 = vunpack.c.h.b16 %v680
    %v2298 = vunpack.c.l.b16 %v681
    %v2299 = vunpack.c.h.b16 %v681
    %v2300 = vunpack.c.l.b16 %v682
    %v2301 = vunpack.c.h.b16 %v682
    %v2302 = vunpack.c.l.b16 %v683
    %v2303 = vunpack.c.h.b16 %v683
    %v2304 = vunpack.c.l.b16 %v684
    %v2305 = vunpack.c.h.b16 %v684
    %v2306 = vunpack.c.l.b16 %v685
    %v2307 = vunpack.c.h.b16 %v685
    %v2308 = vunpack.c.l.b16 %v686
    %v2309 = vunpack.c.h.b16 %v686
    %v2310 = vunpack.c.l.b16 %v687
    %v2311 = vunpack.c.h.b16 %v687
    %v2312 = vunpack.c.l.b16 %v688
    %v2313 = vunpack.c.h.b16 %v688
    %v2314 = vunpack.c.l.b16 %v689
    %v2315 = vunpack.c.h.b16 %v689
    %v2316 = vunpack.c.l.b16 %v690
    %v2317 = vunpack.c.h.b16 %v690
    %v2318 = vunpack.c.l.b16 %v691
    %v2319 = vunpack.c.h.b16 %v691
    %v2320 = vunpack.c.l.b16 %v692
    %v2321 = vunpack.c.h.b16 %v692
    %v2322 = vunpack.c.l.b16 %v693
    %v2323 = vunpack.c.h.b16 %v693
    %v2324 = vunpack.c.l.b16 %v694
    %v2325 = vunpack.c.h.b16 %v694
    %v2326 = vunpack.c.l.b16 %v695
    %v2327 = vunpack.c.h.b16 %v695
    %v2328 = vunpack.c.l.b16 %v696
    %v2329 = vunpack.c.h.b16 %v696
    %v2330 = vunpack.c.l.b16 %v697
    %v2331 = vunpack.c.h.b16 %v697
    %v2332 = vunpack.c.l.b16 %v698
    %v2333 = vunpack.c.h.b16 %v698
    %v2334 = vunpack.c.l.b16 %v699
    %v2335 = vunpack.c.h.b16 %v699
    %v2336 = vunpack.c.l.b16 %v700
    %v2337 = vunpack.c.h.b16 %v700
    %v2338 = vunpack.c.l.b16 %v701
    %v2339 = vunpack.c.h.b16 %v701
    %v2340 = vunpack.c.l.b16 %v702
    %v2341 = vunpack.c.h.b16 %v702
    %v2342 = vunpack.c.l.b16 %v703
    %v2343 = vunpack.c.h.b16 %v703
    %v2344 = vunpack.c.l.b16 %v704
    %v2345 = vunpack.c.h.b16 %v704
    %v2346 = vunpack.c.l.b16 %v705
    %v2347 = vunpack.c.h.b16 %v705
    %v2348 = vunpack.c.l.b16 %v706
    %v2349 = vunpack.c.h.b16 %v706
    %v2350 = vunpack.c.l.b16 %v707
    %v2351 = vunpack.c.h.b16 %v707
    %v2352 = vunpack.c.l.b16 %v708
    %v2353 = vunpack.c.h.b16 %v708
    %v2354 = vunpack.c.l.b16 %v709
    %v2355 = vunpack.c.h.b16 %v709
    %v2356 = vunpack.c.l.b16 %v710
    %v2357 = vunpack.c.h.b16 %v710
    %v2358 = vunpack.c.l.b16 %v711
    %v2359 = vunpack.c.h.b16 %v711
    %v2360 = vunpack.c.l.b16 %v712
    %v2361 = vunpack.c.h.b16 %v712
    %v2362 = vunpack.c.l.b16 %v713
    %v2363 = vunpack.c.h.b16 %v713
    %v2364 = vunpack.c.l.b16 %v714
    %v2365 = vunpack.c.h.b16 %v714
    %v2366 = vunpack.c.l.b16 %v715
    %v2367 = vunpack.c.h.b16 %v715
    %v2368 = vunpack.c.l.b16 %v716
    %v2369 = vunpack.c.h.b16 %v716
    %v2370 = vunpack.c.l.b16 %v717
    %v2371 = vunpack.c.h.b16 %v717
    %v2372 = vunpack.c.l.b16 %v718
    %v2373 = vunpack.c.h.b16 %v718
    %v2374 = vunpack.c.l.b16 %v719
    %v2375 = vunpack.c.h.b16 %v719
    %v2376 = vunpack.c.l.b16 %v720
    %v2377 = vunpack.c.h.b16 %v720
    %v2378 = vunpack.c.l.b16 %v721
    %v2379 = vunpack.c.h.b16 %v721
    %v2380 = vunpack.c.l.b16 %v722
    %v2381 = vunpack.c.h.b16 %v722
    %v2382 = vunpack.c.l.b16 %v723
    %v2383 = vunpack.c.h.b16 %v723
    %v2384 = vunpack.c.l.b16 %v724
    %v2385 = vunpack.c.h.b16 %v724
    %v2386 = vunpack.c.l.b16 %v725
    %v2387 = vunpack.c.h.b16 %v725
    %v2388 = vunpack.c.l.b16 %v726
    %v2389 = vunpack.c.h.b16 %v726
    %v2390 = vunpack.c.l.b16 %v727
    %v2391 = vunpack.c.h.b16 %v727
    %v2392 = vunpack.c.l.b16 %v728
    %v2393 = vunpack.c.h.b16 %v728
    %v2394 = vunpack.c.l.b16 %v729
    %v2395 = vunpack.c.h.b16 %v729
    %v2396 = vunpack.c.l.b16 %v730
    %v2397 = vunpack.c.h.b16 %v730
    %v2398 = vunpack.c.l.b16 %v731
    %v2399 = vunpack.c.h.b16 %v731
    %v2400 = vunpack.c.l.b16 %v732
    %v2401 = vunpack.c.h.b16 %v732
    %v2402 = vunpack.c.l.b16 %v733
    %v2403 = vunpack.c.h.b16 %v733
    %v2404 = vunpack.c.l.b16 %v734
    %v2405 = vunpack.c.h.b16 %v734
    %v2406 = vunpack.c.l.b16 %v735
    %v2407 = vunpack.c.h.b16 %v735
    %v2408 = vunpack.c.l.b16 %v736
    %v2409 = vunpack.c.h.b16 %v736
    %v2410 = vunpack.c.l.b16 %v737
    %v2411 = vunpack.c.h.b16 %v737
    %v2412 = vunpack.c.l.b16 %v738
    %v2413 = vunpack.c.h.b16 %v738
    %v2414 = vunpack.c.l.b16 %v739
    %v2415 = vunpack.c.h.b16 %v739
    %v2416 = vunpack.c.l.b16 %v740
    %v2417 = vunpack.c.h.b16 %v740
    %v2418 = vunpack.c.l.b16 %v741
    %v2419 = vunpack.c.h.b16 %v741
    %v2420 = vunpack.c.l.b16 %v742
    %v2421 = vunpack.c.h.b16 %v742
    %v2422 = vunpack.c.l.b16 %v743
    %v2423 = vunpack.c.h.b16 %v743
    %v2424 = vunpack.c.l.b16 %v744
    %v2425 = vunpack.c.h.b16 %v744
    %v2426 = vunpack.c.l.b16 %v745
    %v2427 = vunpack.c.h.b16 %v745
    %v2428 = vunpack.c.l.b16 %v746
    %v2429 = vunpack.c.h.b16 %v746
    %v2430 = vunpack.c.l.b16 %v747
    %v2431 = vunpack.c.h.b16 %v747
    %v2432 = vunpack.c.l.b16 %v748
    %v2433 = vunpack.c.h.b16 %v748
    %v2434 = vunpack.c.l.b16 %v749
    %v2435 = vunpack.c.h.b16 %v749
    %v2436 = vunpack.c.l.b16 %v750
    %v2437 = vunpack.c.h.b16 %v750
    %v2438 = vunpack.c.l.b16 %v751
    %v2439 = vunpack.c.h.b16 %v751
    %v2440 = vunpack.c.l.b16 %v752
    %v2441 = vunpack.c.h.b16 %v752
    %v2442 = vunpack.c.l.b16 %v753
    %v2443 = vunpack.c.h.b16 %v753
    %v2444 = vunpack.c.l.b16 %v754
    %v2445 = vunpack.c.h.b16 %v754
    %v2446 = vunpack.c.l.b16 %v755
    %v2447 = vunpack.c.h.b16 %v755
    %v2448 = vunpack.c.l.b16 %v756
    %v2449 = vunpack.c.h.b16 %v756
    %v2450 = vunpack.c.l.b16 %v757
    %v2451 = vunpack.c.h.b16 %v757
    %v2452 = vunpack.c.l.b16 %v758
    %v2453 = vunpack.c.h.b16 %v758
    %v2454 = vunpack.c.l.b16 %v759
    %v2455 = vunpack.c.h.b16 %v759
    %v2456 = vunpack.c.l.b16 %v760
    %v2457 = vunpack.c.h.b16 %v760
    %v2458 = vunpack.c.l.b16 %v761
    %v2459 = vunpack.c.h.b16 %v761
    %v2460 = vunpack.c.l.b16 %v762
    %v2461 = vunpack.c.h.b16 %v762
    %v2462 = vunpack.c.l.b16 %v763
    %v2463 = vunpack.c.h.b16 %v763
    %v2464 = vunpack.c.l.b16 %v764
    %v2465 = vunpack.c.h.b16 %v764
    %v2466 = vunpack.c.l.b16 %v765
    %v2467 = vunpack.c.h.b16 %v765
    %v2468 = vunpack.c.l.b16 %v766
    %v2469 = vunpack.c.h.b16 %v766
    %v2470 = vunpack.c.l.b16 %v767
    %v2471 = vunpack.c.h.b16 %v767
    %v2472 = vunpack.c.l.b16 %v768
    %v2473 = vunpack.c.h.b16 %v768
    %v2474 = vunpack.c.l.b16 %v769
    %v2475 = vunpack.c.h.b16 %v769
    %v2476 = vunpack.c.l.b16 %v770
    %v2477 = vunpack.c.h.b16 %v770
    %v2478 = vunpack.c.l.b16 %v771
    %v2479 = vunpack.c.h.b16 %v771
    %v2480 = vunpack.c.l.b16 %v772
    %v2481 = vunpack.c.h.b16 %v772
    %v2482 = vunpack.c.l.b16 %v773
    %v2483 = vunpack.c.h.b16 %v773
    %v2484 = vunpack.c.l.b16 %v774
    %v2485 = vunpack.c.h.b16 %v774
    %v2486 = vunpack.c.l.b16 %v775
    %v2487 = vunpack.c.h.b16 %v775
    %v2488 = vunpack.c.l.b16 %v776
    %v2489 = vunpack.c.h.b16 %v776
    %v2490 = vunpack.c.l.b16 %v777
    %v2491 = vunpack.c.h.b16 %v777
    %v2492 = vunpack.c.l.b16 %v778
    %v2493 = vunpack.c.h.b16 %v778
    %v2494 = vunpack.c.l.b16 %v779
    %v2495 = vunpack.c.h.b16 %v779
    %v2496 = vunpack.c.l.b16 %v780
    %v2497 = vunpack.c.h.b16 %v780
    %v2498 = vunpack.c.l.b16 %v781
    %v2499 = vunpack.c.h.b16 %v781
    %v2500 = vunpack.c.l.b16 %v782
    %v2501 = vunpack.c.h.b16 %v782
    %v2502 = vunpack.c.l.b16 %v783
    %v2503 = vunpack.c.h.b16 %v783
    %v2504 = vunpack.c.l.b16 %v784
    %v2505 = vunpack.c.h.b16 %v784
    %v2506 = vunpack.c.l.b16 %v785
    %v2507 = vunpack.c.h.b16 %v785
    %v2508 = vunpack.c.l.b16 %v786
    %v2509 = vunpack.c.h.b16 %v786
    %v2510 = vunpack.c.l.b16 %v787
    %v2511 = vunpack.c.h.b16 %v787
    %v2512 = vunpack.c.l.b16 %v788
    %v2513 = vunpack.c.h.b16 %v788
    %v2514 = vunpack.c.l.b16 %v789
    %v2515 = vunpack.c.h.b16 %v789
    %v2516 = vunpack.c.l.b16 %v790
    %v2517 = vunpack.c.h.b16 %v790
    %v2518 = vunpack.c.l.b16 %v791
    %v2519 = vunpack.c.h.b16 %v791
    %v2520 = vunpack.c.l.b16 %v792
    %v2521 = vunpack.c.h.b16 %v792
    %v2522 = vunpack.c.l.b16 %v793
    %v2523 = vunpack.c.h.b16 %v793
    %v2524 = vunpack.c.l.b16 %v794
    %v2525 = vunpack.c.h.b16 %v794
    %v2526 = vunpack.c.l.b16 %v795
    %v2527 = vunpack.c.h.b16 %v795
    %v2528 = vunpack.c.l.b16 %v796
    %v2529 = vunpack.c.h.b16 %v796
    %v2530 = vunpack.c.l.b16 %v797
    %v2531 = vunpack.c.h.b16 %v797
    %v2532 = vunpack.c.l.b16 %v798
    %v2533 = vunpack.c.h.b16 %v798
    %v2534 = vunpack.c.l.b16 %v799
    %v2535 = vunpack.c.h.b16 %v799
    %v2536 = vunpack.c.l.b16 %v800
    %v2537 = vunpack.c.h.b16 %v800
    %v2538 = vunpack.c.l.b16 %v801
    %v2539 = vunpack.c.h.b16 %v801
    %v2540 = vunpack.c.l.b16 %v802
    %v2541 = vunpack.c.h.b16 %v802
    %v2542 = vunpack.c.l.b16 %v803
    %v2543 = vunpack.c.h.b16 %v803
    %v2544 = vpack.c.b16 %v1394, %v1392
    %v2545 = vpack.c.b16 %v1395, %v1393
    %v2546 = vpack.c.b16 %v1398, %v1396
    %v2547 = vpack.c.b16 %v1399, %v1397
    %v2548 = vpack.c.b16 %v1402, %v1400
    %v2549 = vpack.c.b16 %v1403, %v1401
    %v2550 = vpack.c.b16 %v1406, %v1404
    %v2551 = vpack.c.b16 %v1407, %v1405
    %v2552 = vpack.c.b16 %v1410, %v1408
    %v2553 = vpack.c.b16 %v1411, %v1409
    %v2554 = vpack.c.b16 %v1414, %v1412
    %v2555 = vpack.c.b16 %v1415, %v1413
    %v2556 = vpack.c.b16 %v1418, %v1416
    %v2557 = vpack.c.b16 %v1419, %v1417
    %v2558 = vpack.c.b16 %v1422, %v1420
    %v2559 = vpack.c.b16 %v1423, %v1421
    %v2560 = vpack.c.b16 %v1426, %v1424
    %v2561 = vpack.c.b16 %v1427, %v1425
    %v2562 = vpack.c.b16 %v1430, %v1428
    %v2563 = vpack.c.b16 %v1431, %v1429
    %v2564 = vpack.c.b16 %v1434, %v1432
    %v2565 = vpack.c.b16 %v1435, %v1433
    %v2566 = vpack.c.b16 %v1438, %v1436
    %v2567 = vpack.c.b16 %v1439, %v1437
    %v2568 = vpack.c.b16 %v1442, %v1440
    %v2569 = vpack.c.b16 %v1443, %v1441
    %v2570 = vpack.c.b16 %v1446, %v1444
    %v2571 = vpack.c.b16 %v1447, %v1445
    %v2572 = vpack.c.b16 %v1450, %v1448
    %v2573 = vpack.c.b16 %v1451, %v1449
    %v2574 = vpack.c.b16 %v1454, %v1452
    %v2575 = vpack.c.b16 %v1455, %v1453
    %v2576 = vpack.c.b16 %v1458, %v1456
    %v2577 = vpack.c.b16 %v1459, %v1457
    %v2578 = vpack.c.b16 %v1462, %v1460
    %v2579 = vpack.c.b16 %v1463, %v1461
    %v2580 = vpack.c.b16 %v1466, %v1464
    %v2581 = vpack.c.b16 %v1467, %v1465
    %v2582 = vpack.c.b16 %v1470, %v1468
    %v2583 = vpack.c.b16 %v1471, %v1469
    %v2584 = vpack.c.b16 %v1474, %v1472
    %v2585 = vpack.c.b16 %v1475, %v1473
    %v2586 = vpack.c.b16 %v1478, %v1476
    %v2587 = vpack.c.b16 %v1479, %v1477
    %v2588 = vpack.c.b16 %v1482, %v1480
    %v2589 = vpack.c.b16 %v1483, %v1481
    %v2590 = vpack.c.b16 %v1486, %v1484
    %v2591 = vpack.c.b16 %v1487, %v1485
    %v2592 = vpack.c.b16 %v1490, %v1488
    %v2593 = vpack.c.b16 %v1491, %v1489
    %v2594 = vpack.c.b16 %v1494, %v1492
    %v2595 = vpack.c.b16 %v1495, %v1493
    %v2596 = vpack.c.b16 %v1498, %v1496
    %v2597 = vpack.c.b16 %v1499, %v1497
    %v2598 = vpack.c.b16 %v1502, %v1500
    %v2599 = vpack.c.b16 %v1503, %v1501
    %v2600 = vpack.c.b16 %v1506, %v1504
    %v2601 = vpack.c.b16 %v1507, %v1505
    %v2602 = vpack.c.b16 %v1510, %v1508
    %v2603 = vpack.c.b16 %v1511, %v1509
    %v2604 = vpack.c.b16 %v1514, %v1512
    %v2605 = vpack.c.b16 %v1515, %v1513
    %v2606 = vpack.c.b16 %v1518, %v1516
    %v2607 = vpack.c.b16 %v1519, %v1517
    %v2608 = vpack.c.b16 %v1522, %v1520
    %v2609 = vpack.c.b16 %v1523, %v1521
    %v2610 = vpack.c.b16 %v1526, %v1524
    %v2611 = vpack.c.b16 %v1527, %v1525
    %v2612 = vpack.c.b16 %v1530, %v1528
    %v2613 = vpack.c.b16 %v1531, %v1529
    %v2614 = vpack.c.b16 %v1534, %v1532
    %v2615 = vpack.c.b16 %v1535, %v1533
    %v2616 = vpack.c.b16 %v1538, %v1536
    %v2617 = vpack.c.b16 %v1539, %v1537
    %v2618 = vpack.c.b16 %v1542, %v1540
    %v2619 = vpack.c.b16 %v1543, %v1541
    %v2620 = vpack.c.b16 %v1546, %v1544
    %v2621 = vpack.c.b16 %v1547, %v1545
    %v2622 = vpack.c.b16 %v1550, %v1548
    %v2623 = vpack.c.b16 %v1551, %v1549
    %v2624 = vpack.c.b16 %v1554, %v1552
    %v2625 = vpack.c.b16 %v1555, %v1553
    %v2626 = vpack.c.b16 %v1558, %v1556
    %v2627 = vpack.c.b16 %v1559, %v1557
    %v2628 = vpack.c.b16 %v1562, %v1560
    %v2629 = vpack.c.b16 %v1563, %v1561
    %v2630 = vpack.c.b16 %v1566, %v1564
    %v2631 = vpack.c.b16 %v1567, %v1565
    %v2632 = vpack.c.b16 %v1570, %v1568
    %v2633 = vpack.c.b16 %v1571, %v1569
    %v2634 = vpack.c.b16 %v1574, %v1572
    %v2635 = vpack.c.b16 %v1575, %v1573
    %v2636 = vpack.c.b16 %v1578, %v1576
    %v2637 = vpack.c.b16 %v1579, %v1577
    %v2638 = vpack.c.b16 %v1582, %v1580
    %v2639 = vpack.c.b16 %v1583, %v1581
    %v2640 = vpack.c.b16 %v1586, %v1584
    %v2641 = vpack.c.b16 %v1587, %v1585
    %v2642 = vpack.c.b16 %v1590, %v1588
    %v2643 = vpack.c.b16 %v1591, %v1589
    %v2644 = vpack.c.b16 %v1594, %v1592
    %v2645 = vpack.c.b16 %v1595, %v1593
    %v2646 = vpack.c.b16 %v1598, %v1596
    %v2647 = vpack.c.b16 %v1599, %v1597
    %v2648 = vpack.c.b16 %v1602, %v1600
    %v2649 = vpack.c.b16 %v1603, %v1601
    %v2650 = vpack.c.b16 %v1606, %v1604
    %v2651 = vpack.c.b16 %v1607, %v1605
    %v2652 = vpack.c.b16 %v1610, %v1608
    %v2653 = vpack.c.b16 %v1611, %v1609
    %v2654 = vpack.c.b16 %v1614, %v1612
    %v2655 = vpack.c.b16 %v1615, %v1613
    %v2656 = vpack.c.b16 %v1618, %v1616
    %v2657 = vpack.c.b16 %v1619, %v1617
    %v2658 = vpack.c.b16 %v1622, %v1620
    %v2659 = vpack.c.b16 %v1623, %v1621
    %v2660 = vpack.c.b16 %v1626, %v1624
    %v2661 = vpack.c.b16 %v1627, %v1625
    %v2662 = vpack.c.b16 %v1630, %v1628
    %v2663 = vpack.c.b16 %v1631, %v1629
    %v2664 = vpack.c.b16 %v1634, %v1632
    %v2665 = vpack.c.b16 %v1635, %v1633
    %v2666 = vpack.c.b16 %v1638, %v1636
    %v2667 = vpack.c.b16 %v1639, %v1637
    %v2668 = vpack.c.b16 %v1642, %v1640
    %v2669 = vpack.c.b16 %v1643, %v1641
    %v2670 = vpack.c.b16 %v1646, %v1644
    %v2671 = vpack.c.b16 %v1647, %v1645
    %v2672 = vpack.c.b16 %v1650, %v1648
    %v2673 = vpack.c.b16 %v1651, %v1649
    %v2674 = vpack.c.b16 %v1654, %v1652
    %v2675 = vpack.c.b16 %v1655, %v1653
    %v2676 = vpack.c.b16 %v1658, %v1656
    %v2677 = vpack.c.b16 %v1659, %v1657
    %v2678 = vpack.c.b16 %v1662, %v1660
    %v2679 = vpack.c.b16 %v1663, %v1661
    %v2680 = vpack.c.b16 %v1666, %v1664
    %v2681 = vpack.c.b16 %v1667, %v1665
    %v2682 = vpack.c.b16 %v1670, %v1668
    %v2683 = vpack.c.b16 %v1671, %v1669
    %v2684 = vpack.c.b16 %v1674, %v1672
    %v2685 = vpack.c.b16 %v1675, %v1673
    %v2686 = vpack.c.b16 %v1678, %v1676
    %v2687 = vpack.c.b16 %v1679, %v1677
    %v2688 = vpack.c.b16 %v1682, %v1680
    %v2689 = vpack.c.b16 %v1683, %v1681
    %v2690 = vpack.c.b16 %v1686, %v1684
    %v2691 = vpack.c.b16 %v1687, %v1685
    %v2692 = vpack.c.b16 %v1690, %v1688
    %v2693 = vpack.c.b16 %v1691, %v1689
    %v2694 = vpack.c.b16 %v1694, %v1692
    %v2695 = vpack.c.b16 %v1695, %v1693
    %v2696 = vpack.c.b16 %v1698, %v1696
    %v2697 = vpack.c.b16 %v1699, %v1697
    %v2698 = vpack.c.b16 %v1702, %v1700
    %v2699 = vpack.c.b16 %v1703, %v1701
    %v2700 = vpack.c.b16 %v1706, %v1704
    %v2701 = vpack.c.b16 %v1707, %v1705
    %v2702 = vpack.c.b16 %v1710, %v1708
    %v2703 = vpack.c.b16 %v1711, %v1709
    %v2704 = vpack.c.b16 %v1714, %v1712
    %v2705 = vpack.c.b16 %v1715, %v1713
    %v2706 = vpack.c.b16 %v1718, %v1716
    %v2707 = vpack.c.b16 %v1719, %v1717
    %v2708 = vpack.c.b16 %v1722, %v1720
    %v2709 = vpack.c.b16 %v1723, %v1721
    %v2710 = vpack.c.b16 %v1726, %v1724
    %v2711 = vpack.c.b16 %v1727, %v1725
    %v2712 = vpack.c.b16 %v1730, %v1728
    %v2713 = vpack.c.b16 %v1731, %v1729
    %v2714 = vpack.c.b16 %v1734, %v1732
    %v2715 = vpack.c.b16 %v1735, %v1733
    %v2716 = vpack.c.b16 %v1738, %v1736
    %v2717 = vpack.c.b16 %v1739, %v1737
    %v2718 = vpack.c.b16 %v1742, %v1740
    %v2719 = vpack.c.b16 %v1743, %v1741
    %v2720 = vpack.c.b16 %v1746, %v1744
    %v2721 = vpack.c.b16 %v1747, %v1745
    %v2722 = vpack.c.b16 %v1750, %v1748
    %v2723 = vpack.c.b16 %v1751, %v1749
    %v2724 = vpack.c.b16 %v1754, %v1752
    %v2725 = vpack.c.b16 %v1755, %v1753
    %v2726 = vpack.c.b16 %v1758, %v1756
    %v2727 = vpack.c.b16 %v1759, %v1757
    %v2728 = vpack.c.b16 %v1762, %v1760
    %v2729 = vpack.c.b16 %v1763, %v1761
    %v2730 = vpack.c.b16 %v1766, %v1764
    %v2731 = vpack.c.b16 %v1767, %v1765
    %v2732 = vpack.c.b16 %v1770, %v1768
    %v2733 = vpack.c.b16 %v1771, %v1769
    %v2734 = vpack.c.b16 %v1774, %v1772
    %v2735 = vpack.c.b16 %v1775, %v1773
    %v2736 = vpack.c.b16 %v1778, %v1776
    %v2737 = vpack.c.b16 %v1779, %v1777
    %v2738 = vpack.c.b16 %v1782, %v1780
    %v2739 = vpack.c.b16 %v1783, %v1781
    %v2740 = vpack.c.b16 %v1786, %v1784
    %v2741 = vpack.c.b16 %v1787, %v1785
    %v2742 = vpack.c.b16 %v1790, %v1788
    %v2743 = vpack.c.b16 %v1791, %v1789
    %v2744 = vpack.c.b16 %v1794, %v1792
    %v2745 = vpack.c.b16 %v1795, %v1793
    %v2746 = vpack.c.b16 %v1798, %v1796
    %v2747 = vpack.c.b16 %v1799, %v1797
    %v2748 = vpack.c.b16 %v1802, %v1800
    %v2749 = vpack.c.b16 %v1803, %v1801
    %v2750 = vpack.c.b16 %v1806, %v1804
    %v2751 = vpack.c.b16 %v1807, %v1805
    %v2752 = vpack.c.b16 %v1810, %v1808
    %v2753 = vpack.c.b16 %v1811, %v1809
    %v2754 = vpack.c.b16 %v1814, %v1812
    %v2755 = vpack.c.b16 %v1815, %v1813
    %v2756 = vpack.c.b16 %v1818, %v1816
    %v2757 = vpack.c.b16 %v1819, %v1817
    %v2758 = vpack.c.b16 %v1822, %v1820
    %v2759 = vpack.c.b16 %v1823, %v1821
    %v2760 = vpack.c.b16 %v1826, %v1824
    %v2761 = vpack.c.b16 %v1827, %v1825
    %v2762 = vpack.c.b16 %v1830, %v1828
    %v2763 = vpack.c.b16 %v1831, %v1829
    %v2764 = vpack.c.b16 %v1834, %v1832
    %v2765 = vpack.c.b16 %v1835, %v1833
    %v2766 = vpack.c.b16 %v1838, %v1836
    %v2767 = vpack.c.b16 %v1839, %v1837
    %v2768 = vpack.c.b16 %v1842, %v1840
    %v2769 = vpack.c.b16 %v1843, %v1841
    %v2770 = vpack.c.b16 %v1846, %v1844
    %v2771 = vpack.c.b16 %v1847, %v1845
    %v2772 = vpack.c.b16 %v1850, %v1848
    %v2773 = vpack.c.b16 %v1851, %v1849
    %v2774 = vpack.c.b16 %v1854, %v1852
    %v2775 = vpack.c.b16 %v1855, %v1853
    %v2776 = vpack.c.b16 %v1858, %v1856
    %v2777 = vpack.c.b16 %v1859, %v1857
    %v2778 = vpack.c.b16 %v1862, %v1860
    %v2779 = vpack.c.b16 %v1863, %v1861
    %v2780 = vpack.c.b16 %v1866, %v1864
    %v2781 = vpack.c.b16 %v1867, %v1865
    %v2782 = vpack.c.b16 %v1870, %v1868
    %v2783 = vpack.c.b16 %v1871, %v1869
    %v2784 = vpack.c.b16 %v1874, %v1872
    %v2785 = vpack.c.b16 %v1875, %v1873
    %v2786 = vpack.c.b16 %v1878, %v1876
    %v2787 = vpack.c.b16 %v1879, %v1877
    %v2788 = vpack.c.b16 %v1882, %v1880
    %v2789 = vpack.c.b16 %v1883, %v1881
    %v2790 = vpack.c.b16 %v1886, %v1884
    %v2791 = vpack.c.b16 %v1887, %v1885
    %v2792 = vpack.c.b16 %v1890, %v1888
    %v2793 = vpack.c.b16 %v1891, %v1889
    %v2794 = vpack.c.b16 %v1894, %v1892
    %v2795 = vpack.c.b16 %v1895, %v1893
    %v2796 = vpack.c.b16 %v1898, %v1896
    %v2797 = vpack.c.b16 %v1899, %v1897
    %v2798 = vpack.c.b16 %v1902, %v1900
    %v2799 = vpack.c.b16 %v1903, %v1901
    %v2800 = vpack.c.b16 %v1906, %v1904
    %v2801 = vpack.c.b16 %v1907, %v1905
    %v2802 = vpack.c.b16 %v1910, %v1908
    %v2803 = vpack.c.b16 %v1911, %v1909
    %v2804 = vpack.c.b16 %v1914, %v1912
    %v2805 = vpack.c.b16 %v1915, %v1913
    %v2806 = vpack.c.b16 %v1918, %v1916
    %v2807 = vpack.c.b16 %v1919, %v1917
    %v2808 = vpack.c.b16 %v1922, %v1920
    %v2809 = vpack.c.b16 %v1923, %v1921
    %v2810 = vpack.c.b16 %v1926, %v1924
    %v2811 = vpack.c.b16 %v1927, %v1925
    %v2812 = vpack.c.b16 %v1930, %v1928
    %v2813 = vpack.c.b16 %v1931, %v1929
    %v2814 = vpack.c.b16 %v1934, %v1932
    %v2815 = vpack.c.b16 %v1935, %v1933
    %v2816 = vpack.c.b16 %v1938, %v1936
    %v2817 = vpack.c.b16 %v1939, %v1937
    %v2818 = vpack.c.b16 %v1942, %v1940
    %v2819 = vpack.c.b16 %v1943, %v1941
    %v2820 = vpack.c.b16 %v1946, %v1944
    %v2821 = vpack.c.b16 %v1947, %v1945
    %v2822 = vpack.c.b16 %v1950, %v1948
    %v2823 = vpack.c.b16 %v1951, %v1949
    %v2824 = vpack.c.b16 %v1954, %v1952
    %v2825 = vpack.c.b16 %v1955, %v1953
    %v2826 = vpack.c.b16 %v1958, %v1956
    %v2827 = vpack.c.b16 %v1959, %v1957
    %v2828 = vpack.c.b16 %v1962, %v1960
    %v2829 = vpack.c.b16 %v1963, %v1961
    %v2830 = vpack.c.b16 %v1966, %v1964
    %v2831 = vpack.c.b16 %v1967, %v1965
    %v2832 = vpack.c.b16 %v1970, %v1968
    %v2833 = vpack.c.b16 %v1971, %v1969
    %v2834 = vpack.c.b16 %v1974, %v1972
    %v2835 = vpack.c.b16 %v1975, %v1973
    %v2836 = vpack.c.b16 %v1978, %v1976
    %v2837 = vpack.c.b16 %v1979, %v1977
    %v2838 = vpack.c.b16 %v1982, %v1980
    %v2839 = vpack.c.b16 %v1983, %v1981
    %v2840 = vpack.c.b16 %v1986, %v1984
    %v2841 = vpack.c.b16 %v1987, %v1985
    %v2842 = vpack.c.b16 %v1990, %v1988
    %v2843 = vpack.c.b16 %v1991, %v1989
    %v2844 = vpack.c.b16 %v1994, %v1992
    %v2845 = vpack.c.b16 %v1995, %v1993
    %v2846 = vpack.c.b16 %v1998, %v1996
    %v2847 = vpack.c.b16 %v1999, %v1997
    %v2848 = vpack.c.b16 %v2002, %v2000
    %v2849 = vpack.c.b16 %v2003, %v2001
    %v2850 = vpack.c.b16 %v2006, %v2004
    %v2851 = vpack.c.b16 %v2007, %v2005
    %v2852 = vpack.c.b16 %v2010, %v2008
    %v2853 = vpack.c.b16 %v2011, %v2009
    %v2854 = vpack.c.b16 %v2014, %v2012
    %v2855 = vpack.c.b16 %v2015, %v2013
    %v2856 = vpack.c.b16 %v2018, %v2016
    %v2857 = vpack.c.b16 %v2019, %v2017
    %v2858 = vpack.c.b16 %v2022, %v2020
    %v2859 = vpack.c.b16 %v2023, %v2021
    %v2860 = vpack.c.b16 %v2026, %v2024
    %v2861 = vpack.c.b16 %v2027, %v2025
    %v2862 = vpack.c.b16 %v2030, %v2028
    %v2863 = vpack.c.b16 %v2031, %v2029
    %v2864 = vpack.c.b16 %v2034, %v2032
    %v2865 = vpack.c.b16 %v2035, %v2033
    %v2866 = vpack.c.b16 %v2038, %v2036
    %v2867 = vpack.c.b16 %v2039, %v2037
    %v2868 = vpack.c.b16 %v2042, %v2040
    %v2869 = vpack.c.b16 %v2043, %v2041
    %v2870 = vpack.c.b16 %v2046, %v2044
    %v2871 = vpack.c.b16 %v2047, %v2045
    %v2872 = vpack.c.b16 %v2050, %v2048
    %v2873 = vpack.c.b16 %v2051, %v2049
    %v2874 = vpack.c.b16 %v2054, %v2052
    %v2875 = vpack.c.b16 %v2055, %v2053
    %v2876 = vpack.c.b16 %v2058, %v2056
    %v2877 = vpack.c.b16 %v2059, %v2057
    %v2878 = vpack.c.b16 %v2062, %v2060
    %v2879 = vpack.c.b16 %v2063, %v2061
    %v2880 = vpack.c.b16 %v2066, %v2064
    %v2881 = vpack.c.b16 %v2067, %v2065
    %v2882 = vpack.c.b16 %v2070, %v2068
    %v2883 = vpack.c.b16 %v2071, %v2069
    %v2884 = vpack.c.b16 %v2074, %v2072
    %v2885 = vpack.c.b16 %v2075, %v2073
    %v2886 = vpack.c.b16 %v2078, %v2076
    %v2887 = vpack.c.b16 %v2079, %v2077
    %v2888 = vpack.c.b16 %v2082, %v2080
    %v2889 = vpack.c.b16 %v2083, %v2081
    %v2890 = vpack.c.b16 %v2086, %v2084
    %v2891 = vpack.c.b16 %v2087, %v2085
    %v2892 = vpack.c.b16 %v2090, %v2088
    %v2893 = vpack.c.b16 %v2091, %v2089
    %v2894 = vpack.c.b16 %v2094, %v2092
    %v2895 = vpack.c.b16 %v2095, %v2093
    %v2896 = vpack.c.b16 %v2098, %v2096
    %v2897 = vpack.c.b16 %v2099, %v2097
    %v2898 = vpack.c.b16 %v2102, %v2100
    %v2899 = vpack.c.b16 %v2103, %v2101
    %v2900 = vpack.c.b16 %v2106, %v2104
    %v2901 = vpack.c.b16 %v2107, %v2105
    %v2902 = vpack.c.b16 %v2110, %v2108
    %v2903 = vpack.c.b16 %v2111, %v2109
    %v2904 = vpack.c.b16 %v2114, %v2112
    %v2905 = vpack.c.b16 %v2115, %v2113
    %v2906 = vpack.c.b16 %v2118, %v2116
    %v2907 = vpack.c.b16 %v2119, %v2117
    %v2908 = vpack.c.b16 %v2122, %v2120
    %v2909 = vpack.c.b16 %v2123, %v2121
    %v2910 = vpack.c.b16 %v2126, %v2124
    %v2911 = vpack.c.b16 %v2127, %v2125
    %v2912 = vpack.c.b16 %v2130, %v2128
    %v2913 = vpack.c.b16 %v2131, %v2129
    %v2914 = vpack.c.b16 %v2134, %v2132
    %v2915 = vpack.c.b16 %v2135, %v2133
    %v2916 = vpack.c.b16 %v2138, %v2136
    %v2917 = vpack.c.b16 %v2139, %v2137
    %v2918 = vpack.c.b16 %v2142, %v2140
    %v2919 = vpack.c.b16 %v2143, %v2141
    %v2920 = vpack.c.b16 %v2146, %v2144
    %v2921 = vpack.c.b16 %v2147, %v2145
    %v2922 = vpack.c.b16 %v2150, %v2148
    %v2923 = vpack.c.b16 %v2151, %v2149
    %v2924 = vpack.c.b16 %v2154, %v2152
    %v2925 = vpack.c.b16 %v2155, %v2153
    %v2926 = vpack.c.b16 %v2158, %v2156
    %v2927 = vpack.c.b16 %v2159, %v2157
    %v2928 = vpack.c.b16 %v2162, %v2160
    %v2929 = vpack.c.b16 %v2163, %v2161
    %v2930 = vpack.c.b16 %v2166, %v2164
    %v2931 = vpack.c.b16 %v2167, %v2165
    %v2932 = vpack.c.b16 %v2170, %v2168
    %v2933 = vpack.c.b16 %v2171, %v2169
    %v2934 = vpack.c.b16 %v2174, %v2172
    %v2935 = vpack.c.b16 %v2175, %v2173
    %v2936 = vpack.c.b16 %v2178, %v2176
    %v2937 = vpack.c.b16 %v2179, %v2177
    %v2938 = vpack.c.b16 %v2182, %v2180
    %v2939 = vpack.c.b16 %v2183, %v2181
    %v2940 = vpack.c.b16 %v2186, %v2184
    %v2941 = vpack.c.b16 %v2187, %v2185
    %v2942 = vpack.c.b16 %v2190, %v2188
    %v2943 = vpack.c.b16 %v2191, %v2189
    %v2944 = vpack.c.b16 %v2194, %v2192
    %v2945 = vpack.c.b16 %v2195, %v2193
    %v2946 = vpack.c.b16 %v2198, %v2196
    %v2947 = vpack.c.b16 %v2199, %v2197
    %v2948 = vpack.c.b16 %v2202, %v2200
    %v2949 = vpack.c.b16 %v2203, %v2201
    %v2950 = vpack.c.b16 %v2206, %v2204
    %v2951 = vpack.c.b16 %v2207, %v2205
    %v2952 = vpack.c.b16 %v2210, %v2208
    %v2953 = vpack.c.b16 %v2211, %v2209
    %v2954 = vpack.c.b16 %v2214, %v2212
    %v2955 = vpack.c.b16 %v2215, %v2213
    %v2956 = vpack.c.b16 %v2218, %v2216
    %v2957 = vpack.c.b16 %v2219, %v2217
    %v2958 = vpack.c.b16 %v2222, %v2220
    %v2959 = vpack.c.b16 %v2223, %v2221
    %v2960 = vpack.c.b16 %v2226, %v2224
    %v2961 = vpack.c.b16 %v2227, %v2225
    %v2962 = vpack.c.b16 %v2230, %v2228
    %v2963 = vpack.c.b16 %v2231, %v2229
    %v2964 = vpack.c.b16 %v2234, %v2232
    %v2965 = vpack.c.b16 %v2235, %v2233
    %v2966 = vpack.c.b16 %v2238, %v2236
    %v2967 = vpack.c.b16 %v2239, %v2237
    %v2968 = vpack.c.b16 %v2242, %v2240
    %v2969 = vpack.c.b16 %v2243, %v2241
    %v2970 = vpack.c.b16 %v2246, %v2244
    %v2971 = vpack.c.b16 %v2247, %v2245
    %v2972 = vpack.c.b16 %v2250, %v2248
    %v2973 = vpack.c.b16 %v2251, %v2249
    %v2974 = vpack.c.b16 %v2254, %v2252
    %v2975 = vpack.c.b16 %v2255, %v2253
    %v2976 = vpack.c.b16 %v2258, %v2256
    %v2977 = vpack.c.b16 %v2259, %v2257
    %v2978 = vpack.c.b16 %v2262, %v2260
    %v2979 = vpack.c.b16 %v2263, %v2261
    %v2980 = vpack.c.b16 %v2266, %v2264
    %v2981 = vpack.c.b16 %v2267, %v2265
    %v2982 = vpack.c.b16 %v2270, %v2268
    %v2983 = vpack.c.b16 %v2271, %v2269
    %v2984 = vpack.c.b16 %v2274, %v2272
    %v2985 = vpack.c.b16 %v2275, %v2273
    %v2986 = vpack.c.b16 %v2278, %v2276
    %v2987 = vpack.c.b16 %v2279, %v2277
    %v2988 = vpack.c.b16 %v2282, %v2280
    %v2989 = vpack.c.b16 %v2283, %v2281
    %v2990 = vpack.c.b16 %v2286, %v2284
    %v2991 = vpack.c.b16 %v2287, %v2285
    %v2992 = vpack.c.b16 %v2290, %v2288
    %v2993 = vpack.c.b16 %v2291, %v2289
    %v2994 = vpack.c.b16 %v2294, %v2292
    %v2995 = vpack.c.b16 %v2295, %v2293
    %v2996 = vpack.c.b16 %v2298, %v2296
    %v2997 = vpack.c.b16 %v2299, %v2297
    %v2998 = vpack.c.b16 %v2302, %v2300
    %v2999 = vpack.c.b16 %v2303, %v2301
    %v3000 = vpack.c.b16 %v2306, %v2304
    %v3001 = vpack.c.b16 %v2307, %v2305
    %v3002 = vpack.c.b16 %v2310, %v2308
    %v3003 = vpack.c.b16 %v2311, %v2309
    %v3004 = vpack.c.b16 %v2314, %v2312
    %v3005 = vpack.c.b16 %v2315, %v2313
    %v3006 = vpack.c.b16 %v2318, %v2316
    %v3007 = vpack.c.b16 %v2319, %v2317
    %v3008 = vpack.c.b16 %v2322, %v2320
    %v3009 = vpack.c.b16 %v2323, %v2321
    %v3010 = vpack.c.b16 %v2326, %v2324
    %v3011 = vpack.c.b16 %v2327, %v2325
    %v3012 = vpack.c.b16 %v2330, %v2328
    %v3013 = vpack.c.b16 %v2331, %v2329
    %v3014 = vpack.c.b16 %v2334, %v2332
    %v3015 = vpack.c.b16 %v2335, %v2333
    %v3016 = vpack.c.b16 %v2338, %v2336
    %v3017 = vpack.c.b16 %v2339, %v2337
    %v3018 = vpack.c.b16 %v2342, %v2340
    %v3019 = vpack.c.b16 %v2343, %v2341
    %v3020 = vpack.c.b16 %v2346, %v2344
    %v3021 = vpack.c.b16 %v2347, %v2345
    %v3022 = vpack.c.b16 %v2350, %v2348
    %v3023 = vpack.c.b16 %v2351, %v2349
    %v3024 = vpack.c.b16 %v2354, %v2352
    %v3025 = vpack.c.b16 %v2355, %v2353
    %v3026 = vpack.c.b16 %v2358, %v2356
    %v3027 = vpack.c.b16 %v2359, %v2357
    %v3028 = vpack.c.b16 %v2362, %v2360
    %v3029 = vpack.c.b16 %v2363, %v2361
    %v3030 = vpack.c.b16 %v2366, %v2364
    %v3031 = vpack.c.b16 %v2367, %v2365
    %v3032 = vpack.c.b16 %v2370, %v2368
    %v3033 = vpack.c.b16 %v2371, %v2369
    %v3034 = vpack.c.b16 %v2374, %v2372
    %v3035 = vpack.c.b16 %v2375, %v2373
    %v3036 = vpack.c.b16 %v2378, %v2376
    %v3037 = vpack.c.b16 %v2379, %v2377
    %v3038 = vpack.c.b16 %v2382, %v2380
    %v3039 = vpack.c.b16 %v2383, %v2381
    %v3040 = vpack.c.b16 %v2386, %v2384
    %v3041 = vpack.c.b16 %v2387, %v2385
    %v3042 = vpack.c.b16 %v2390, %v2388
    %v3043 = vpack.c.b16 %v2391, %v2389
    %v3044 = vpack.c.b16 %v2394, %v2392
    %v3045 = vpack.c.b16 %v2395, %v2393
    %v3046 = vpack.c.b16 %v2398, %v2396
    %v3047 = vpack.c.b16 %v2399, %v2397
    %v3048 = vpack.c.b16 %v2402, %v2400
    %v3049 = vpack.c.b16 %v2403, %v2401
    %v3050 = vpack.c.b16 %v2406, %v2404
    %v3051 = vpack.c.b16 %v2407, %v2405
    %v3052 = vpack.c.b16 %v2410, %v2408
    %v3053 = vpack.c.b16 %v2411, %v2409
    %v3054 = vpack.c.b16 %v2414, %v2412
    %v3055 = vpack.c.b16 %v2415, %v2413
    %v3056 = vpack.c.b16 %v2418, %v2416
    %v3057 = vpack.c.b16 %v2419, %v2417
    %v3058 = vpack.c.b16 %v2422, %v2420
    %v3059 = vpack.c.b16 %v2423, %v2421
    %v3060 = vpack.c.b16 %v2426, %v2424
    %v3061 = vpack.c.b16 %v2427, %v2425
    %v3062 = vpack.c.b16 %v2430, %v2428
    %v3063 = vpack.c.b16 %v2431, %v2429
    %v3064 = vpack.c.b16 %v2434, %v2432
    %v3065 = vpack.c.b16 %v2435, %v2433
    %v3066 = vpack.c.b16 %v2438, %v2436
    %v3067 = vpack.c.b16 %v2439, %v2437
    %v3068 = vpack.c.b16 %v2442, %v2440
    %v3069 = vpack.c.b16 %v2443, %v2441
    %v3070 = vpack.c.b16 %v2446, %v2444
    %v3071 = vpack.c.b16 %v2447, %v2445
    %v3072 = vpack.c.b16 %v2450, %v2448
    %v3073 = vpack.c.b16 %v2451, %v2449
    %v3074 = vpack.c.b16 %v2454, %v2452
    %v3075 = vpack.c.b16 %v2455, %v2453
    %v3076 = vpack.c.b16 %v2458, %v2456
    %v3077 = vpack.c.b16 %v2459, %v2457
    %v3078 = vpack.c.b16 %v2462, %v2460
    %v3079 = vpack.c.b16 %v2463, %v2461
    %v3080 = vpack.c.b16 %v2466, %v2464
    %v3081 = vpack.c.b16 %v2467, %v2465
    %v3082 = vpack.c.b16 %v2470, %v2468
    %v3083 = vpack.c.b16 %v2471, %v2469
    %v3084 = vpack.c.b16 %v2474, %v2472
    %v3085 = vpack.c.b16 %v2475, %v2473
    %v3086 = vpack.c.b16 %v2478, %v2476
    %v3087 = vpack.c.b16 %v2479, %v2477
    %v3088 = vpack.c.b16 %v2482, %v2480
    %v3089 = vpack.c.b16 %v2483, %v2481
    %v3090 = vpack.c.b16 %v2486, %v2484
    %v3091 = vpack.c.b16 %v2487, %v2485
    %v3092 = vpack.c.b16 %v2490, %v2488
    %v3093 = vpack.c.b16 %v2491, %v2489
    %v3094 = vpack.c.b16 %v2494, %v2492
    %v3095 = vpack.c.b16 %v2495, %v2493
    %v3096 = vpack.c.b16 %v2498, %v2496
    %v3097 = vpack.c.b16 %v2499, %v2497
    %v3098 = vpack.c.b16 %v2502, %v2500
    %v3099 = vpack.c.b16 %v2503, %v2501
    %v3100 = vpack.c.b16 %v2506, %v2504
    %v3101 = vpack.c.b16 %v2507, %v2505
    %v3102 = vpack.c.b16 %v2510, %v2508
    %v3103 = vpack.c.b16 %v2511, %v2509
    %v3104 = vpack.c.b16 %v2514, %v2512
    %v3105 = vpack.c.b16 %v2515, %v2513
    %v3106 = vpack.c.b16 %v2518, %v2516
    %v3107 = vpack.c.b16 %v2519, %v2517
    %v3108 = vpack.c.b16 %v2522, %v2520
    %v3109 = vpack.c.b16 %v2523, %v2521
    %v3110 = vpack.c.b16 %v2526, %v2524
    %v3111 = vpack.c.b16 %v2527, %v2525
    %v3112 = vpack.c.b16 %v2530, %v2528
    %v3113 = vpack.c.b16 %v2531, %v2529
    %v3114 = vpack.c.b16 %v2534, %v2532
    %v3115 = vpack.c.b16 %v2535, %v2533
    %v3116 = vpack.c.b16 %v2538, %v2536
    %v3117 = vpack.c.b16 %v2539, %v2537
    %v3118 = vpack.c.b16 %v2542, %v2540
    %v3119 = vpack.c.b16 %v2543, %v2541
    %3696 = vmatprep.subr.bf16.mxu0 %v2559
    %3697 = vmatpush1.bf16.msra.mxu0 %v2558
    %3698 = vmatprep.subr.bf16.mxu0 %v2557
    %3699 = vmatpush1.bf16.msra.mxu0 %v2556
    %3700 = vmatprep.subr.bf16.mxu0 %v2555
    %3701 = vmatpush1.bf16.msra.mxu0 %v2554
    %3702 = vmatprep.subr.bf16.mxu0 %v2553
    %3703 = vmatpush1.bf16.msra.mxu0 %v2552
    %3704 = vmatprep.subr.bf16.mxu0 %v2551
    %3705 = vmatpush1.bf16.msra.mxu0 %v2550
    %3706 = vmatprep.subr.bf16.mxu0 %v2549
    %3707 = vmatpush1.bf16.msra.mxu0 %v2548
    %3708 = vmatprep.subr.bf16.mxu0 %v2547
    %3709 = vmatpush1.bf16.msra.mxu0 %v2546
    %3710 = vmatprep.subr.bf16.mxu0 %v2545
    %3711 = vmatpush1.bf16.msra.mxu0 %v2544
    %3712 = vmatprep.subr.bf16.mxu0 %v2575
    %3713 = vmatpush2.bf16.msra.mxu0 %v2574
    %3714 = vmatprep.subr.bf16.mxu0 %v2573
    %3715 = vmatpush2.bf16.msra.mxu0 %v2572
    %3716 = vmatprep.subr.bf16.mxu0 %v2571
    %3717 = vmatpush2.bf16.msra.mxu0 %v2570
    %3718 = vmatprep.subr.bf16.mxu0 %v2569
    %3719 = vmatpush2.bf16.msra.mxu0 %v2568
    %3720 = vmatprep.subr.bf16.mxu0 %v2567
    %3721 = vmatpush2.bf16.msra.mxu0 %v2566
    %3722 = vmatprep.subr.bf16.mxu0 %v2565
    %3723 = vmatpush2.bf16.msra.mxu0 %v2564
    %3724 = vmatprep.subr.bf16.mxu0 %v2563
    %3725 = vmatpush2.bf16.msra.mxu0 %v2562
    %3726 = vmatprep.subr.bf16.mxu0 %v2561
    %3727 = vmatpush2.bf16.msra.mxu0 %v2560
    %3728 = vmatprep.mubr.bf16.mxu0 %v193
    %3729 = vmatmul.mubr.bf16.gmra.mxu0 %v192
    %v3730 = vpop.f32.mrf.mxu0
    %v3731 = vadd.f32 %v809, %v3730
    %v3732 = vpop.f32.mrf.mxu0
    %v3733 = vadd.f32 %v813, %v3732
    %v3734 = vpop.f32.mrf.mxu0
    %v3735 = vadd.f32 %v809, %v3734
    %v3736 = vpop.f32.mrf.mxu0
    %v3737 = vadd.f32 %v813, %v3736
    %3738 = vdwg.mxu0
    %3739 = vmatprep.subr.bf16.mxu0 %v2591
    %3740 = vmatpush1.bf16.msra.mxu0 %v2590
    %3741 = vmatprep.subr.bf16.mxu0 %v2589
    %3742 = vmatpush1.bf16.msra.mxu0 %v2588
    %3743 = vmatprep.subr.bf16.mxu0 %v2587
    %3744 = vmatpush1.bf16.msra.mxu0 %v2586
    %3745 = vmatprep.subr.bf16.mxu0 %v2585
    %3746 = vmatpush1.bf16.msra.mxu0 %v2584
    %3747 = vmatprep.subr.bf16.mxu0 %v2583
    %3748 = vmatpush1.bf16.msra.mxu0 %v2582
    %3749 = vmatprep.subr.bf16.mxu0 %v2581
    %3750 = vmatpush1.bf16.msra.mxu0 %v2580
    %3751 = vmatprep.subr.bf16.mxu0 %v2579
    %3752 = vmatpush1.bf16.msra.mxu0 %v2578
    %3753 = vmatprep.subr.bf16.mxu0 %v2577
    %3754 = vmatpush1.bf16.msra.mxu0 %v2576
    %3755 = vmatprep.subr.bf16.mxu0 %v2607
    %3756 = vmatpush2.bf16.msra.mxu0 %v2606
    %3757 = vmatprep.subr.bf16.mxu0 %v2605
    %3758 = vmatpush2.bf16.msra.mxu0 %v2604
    %3759 = vmatprep.subr.bf16.mxu0 %v2603
    %3760 = vmatpush2.bf16.msra.mxu0 %v2602
    %3761 = vmatprep.subr.bf16.mxu0 %v2601
    %3762 = vmatpush2.bf16.msra.mxu0 %v2600
    %3763 = vmatprep.subr.bf16.mxu0 %v2599
    %3764 = vmatpush2.bf16.msra.mxu0 %v2598
    %3765 = vmatprep.subr.bf16.mxu0 %v2597
    %3766 = vmatpush2.bf16.msra.mxu0 %v2596
    %3767 = vmatprep.subr.bf16.mxu0 %v2595
    %3768 = vmatpush2.bf16.msra.mxu0 %v2594
    %3769 = vmatprep.subr.bf16.mxu0 %v2593
    %3770 = vmatpush2.bf16.msra.mxu0 %v2592
    %3771 = vmatprep.mubr.bf16.mxu0 %v195
    %3772 = vmatmul.mubr.bf16.gmra.mxu0 %v194
    %v3773 = vpop.f32.mrf.mxu0
    %v3774 = vadd.f32 %v3731, %v3773
    %v3775 = vpop.f32.mrf.mxu0
    %v3776 = vadd.f32 %v3733, %v3775
    %v3777 = vpop.f32.mrf.mxu0
    %v3778 = vadd.f32 %v3735, %v3777
    %v3779 = vpop.f32.mrf.mxu0
    %v3780 = vadd.f32 %v3737, %v3779
    %3781 = vdwg.mxu0
    %3782 = vmatprep.subr.bf16.mxu0 %v2623
    %3783 = vmatpush1.bf16.msra.mxu0 %v2622
    %3784 = vmatprep.subr.bf16.mxu0 %v2621
    %3785 = vmatpush1.bf16.msra.mxu0 %v2620
    %3786 = vmatprep.subr.bf16.mxu0 %v2619
    %3787 = vmatpush1.bf16.msra.mxu0 %v2618
    %3788 = vmatprep.subr.bf16.mxu0 %v2617
    %3789 = vmatpush1.bf16.msra.mxu0 %v2616
    %3790 = vmatprep.subr.bf16.mxu0 %v2615
    %3791 = vmatpush1.bf16.msra.mxu0 %v2614
    %3792 = vmatprep.subr.bf16.mxu0 %v2613
    %3793 = vmatpush1.bf16.msra.mxu0 %v2612
    %3794 = vmatprep.subr.bf16.mxu0 %v2611
    %3795 = vmatpush1.bf16.msra.mxu0 %v2610
    %3796 = vmatprep.subr.bf16.mxu0 %v2609
    %3797 = vmatpush1.bf16.msra.mxu0 %v2608
    %3798 = vmatprep.subr.bf16.mxu0 %v2639
    %3799 = vmatpush2.bf16.msra.mxu0 %v2638
    %3800 = vmatprep.subr.bf16.mxu0 %v2637
    %3801 = vmatpush2.bf16.msra.mxu0 %v2636
    %3802 = vmatprep.subr.bf16.mxu0 %v2635
    %3803 = vmatpush2.bf16.msra.mxu0 %v2634
    %3804 = vmatprep.subr.bf16.mxu0 %v2633
    %3805 = vmatpush2.bf16.msra.mxu0 %v2632
    %3806 = vmatprep.subr.bf16.mxu0 %v2631
    %3807 = vmatpush2.bf16.msra.mxu0 %v2630
    %3808 = vmatprep.subr.bf16.mxu0 %v2629
    %3809 = vmatpush2.bf16.msra.mxu0 %v2628
    %3810 = vmatprep.subr.bf16.mxu0 %v2627
    %3811 = vmatpush2.bf16.msra.mxu0 %v2626
    %3812 = vmatprep.subr.bf16.mxu0 %v2625
    %3813 = vmatpush2.bf16.msra.mxu0 %v2624
    %3814 = vmatprep.mubr.bf16.mxu0 %v197
    %3815 = vmatmul.mubr.bf16.gmra.mxu0 %v196
    %v3816 = vpop.f32.mrf.mxu0
    %v3817 = vadd.f32 %v3774, %v3816
    %v3818 = vpop.f32.mrf.mxu0
    %v3819 = vadd.f32 %v3776, %v3818
    %v3820 = vpop.f32.mrf.mxu0
    %v3821 = vadd.f32 %v3778, %v3820
    %v3822 = vpop.f32.mrf.mxu0
    %v3823 = vadd.f32 %v3780, %v3822
    %3824 = vdwg.mxu0
    %3825 = vmatprep.subr.bf16.mxu0 %v2655
    %3826 = vmatpush1.bf16.msra.mxu0 %v2654
    %3827 = vmatprep.subr.bf16.mxu0 %v2653
    %3828 = vmatpush1.bf16.msra.mxu0 %v2652
    %3829 = vmatprep.subr.bf16.mxu0 %v2651
    %3830 = vmatpush1.bf16.msra.mxu0 %v2650
    %3831 = vmatprep.subr.bf16.mxu0 %v2649
    %3832 = vmatpush1.bf16.msra.mxu0 %v2648
    %3833 = vmatprep.subr.bf16.mxu0 %v2647
    %3834 = vmatpush1.bf16.msra.mxu0 %v2646
    %3835 = vmatprep.subr.bf16.mxu0 %v2645
    %3836 = vmatpush1.bf16.msra.mxu0 %v2644
    %3837 = vmatprep.subr.bf16.mxu0 %v2643
    %3838 = vmatpush1.bf16.msra.mxu0 %v2642
    %3839 = vmatprep.subr.bf16.mxu0 %v2641
    %3840 = vmatpush1.bf16.msra.mxu0 %v2640
    %3841 = vmatprep.subr.bf16.mxu0 %v2671
    %3842 = vmatpush2.bf16.msra.mxu0 %v2670
    %3843 = vmatprep.subr.bf16.mxu0 %v2669
    %3844 = vmatpush2.bf16.msra.mxu0 %v2668
    %3845 = vmatprep.subr.bf16.mxu0 %v2667
    %3846 = vmatpush2.bf16.msra.mxu0 %v2666
    %3847 = vmatprep.subr.bf16.mxu0 %v2665
    %3848 = vmatpush2.bf16.msra.mxu0 %v2664
    %3849 = vmatprep.subr.bf16.mxu0 %v2663
    %3850 = vmatpush2.bf16.msra.mxu0 %v2662
    %3851 = vmatprep.subr.bf16.mxu0 %v2661
    %3852 = vmatpush2.bf16.msra.mxu0 %v2660
    %3853 = vmatprep.subr.bf16.mxu0 %v2659
    %3854 = vmatpush2.bf16.msra.mxu0 %v2658
    %3855 = vmatprep.subr.bf16.mxu0 %v2657
    %3856 = vmatpush2.bf16.msra.mxu0 %v2656
    %3857 = vmatprep.mubr.bf16.mxu0 %v199
    %3858 = vmatmul.mubr.bf16.gmra.mxu0 %v198
    %v3859 = vpop.f32.mrf.mxu0
    %v3860 = vadd.f32 %v3817, %v3859
    %v3861 = vpop.f32.mrf.mxu0
    %v3862 = vadd.f32 %v3819, %v3861
    %v3863 = vpop.f32.mrf.mxu0
    %v3864 = vadd.f32 %v3821, %v3863
    %v3865 = vpop.f32.mrf.mxu0
    %v3866 = vadd.f32 %v3823, %v3865
    %3867 = vdwg.mxu0
    %3868 = vmatprep.subr.bf16.mxu0 %v2687
    %3869 = vmatpush1.bf16.msra.mxu0 %v2686
    %3870 = vmatprep.subr.bf16.mxu0 %v2685
    %3871 = vmatpush1.bf16.msra.mxu0 %v2684
    %3872 = vmatprep.subr.bf16.mxu0 %v2683
    %3873 = vmatpush1.bf16.msra.mxu0 %v2682
    %3874 = vmatprep.subr.bf16.mxu0 %v2681
    %3875 = vmatpush1.bf16.msra.mxu0 %v2680
    %3876 = vmatprep.subr.bf16.mxu0 %v2679
    %3877 = vmatpush1.bf16.msra.mxu0 %v2678
    %3878 = vmatprep.subr.bf16.mxu0 %v2677
    %3879 = vmatpush1.bf16.msra.mxu0 %v2676
    %3880 = vmatprep.subr.bf16.mxu0 %v2675
    %3881 = vmatpush1.bf16.msra.mxu0 %v2674
    %3882 = vmatprep.subr.bf16.mxu0 %v2673
    %3883 = vmatpush1.bf16.msra.mxu0 %v2672
    %3884 = vmatprep.subr.bf16.mxu0 %v2703
    %3885 = vmatpush2.bf16.msra.mxu0 %v2702
    %3886 = vmatprep.subr.bf16.mxu0 %v2701
    %3887 = vmatpush2.bf16.msra.mxu0 %v2700
    %3888 = vmatprep.subr.bf16.mxu0 %v2699
    %3889 = vmatpush2.bf16.msra.mxu0 %v2698
    %3890 = vmatprep.subr.bf16.mxu0 %v2697
    %3891 = vmatpush2.bf16.msra.mxu0 %v2696
    %3892 = vmatprep.subr.bf16.mxu0 %v2695
    %3893 = vmatpush2.bf16.msra.mxu0 %v2694
    %3894 = vmatprep.subr.bf16.mxu0 %v2693
    %3895 = vmatpush2.bf16.msra.mxu0 %v2692
    %3896 = vmatprep.subr.bf16.mxu0 %v2691
    %3897 = vmatpush2.bf16.msra.mxu0 %v2690
    %3898 = vmatprep.subr.bf16.mxu0 %v2689
    %3899 = vmatpush2.bf16.msra.mxu0 %v2688
    %3900 = vmatprep.mubr.bf16.mxu0 %v201
    %3901 = vmatmul.mubr.bf16.gmra.mxu0 %v200
    %v3902 = vpop.f32.mrf.mxu0
    %v3903 = vadd.f32 %v3860, %v3902
    %v3904 = vpop.f32.mrf.mxu0
    %v3905 = vadd.f32 %v3862, %v3904
    %v3906 = vpop.f32.mrf.mxu0
    %v3907 = vadd.f32 %v3864, %v3906
    %v3908 = vpop.f32.mrf.mxu0
    %v3909 = vadd.f32 %v3866, %v3908
    %3910 = vdwg.mxu0
    %3911 = vmatprep.subr.bf16.mxu0 %v2719
    %3912 = vmatpush1.bf16.msra.mxu0 %v2718
    %3913 = vmatprep.subr.bf16.mxu0 %v2717
    %3914 = vmatpush1.bf16.msra.mxu0 %v2716
    %3915 = vmatprep.subr.bf16.mxu0 %v2715
    %3916 = vmatpush1.bf16.msra.mxu0 %v2714
    %3917 = vmatprep.subr.bf16.mxu0 %v2713
    %3918 = vmatpush1.bf16.msra.mxu0 %v2712
    %3919 = vmatprep.subr.bf16.mxu0 %v2711
    %3920 = vmatpush1.bf16.msra.mxu0 %v2710
    %3921 = vmatprep.subr.bf16.mxu0 %v2709
    %3922 = vmatpush1.bf16.msra.mxu0 %v2708
    %3923 = vmatprep.subr.bf16.mxu0 %v2707
    %3924 = vmatpush1.bf16.msra.mxu0 %v2706
    %3925 = vmatprep.subr.bf16.mxu0 %v2705
    %3926 = vmatpush1.bf16.msra.mxu0 %v2704
    %3927 = vmatprep.subr.bf16.mxu0 %v2735
    %3928 = vmatpush2.bf16.msra.mxu0 %v2734
    %3929 = vmatprep.subr.bf16.mxu0 %v2733
    %3930 = vmatpush2.bf16.msra.mxu0 %v2732
    %3931 = vmatprep.subr.bf16.mxu0 %v2731
    %3932 = vmatpush2.bf16.msra.mxu0 %v2730
    %3933 = vmatprep.subr.bf16.mxu0 %v2729
    %3934 = vmatpush2.bf16.msra.mxu0 %v2728
    %3935 = vmatprep.subr.bf16.mxu0 %v2727
    %3936 = vmatpush2.bf16.msra.mxu0 %v2726
    %3937 = vmatprep.subr.bf16.mxu0 %v2725
    %3938 = vmatpush2.bf16.msra.mxu0 %v2724
    %3939 = vmatprep.subr.bf16.mxu0 %v2723
    %3940 = vmatpush2.bf16.msra.mxu0 %v2722
    %3941 = vmatprep.subr.bf16.mxu0 %v2721
    %3942 = vmatpush2.bf16.msra.mxu0 %v2720
    %3943 = vmatprep.mubr.bf16.mxu0 %v203
    %3944 = vmatmul.mubr.bf16.gmra.mxu0 %v202
    %v3945 = vpop.f32.mrf.mxu0
    %v3946 = vadd.f32 %v3903, %v3945
    %v3947 = vpop.f32.mrf.mxu0
    %v3948 = vadd.f32 %v3905, %v3947
    %v3949 = vpop.f32.mrf.mxu0
    %v3950 = vadd.f32 %v3907, %v3949
    %v3951 = vpop.f32.mrf.mxu0
    %v3952 = vadd.f32 %v3909, %v3951
    %3953 = vdwg.mxu0
    %3954 = vmatprep.subr.bf16.mxu0 %v2751
    %3955 = vmatpush1.bf16.msra.mxu0 %v2750
    %3956 = vmatprep.subr.bf16.mxu0 %v2749
    %3957 = vmatpush1.bf16.msra.mxu0 %v2748
    %3958 = vmatprep.subr.bf16.mxu0 %v2747
    %3959 = vmatpush1.bf16.msra.mxu0 %v2746
    %3960 = vmatprep.subr.bf16.mxu0 %v2745
    %3961 = vmatpush1.bf16.msra.mxu0 %v2744
    %3962 = vmatprep.subr.bf16.mxu0 %v2743
    %3963 = vmatpush1.bf16.msra.mxu0 %v2742
    %3964 = vmatprep.subr.bf16.mxu0 %v2741
    %3965 = vmatpush1.bf16.msra.mxu0 %v2740
    %3966 = vmatprep.subr.bf16.mxu0 %v2739
    %3967 = vmatpush1.bf16.msra.mxu0 %v2738
    %3968 = vmatprep.subr.bf16.mxu0 %v2737
    %3969 = vmatpush1.bf16.msra.mxu0 %v2736
    %3970 = vmatprep.subr.bf16.mxu0 %v2767
    %3971 = vmatpush2.bf16.msra.mxu0 %v2766
    %3972 = vmatprep.subr.bf16.mxu0 %v2765
    %3973 = vmatpush2.bf16.msra.mxu0 %v2764
    %3974 = vmatprep.subr.bf16.mxu0 %v2763
    %3975 = vmatpush2.bf16.msra.mxu0 %v2762
    %3976 = vmatprep.subr.bf16.mxu0 %v2761
    %3977 = vmatpush2.bf16.msra.mxu0 %v2760
    %3978 = vmatprep.subr.bf16.mxu0 %v2759
    %3979 = vmatpush2.bf16.msra.mxu0 %v2758
    %3980 = vmatprep.subr.bf16.mxu0 %v2757
    %3981 = vmatpush2.bf16.msra.mxu0 %v2756
    %3982 = vmatprep.subr.bf16.mxu0 %v2755
    %3983 = vmatpush2.bf16.msra.mxu0 %v2754
    %3984 = vmatprep.subr.bf16.mxu0 %v2753
    %3985 = vmatpush2.bf16.msra.mxu0 %v2752
    %3986 = vmatprep.mubr.bf16.mxu0 %v205
    %3987 = vmatmul.mubr.bf16.gmra.mxu0 %v204
    %v3988 = vpop.f32.mrf.mxu0
    %v3989 = vadd.f32 %v3946, %v3988
    %v3990 = vpop.f32.mrf.mxu0
    %v3991 = vadd.f32 %v3948, %v3990
    %v3992 = vpop.f32.mrf.mxu0
    %v3993 = vadd.f32 %v3950, %v3992
    %v3994 = vpop.f32.mrf.mxu0
    %v3995 = vadd.f32 %v3952, %v3994
    %3996 = vdwg.mxu0
    %3997 = vmatprep.subr.bf16.mxu0 %v2783
    %3998 = vmatpush1.bf16.msra.mxu0 %v2782
    %3999 = vmatprep.subr.bf16.mxu0 %v2781
    %4000 = vmatpush1.bf16.msra.mxu0 %v2780
    %4001 = vmatprep.subr.bf16.mxu0 %v2779
    %4002 = vmatpush1.bf16.msra.mxu0 %v2778
    %4003 = vmatprep.subr.bf16.mxu0 %v2777
    %4004 = vmatpush1.bf16.msra.mxu0 %v2776
    %4005 = vmatprep.subr.bf16.mxu0 %v2775
    %4006 = vmatpush1.bf16.msra.mxu0 %v2774
    %4007 = vmatprep.subr.bf16.mxu0 %v2773
    %4008 = vmatpush1.bf16.msra.mxu0 %v2772
    %4009 = vmatprep.subr.bf16.mxu0 %v2771
    %4010 = vmatpush1.bf16.msra.mxu0 %v2770
    %4011 = vmatprep.subr.bf16.mxu0 %v2769
    %4012 = vmatpush1.bf16.msra.mxu0 %v2768
    %4013 = vmatprep.subr.bf16.mxu0 %v2799
    %4014 = vmatpush2.bf16.msra.mxu0 %v2798
    %4015 = vmatprep.subr.bf16.mxu0 %v2797
    %4016 = vmatpush2.bf16.msra.mxu0 %v2796
    %4017 = vmatprep.subr.bf16.mxu0 %v2795
    %4018 = vmatpush2.bf16.msra.mxu0 %v2794
    %4019 = vmatprep.subr.bf16.mxu0 %v2793
    %4020 = vmatpush2.bf16.msra.mxu0 %v2792
    %4021 = vmatprep.subr.bf16.mxu0 %v2791
    %4022 = vmatpush2.bf16.msra.mxu0 %v2790
    %4023 = vmatprep.subr.bf16.mxu0 %v2789
    %4024 = vmatpush2.bf16.msra.mxu0 %v2788
    %4025 = vmatprep.subr.bf16.mxu0 %v2787
    %4026 = vmatpush2.bf16.msra.mxu0 %v2786
    %4027 = vmatprep.subr.bf16.mxu0 %v2785
    %4028 = vmatpush2.bf16.msra.mxu0 %v2784
    %4029 = vmatprep.mubr.bf16.mxu0 %v207
    %4030 = vmatmul.mubr.bf16.gmra.mxu0 %v206
    %v4031 = vpop.f32.mrf.mxu0
    %v4032 = vadd.f32 %v3989, %v4031
    %v4033 = vpop.f32.mrf.mxu0
    %v4034 = vadd.f32 %v3991, %v4033
    %v4035 = vpop.f32.mrf.mxu0
    %v4036 = vadd.f32 %v3993, %v4035
    %v4037 = vpop.f32.mrf.mxu0
    %v4038 = vadd.f32 %v3995, %v4037
    %4039 = vdwg.mxu0
    %4040 = vmatprep.subr.bf16.mxu0 %v2815
    %4041 = vmatpush1.bf16.msra.mxu0 %v2814
    %4042 = vmatprep.subr.bf16.mxu0 %v2813
    %4043 = vmatpush1.bf16.msra.mxu0 %v2812
    %4044 = vmatprep.subr.bf16.mxu0 %v2811
    %4045 = vmatpush1.bf16.msra.mxu0 %v2810
    %4046 = vmatprep.subr.bf16.mxu0 %v2809
    %4047 = vmatpush1.bf16.msra.mxu0 %v2808
    %4048 = vmatprep.subr.bf16.mxu0 %v2807
    %4049 = vmatpush1.bf16.msra.mxu0 %v2806
    %4050 = vmatprep.subr.bf16.mxu0 %v2805
    %4051 = vmatpush1.bf16.msra.mxu0 %v2804
    %4052 = vmatprep.subr.bf16.mxu0 %v2803
    %4053 = vmatpush1.bf16.msra.mxu0 %v2802
    %4054 = vmatprep.subr.bf16.mxu0 %v2801
    %4055 = vmatpush1.bf16.msra.mxu0 %v2800
    %4056 = vmatprep.subr.bf16.mxu0 %v2831
    %4057 = vmatpush2.bf16.msra.mxu0 %v2830
    %4058 = vmatprep.subr.bf16.mxu0 %v2829
    %4059 = vmatpush2.bf16.msra.mxu0 %v2828
    %4060 = vmatprep.subr.bf16.mxu0 %v2827
    %4061 = vmatpush2.bf16.msra.mxu0 %v2826
    %4062 = vmatprep.subr.bf16.mxu0 %v2825
    %4063 = vmatpush2.bf16.msra.mxu0 %v2824
    %4064 = vmatprep.subr.bf16.mxu0 %v2823
    %4065 = vmatpush2.bf16.msra.mxu0 %v2822
    %4066 = vmatprep.subr.bf16.mxu0 %v2821
    %4067 = vmatpush2.bf16.msra.mxu0 %v2820
    %4068 = vmatprep.subr.bf16.mxu0 %v2819
    %4069 = vmatpush2.bf16.msra.mxu0 %v2818
    %4070 = vmatprep.subr.bf16.mxu0 %v2817
    %4071 = vmatpush2.bf16.msra.mxu0 %v2816
    %4072 = vmatprep.mubr.bf16.mxu0 %v209
    %4073 = vmatmul.mubr.bf16.gmra.mxu0 %v208
    %v4074 = vpop.f32.mrf.mxu0
    %v4075 = vadd.f32 %v4032, %v4074
    %v4076 = vpop.f32.mrf.mxu0
    %v4077 = vadd.f32 %v4034, %v4076
    %v4078 = vpop.f32.mrf.mxu0
    %v4079 = vadd.f32 %v4036, %v4078
    %v4080 = vpop.f32.mrf.mxu0
    %v4081 = vadd.f32 %v4038, %v4080
    %4082 = vdwg.mxu0
    %4083 = vmatprep.subr.bf16.mxu0 %v2847
    %4084 = vmatpush1.bf16.msra.mxu0 %v2846
    %4085 = vmatprep.subr.bf16.mxu0 %v2845
    %4086 = vmatpush1.bf16.msra.mxu0 %v2844
    %4087 = vmatprep.subr.bf16.mxu0 %v2843
    %4088 = vmatpush1.bf16.msra.mxu0 %v2842
    %4089 = vmatprep.subr.bf16.mxu0 %v2841
    %4090 = vmatpush1.bf16.msra.mxu0 %v2840
    %4091 = vmatprep.subr.bf16.mxu0 %v2839
    %4092 = vmatpush1.bf16.msra.mxu0 %v2838
    %4093 = vmatprep.subr.bf16.mxu0 %v2837
    %4094 = vmatpush1.bf16.msra.mxu0 %v2836
    %4095 = vmatprep.subr.bf16.mxu0 %v2835
    %4096 = vmatpush1.bf16.msra.mxu0 %v2834
    %4097 = vmatprep.subr.bf16.mxu0 %v2833
    %4098 = vmatpush1.bf16.msra.mxu0 %v2832
    %4099 = vmatprep.subr.bf16.mxu0 %v2863
    %4100 = vmatpush2.bf16.msra.mxu0 %v2862
    %4101 = vmatprep.subr.bf16.mxu0 %v2861
    %4102 = vmatpush2.bf16.msra.mxu0 %v2860
    %4103 = vmatprep.subr.bf16.mxu0 %v2859
    %4104 = vmatpush2.bf16.msra.mxu0 %v2858
    %4105 = vmatprep.subr.bf16.mxu0 %v2857
    %4106 = vmatpush2.bf16.msra.mxu0 %v2856
    %4107 = vmatprep.subr.bf16.mxu0 %v2855
    %4108 = vmatpush2.bf16.msra.mxu0 %v2854
    %4109 = vmatprep.subr.bf16.mxu0 %v2853
    %4110 = vmatpush2.bf16.msra.mxu0 %v2852
    %4111 = vmatprep.subr.bf16.mxu0 %v2851
    %4112 = vmatpush2.bf16.msra.mxu0 %v2850
    %4113 = vmatprep.subr.bf16.mxu0 %v2849
    %4114 = vmatpush2.bf16.msra.mxu0 %v2848
    %4115 = vmatprep.mubr.bf16.mxu0 %v211
    %4116 = vmatmul.mubr.bf16.gmra.mxu0 %v210
    %v4117 = vpop.f32.mrf.mxu0
    %v4118 = vadd.f32 %v4075, %v4117
    %v4119 = vpop.f32.mrf.mxu0
    %v4120 = vadd.f32 %v4077, %v4119
    %v4121 = vpop.f32.mrf.mxu0
    %v4122 = vadd.f32 %v4079, %v4121
    %v4123 = vpop.f32.mrf.mxu0
    %v4124 = vadd.f32 %v4081, %v4123
    %4125 = vdwg.mxu0
    %4126 = vmatprep.subr.bf16.mxu0 %v2879
    %4127 = vmatpush1.bf16.msra.mxu0 %v2878
    %4128 = vmatprep.subr.bf16.mxu0 %v2877
    %4129 = vmatpush1.bf16.msra.mxu0 %v2876
    %4130 = vmatprep.subr.bf16.mxu0 %v2875
    %4131 = vmatpush1.bf16.msra.mxu0 %v2874
    %4132 = vmatprep.subr.bf16.mxu0 %v2873
    %4133 = vmatpush1.bf16.msra.mxu0 %v2872
    %4134 = vmatprep.subr.bf16.mxu0 %v2871
    %4135 = vmatpush1.bf16.msra.mxu0 %v2870
    %4136 = vmatprep.subr.bf16.mxu0 %v2869
    %4137 = vmatpush1.bf16.msra.mxu0 %v2868
    %4138 = vmatprep.subr.bf16.mxu0 %v2867
    %4139 = vmatpush1.bf16.msra.mxu0 %v2866
    %4140 = vmatprep.subr.bf16.mxu0 %v2865
    %4141 = vmatpush1.bf16.msra.mxu0 %v2864
    %4142 = vmatprep.subr.bf16.mxu0 %v2895
    %4143 = vmatpush2.bf16.msra.mxu0 %v2894
    %4144 = vmatprep.subr.bf16.mxu0 %v2893
    %4145 = vmatpush2.bf16.msra.mxu0 %v2892
    %4146 = vmatprep.subr.bf16.mxu0 %v2891
    %4147 = vmatpush2.bf16.msra.mxu0 %v2890
    %4148 = vmatprep.subr.bf16.mxu0 %v2889
    %4149 = vmatpush2.bf16.msra.mxu0 %v2888
    %4150 = vmatprep.subr.bf16.mxu0 %v2887
    %4151 = vmatpush2.bf16.msra.mxu0 %v2886
    %4152 = vmatprep.subr.bf16.mxu0 %v2885
    %4153 = vmatpush2.bf16.msra.mxu0 %v2884
    %4154 = vmatprep.subr.bf16.mxu0 %v2883
    %4155 = vmatpush2.bf16.msra.mxu0 %v2882
    %4156 = vmatprep.subr.bf16.mxu0 %v2881
    %4157 = vmatpush2.bf16.msra.mxu0 %v2880
    %4158 = vmatprep.mubr.bf16.mxu0 %v213
    %4159 = vmatmul.mubr.bf16.gmra.mxu0 %v212
    %v4160 = vpop.f32.mrf.mxu0
    %v4161 = vadd.f32 %v4118, %v4160
    %v4162 = vpop.f32.mrf.mxu0
    %v4163 = vadd.f32 %v4120, %v4162
    %v4164 = vpop.f32.mrf.mxu0
    %v4165 = vadd.f32 %v4122, %v4164
    %v4166 = vpop.f32.mrf.mxu0
    %v4167 = vadd.f32 %v4124, %v4166
    %4168 = vdwg.mxu0
    %4169 = vmatprep.subr.bf16.mxu0 %v2911
    %4170 = vmatpush1.bf16.msra.mxu0 %v2910
    %4171 = vmatprep.subr.bf16.mxu0 %v2909
    %4172 = vmatpush1.bf16.msra.mxu0 %v2908
    %4173 = vmatprep.subr.bf16.mxu0 %v2907
    %4174 = vmatpush1.bf16.msra.mxu0 %v2906
    %4175 = vmatprep.subr.bf16.mxu0 %v2905
    %4176 = vmatpush1.bf16.msra.mxu0 %v2904
    %4177 = vmatprep.subr.bf16.mxu0 %v2903
    %4178 = vmatpush1.bf16.msra.mxu0 %v2902
    %4179 = vmatprep.subr.bf16.mxu0 %v2901
    %4180 = vmatpush1.bf16.msra.mxu0 %v2900
    %4181 = vmatprep.subr.bf16.mxu0 %v2899
    %4182 = vmatpush1.bf16.msra.mxu0 %v2898
    %4183 = vmatprep.subr.bf16.mxu0 %v2897
    %4184 = vmatpush1.bf16.msra.mxu0 %v2896
    %4185 = vmatprep.subr.bf16.mxu0 %v2927
    %4186 = vmatpush2.bf16.msra.mxu0 %v2926
    %4187 = vmatprep.subr.bf16.mxu0 %v2925
    %4188 = vmatpush2.bf16.msra.mxu0 %v2924
    %4189 = vmatprep.subr.bf16.mxu0 %v2923
    %4190 = vmatpush2.bf16.msra.mxu0 %v2922
    %4191 = vmatprep.subr.bf16.mxu0 %v2921
    %4192 = vmatpush2.bf16.msra.mxu0 %v2920
    %4193 = vmatprep.subr.bf16.mxu0 %v2919
    %4194 = vmatpush2.bf16.msra.mxu0 %v2918
    %4195 = vmatprep.subr.bf16.mxu0 %v2917
    %4196 = vmatpush2.bf16.msra.mxu0 %v2916
    %4197 = vmatprep.subr.bf16.mxu0 %v2915
    %4198 = vmatpush2.bf16.msra.mxu0 %v2914
    %4199 = vmatprep.subr.bf16.mxu0 %v2913
    %4200 = vmatpush2.bf16.msra.mxu0 %v2912
    %4201 = vmatprep.mubr.bf16.mxu0 %v215
    %4202 = vmatmul.mubr.bf16.gmra.mxu0 %v214
    %v4203 = vpop.f32.mrf.mxu0
    %v4204 = vadd.f32 %v4161, %v4203
    %v4205 = vpop.f32.mrf.mxu0
    %v4206 = vadd.f32 %v4163, %v4205
    %v4207 = vpop.f32.mrf.mxu0
    %v4208 = vadd.f32 %v4165, %v4207
    %v4209 = vpop.f32.mrf.mxu0
    %v4210 = vadd.f32 %v4167, %v4209
    %4211 = vdwg.mxu0
    %4212 = vmatprep.subr.bf16.mxu0 %v2943
    %4213 = vmatpush1.bf16.msra.mxu0 %v2942
    %4214 = vmatprep.subr.bf16.mxu0 %v2941
    %4215 = vmatpush1.bf16.msra.mxu0 %v2940
    %4216 = vmatprep.subr.bf16.mxu0 %v2939
    %4217 = vmatpush1.bf16.msra.mxu0 %v2938
    %4218 = vmatprep.subr.bf16.mxu0 %v2937
    %4219 = vmatpush1.bf16.msra.mxu0 %v2936
    %4220 = vmatprep.subr.bf16.mxu0 %v2935
    %4221 = vmatpush1.bf16.msra.mxu0 %v2934
    %4222 = vmatprep.subr.bf16.mxu0 %v2933
    %4223 = vmatpush1.bf16.msra.mxu0 %v2932
    %4224 = vmatprep.subr.bf16.mxu0 %v2931
    %4225 = vmatpush1.bf16.msra.mxu0 %v2930
    %4226 = vmatprep.subr.bf16.mxu0 %v2929
    %4227 = vmatpush1.bf16.msra.mxu0 %v2928
    %4228 = vmatprep.subr.bf16.mxu0 %v2959
    %4229 = vmatpush2.bf16.msra.mxu0 %v2958
    %4230 = vmatprep.subr.bf16.mxu0 %v2957
    %4231 = vmatpush2.bf16.msra.mxu0 %v2956
    %4232 = vmatprep.subr.bf16.mxu0 %v2955
    %4233 = vmatpush2.bf16.msra.mxu0 %v2954
    %4234 = vmatprep.subr.bf16.mxu0 %v2953
    %4235 = vmatpush2.bf16.msra.mxu0 %v2952
    %4236 = vmatprep.subr.bf16.mxu0 %v2951
    %4237 = vmatpush2.bf16.msra.mxu0 %v2950
    %4238 = vmatprep.subr.bf16.mxu0 %v2949
    %4239 = vmatpush2.bf16.msra.mxu0 %v2948
    %4240 = vmatprep.subr.bf16.mxu0 %v2947
    %4241 = vmatpush2.bf16.msra.mxu0 %v2946
    %4242 = vmatprep.subr.bf16.mxu0 %v2945
    %4243 = vmatpush2.bf16.msra.mxu0 %v2944
    %4244 = vmatprep.mubr.bf16.mxu0 %v217
    %4245 = vmatmul.mubr.bf16.gmra.mxu0 %v216
    %v4246 = vpop.f32.mrf.mxu0
    %v4247 = vadd.f32 %v4204, %v4246
    %v4248 = vpop.f32.mrf.mxu0
    %v4249 = vadd.f32 %v4206, %v4248
    %v4250 = vpop.f32.mrf.mxu0
    %v4251 = vadd.f32 %v4208, %v4250
    %v4252 = vpop.f32.mrf.mxu0
    %v4253 = vadd.f32 %v4210, %v4252
    %4254 = vdwg.mxu0
    %4255 = vmatprep.subr.bf16.mxu0 %v2975
    %4256 = vmatpush1.bf16.msra.mxu0 %v2974
    %4257 = vmatprep.subr.bf16.mxu0 %v2973
    %4258 = vmatpush1.bf16.msra.mxu0 %v2972
    %4259 = vmatprep.subr.bf16.mxu0 %v2971
    %4260 = vmatpush1.bf16.msra.mxu0 %v2970
    %4261 = vmatprep.subr.bf16.mxu0 %v2969
    %4262 = vmatpush1.bf16.msra.mxu0 %v2968
    %4263 = vmatprep.subr.bf16.mxu0 %v2967
    %4264 = vmatpush1.bf16.msra.mxu0 %v2966
    %4265 = vmatprep.subr.bf16.mxu0 %v2965
    %4266 = vmatpush1.bf16.msra.mxu0 %v2964
    %4267 = vmatprep.subr.bf16.mxu0 %v2963
    %4268 = vmatpush1.bf16.msra.mxu0 %v2962
    %4269 = vmatprep.subr.bf16.mxu0 %v2961
    %4270 = vmatpush1.bf16.msra.mxu0 %v2960
    %4271 = vmatprep.subr.bf16.mxu0 %v2991
    %4272 = vmatpush2.bf16.msra.mxu0 %v2990
    %4273 = vmatprep.subr.bf16.mxu0 %v2989
    %4274 = vmatpush2.bf16.msra.mxu0 %v2988
    %4275 = vmatprep.subr.bf16.mxu0 %v2987
    %4276 = vmatpush2.bf16.msra.mxu0 %v2986
    %4277 = vmatprep.subr.bf16.mxu0 %v2985
    %4278 = vmatpush2.bf16.msra.mxu0 %v2984
    %4279 = vmatprep.subr.bf16.mxu0 %v2983
    %4280 = vmatpush2.bf16.msra.mxu0 %v2982
    %4281 = vmatprep.subr.bf16.mxu0 %v2981
    %4282 = vmatpush2.bf16.msra.mxu0 %v2980
    %4283 = vmatprep.subr.bf16.mxu0 %v2979
    %4284 = vmatpush2.bf16.msra.mxu0 %v2978
    %4285 = vmatprep.subr.bf16.mxu0 %v2977
    %4286 = vmatpush2.bf16.msra.mxu0 %v2976
    %4287 = vmatprep.mubr.bf16.mxu0 %v219
    %4288 = vmatmul.mubr.bf16.gmra.mxu0 %v218
    %v4289 = vpop.f32.mrf.mxu0
    %v4290 = vadd.f32 %v4247, %v4289
    %v4291 = vpop.f32.mrf.mxu0
    %v4292 = vadd.f32 %v4249, %v4291
    %v4293 = vpop.f32.mrf.mxu0
    %v4294 = vadd.f32 %v4251, %v4293
    %v4295 = vpop.f32.mrf.mxu0
    %v4296 = vadd.f32 %v4253, %v4295
    %4297 = vdwg.mxu0
    %4298 = vmatprep.subr.bf16.mxu0 %v3007
    %4299 = vmatpush1.bf16.msra.mxu0 %v3006
    %4300 = vmatprep.subr.bf16.mxu0 %v3005
    %4301 = vmatpush1.bf16.msra.mxu0 %v3004
    %4302 = vmatprep.subr.bf16.mxu0 %v3003
    %4303 = vmatpush1.bf16.msra.mxu0 %v3002
    %4304 = vmatprep.subr.bf16.mxu0 %v3001
    %4305 = vmatpush1.bf16.msra.mxu0 %v3000
    %4306 = vmatprep.subr.bf16.mxu0 %v2999
    %4307 = vmatpush1.bf16.msra.mxu0 %v2998
    %4308 = vmatprep.subr.bf16.mxu0 %v2997
    %4309 = vmatpush1.bf16.msra.mxu0 %v2996
    %4310 = vmatprep.subr.bf16.mxu0 %v2995
    %4311 = vmatpush1.bf16.msra.mxu0 %v2994
    %4312 = vmatprep.subr.bf16.mxu0 %v2993
    %4313 = vmatpush1.bf16.msra.mxu0 %v2992
    %4314 = vmatprep.subr.bf16.mxu0 %v3023
    %4315 = vmatpush2.bf16.msra.mxu0 %v3022
    %4316 = vmatprep.subr.bf16.mxu0 %v3021
    %4317 = vmatpush2.bf16.msra.mxu0 %v3020
    %4318 = vmatprep.subr.bf16.mxu0 %v3019
    %4319 = vmatpush2.bf16.msra.mxu0 %v3018
    %4320 = vmatprep.subr.bf16.mxu0 %v3017
    %4321 = vmatpush2.bf16.msra.mxu0 %v3016
    %4322 = vmatprep.subr.bf16.mxu0 %v3015
    %4323 = vmatpush2.bf16.msra.mxu0 %v3014
    %4324 = vmatprep.subr.bf16.mxu0 %v3013
    %4325 = vmatpush2.bf16.msra.mxu0 %v3012
    %4326 = vmatprep.subr.bf16.mxu0 %v3011
    %4327 = vmatpush2.bf16.msra.mxu0 %v3010
    %4328 = vmatprep.subr.bf16.mxu0 %v3009
    %4329 = vmatpush2.bf16.msra.mxu0 %v3008
    %4330 = vmatprep.mubr.bf16.mxu0 %v221
    %4331 = vmatmul.mubr.bf16.gmra.mxu0 %v220
    %v4332 = vpop.f32.mrf.mxu0
    %v4333 = vadd.f32 %v4290, %v4332
    %v4334 = vpop.f32.mrf.mxu0
    %v4335 = vadd.f32 %v4292, %v4334
    %v4336 = vpop.f32.mrf.mxu0
    %v4337 = vadd.f32 %v4294, %v4336
    %v4338 = vpop.f32.mrf.mxu0
    %v4339 = vadd.f32 %v4296, %v4338
    %4340 = vdwg.mxu0
    %4341 = vmatprep.subr.bf16.mxu0 %v3039
    %4342 = vmatpush1.bf16.msra.mxu0 %v3038
    %4343 = vmatprep.subr.bf16.mxu0 %v3037
    %4344 = vmatpush1.bf16.msra.mxu0 %v3036
    %4345 = vmatprep.subr.bf16.mxu0 %v3035
    %4346 = vmatpush1.bf16.msra.mxu0 %v3034
    %4347 = vmatprep.subr.bf16.mxu0 %v3033
    %4348 = vmatpush1.bf16.msra.mxu0 %v3032
    %4349 = vmatprep.subr.bf16.mxu0 %v3031
    %4350 = vmatpush1.bf16.msra.mxu0 %v3030
    %4351 = vmatprep.subr.bf16.mxu0 %v3029
    %4352 = vmatpush1.bf16.msra.mxu0 %v3028
    %4353 = vmatprep.subr.bf16.mxu0 %v3027
    %4354 = vmatpush1.bf16.msra.mxu0 %v3026
    %4355 = vmatprep.subr.bf16.mxu0 %v3025
    %4356 = vmatpush1.bf16.msra.mxu0 %v3024
    %4357 = vmatprep.subr.bf16.mxu0 %v3055
    %4358 = vmatpush2.bf16.msra.mxu0 %v3054
    %4359 = vmatprep.subr.bf16.mxu0 %v3053
    %4360 = vmatpush2.bf16.msra.mxu0 %v3052
    %4361 = vmatprep.subr.bf16.mxu0 %v3051
    %4362 = vmatpush2.bf16.msra.mxu0 %v3050
    %4363 = vmatprep.subr.bf16.mxu0 %v3049
    %4364 = vmatpush2.bf16.msra.mxu0 %v3048
    %4365 = vmatprep.subr.bf16.mxu0 %v3047
    %4366 = vmatpush2.bf16.msra.mxu0 %v3046
    %4367 = vmatprep.subr.bf16.mxu0 %v3045
    %4368 = vmatpush2.bf16.msra.mxu0 %v3044
    %4369 = vmatprep.subr.bf16.mxu0 %v3043
    %4370 = vmatpush2.bf16.msra.mxu0 %v3042
    %4371 = vmatprep.subr.bf16.mxu0 %v3041
    %4372 = vmatpush2.bf16.msra.mxu0 %v3040
    %4373 = vmatprep.mubr.bf16.mxu0 %v223
    %4374 = vmatmul.mubr.bf16.gmra.mxu0 %v222
    %v4375 = vpop.f32.mrf.mxu0
    %v4376 = vadd.f32 %v4333, %v4375
    %v4377 = vpop.f32.mrf.mxu0
    %v4378 = vadd.f32 %v4335, %v4377
    %v4379 = vpop.f32.mrf.mxu0
    %v4380 = vadd.f32 %v4337, %v4379
    %v4381 = vpop.f32.mrf.mxu0
    %v4382 = vadd.f32 %v4339, %v4381
    %4383 = vdwg.mxu0
    %4384 = vmatprep.subr.bf16.mxu0 %v3071
    %4385 = vmatpush1.bf16.msra.mxu0 %v3070
    %4386 = vmatprep.subr.bf16.mxu0 %v3069
    %4387 = vmatpush1.bf16.msra.mxu0 %v3068
    %4388 = vmatprep.subr.bf16.mxu0 %v3067
    %4389 = vmatpush1.bf16.msra.mxu0 %v3066
    %4390 = vmatprep.subr.bf16.mxu0 %v3065
    %4391 = vmatpush1.bf16.msra.mxu0 %v3064
    %4392 = vmatprep.subr.bf16.mxu0 %v3063
    %4393 = vmatpush1.bf16.msra.mxu0 %v3062
    %4394 = vmatprep.subr.bf16.mxu0 %v3061
    %4395 = vmatpush1.bf16.msra.mxu0 %v3060
    %4396 = vmatprep.subr.bf16.mxu0 %v3059
    %4397 = vmatpush1.bf16.msra.mxu0 %v3058
    %4398 = vmatprep.subr.bf16.mxu0 %v3057
    %4399 = vmatpush1.bf16.msra.mxu0 %v3056
    %4400 = vmatprep.subr.bf16.mxu0 %v3087
    %4401 = vmatpush2.bf16.msra.mxu0 %v3086
    %4402 = vmatprep.subr.bf16.mxu0 %v3085
    %4403 = vmatpush2.bf16.msra.mxu0 %v3084
    %4404 = vmatprep.subr.bf16.mxu0 %v3083
    %4405 = vmatpush2.bf16.msra.mxu0 %v3082
    %4406 = vmatprep.subr.bf16.mxu0 %v3081
    %4407 = vmatpush2.bf16.msra.mxu0 %v3080
    %4408 = vmatprep.subr.bf16.mxu0 %v3079
    %4409 = vmatpush2.bf16.msra.mxu0 %v3078
    %4410 = vmatprep.subr.bf16.mxu0 %v3077
    %4411 = vmatpush2.bf16.msra.mxu0 %v3076
    %4412 = vmatprep.subr.bf16.mxu0 %v3075
    %4413 = vmatpush2.bf16.msra.mxu0 %v3074
    %4414 = vmatprep.subr.bf16.mxu0 %v3073
    %4415 = vmatpush2.bf16.msra.mxu0 %v3072
    %4416 = vmatprep.mubr.bf16.mxu0 %v225
    %4417 = vmatmul.mubr.bf16.gmra.mxu0 %v224
    %v4418 = vpop.f32.mrf.mxu0
    %v4419 = vadd.f32 %v4376, %v4418
    %v4420 = vpop.f32.mrf.mxu0
    %v4421 = vadd.f32 %v4378, %v4420
    %v4422 = vpop.f32.mrf.mxu0
    %v4423 = vadd.f32 %v4380, %v4422
    %v4424 = vpop.f32.mrf.mxu0
    %v4425 = vadd.f32 %v4382, %v4424
    %4426 = vdwg.mxu0
    %4427 = vmatprep.subr.bf16.mxu0 %v3103
    %4428 = vmatpush1.bf16.msra.mxu0 %v3102
    %4429 = vmatprep.subr.bf16.mxu0 %v3101
    %4430 = vmatpush1.bf16.msra.mxu0 %v3100
    %4431 = vmatprep.subr.bf16.mxu0 %v3099
    %4432 = vmatpush1.bf16.msra.mxu0 %v3098
    %4433 = vmatprep.subr.bf16.mxu0 %v3097
    %4434 = vmatpush1.bf16.msra.mxu0 %v3096
    %4435 = vmatprep.subr.bf16.mxu0 %v3095
    %4436 = vmatpush1.bf16.msra.mxu0 %v3094
    %4437 = vmatprep.subr.bf16.mxu0 %v3093
    %4438 = vmatpush1.bf16.msra.mxu0 %v3092
    %4439 = vmatprep.subr.bf16.mxu0 %v3091
    %4440 = vmatpush1.bf16.msra.mxu0 %v3090
    %4441 = vmatprep.subr.bf16.mxu0 %v3089
    %4442 = vmatpush1.bf16.msra.mxu0 %v3088
    %4443 = vmatprep.subr.bf16.mxu0 %v3119
    %4444 = vmatpush2.bf16.msra.mxu0 %v3118
    %4445 = vmatprep.subr.bf16.mxu0 %v3117
    %4446 = vmatpush2.bf16.msra.mxu0 %v3116
    %4447 = vmatprep.subr.bf16.mxu0 %v3115
    %4448 = vmatpush2.bf16.msra.mxu0 %v3114
    %4449 = vmatprep.subr.bf16.mxu0 %v3113
    %4450 = vmatpush2.bf16.msra.mxu0 %v3112
    %4451 = vmatprep.subr.bf16.mxu0 %v3111
    %4452 = vmatpush2.bf16.msra.mxu0 %v3110
    %4453 = vmatprep.subr.bf16.mxu0 %v3109
    %4454 = vmatpush2.bf16.msra.mxu0 %v3108
    %4455 = vmatprep.subr.bf16.mxu0 %v3107
    %4456 = vmatpush2.bf16.msra.mxu0 %v3106
    %4457 = vmatprep.subr.bf16.mxu0 %v3105
    %4458 = vmatpush2.bf16.msra.mxu0 %v3104
    %4459 = vmatprep.mubr.bf16.mxu0 %v227
    %4460 = vmatmul.mubr.bf16.gmra.mxu0 %v226
    %v4461 = vpop.f32.mrf.mxu0
    %v4462 = vadd.f32 %v4419, %v4461
    %v4463 = vpop.f32.mrf.mxu0
    %v4464 = vadd.f32 %v4421, %v4463
    %v4465 = vpop.f32.mrf.mxu0
    %v4466 = vadd.f32 %v4423, %v4465
    %v4467 = vpop.f32.mrf.mxu0
    %v4468 = vadd.f32 %v4425, %v4467
    %4469 = vdwg.mxu0
    %v4470 = vmax.f32 %v4462, 0.0
    %v4471 = vmax.f32 %v4464, 0.0
    %v4472 = vmax.f32 %v4466, 0.0
    %v4473 = vmax.f32 %v4468, 0.0
    %v4474 = vpack.c.bf16 %v4472, %v4470
    %v4475 = vpack.c.bf16 %v4473, %v4471
    %v4476 = vld [vmem:[#allocation8] sm:$0xf]
    %v4477 = vld [vmem:[#allocation8 + $0x4] sm:$0xf]
    %v4478 = vld [vmem:[#allocation8 + $0x8] sm:$0xf]
    %v4479 = vld [vmem:[#allocation8 + $0xc] sm:$0xf]
    %v4480 = vld [vmem:[#allocation8 + $0x10] sm:$0xf]
    %v4481 = vld [vmem:[#allocation8 + $0x14] sm:$0xf]
    %v4482 = vld [vmem:[#allocation8 + $0x18] sm:$0xf]
    %v4483 = vld [vmem:[#allocation8 + $0x1c] sm:$0xf]
    %v4484 = vld [vmem:[#allocation8 + $0x20] sm:$0xf]
    %v4485 = vld [vmem:[#allocation8 + $0x24] sm:$0xf]
    %v4486 = vld [vmem:[#allocation8 + $0x28] sm:$0xf]
    %v4487 = vld [vmem:[#allocation8 + $0x2c] sm:$0xf]
    %v4488 = vld [vmem:[#allocation8 + $0x30] sm:$0xf]
    %v4489 = vld [vmem:[#allocation8 + $0x34] sm:$0xf]
    %v4490 = vld [vmem:[#allocation8 + $0x38] sm:$0xf]
    %v4491 = vld [vmem:[#allocation8 + $0x3c] sm:$0xf]
    %v4492 = vld [vmem:[#allocation8 + $0x40] sm:$0xf]
    %v4493 = vld [vmem:[#allocation8 + $0x44] sm:$0xf]
    %v4494 = vld [vmem:[#allocation8 + $0x48] sm:$0xf]
    %v4495 = vld [vmem:[#allocation8 + $0x4c] sm:$0xf]
    %v4496 = vld [vmem:[#allocation8 + $0x50] sm:$0xf]
    %v4497 = vld [vmem:[#allocation8 + $0x54] sm:$0xf]
    %v4498 = vld [vmem:[#allocation8 + $0x58] sm:$0xf]
    %v4499 = vld [vmem:[#allocation8 + $0x5c] sm:$0xf]
    %v4500 = vld [vmem:[#allocation8 + $0x60] sm:$0xf]
    %v4501 = vld [vmem:[#allocation8 + $0x64] sm:$0xf]
    %v4502 = vld [vmem:[#allocation8 + $0x68] sm:$0xf]
    %v4503 = vld [vmem:[#allocation8 + $0x6c] sm:$0xf]
    %v4504 = vld [vmem:[#allocation8 + $0x70] sm:$0xf]
    %v4505 = vld [vmem:[#allocation8 + $0x74] sm:$0xf]
    %v4506 = vld [vmem:[#allocation8 + $0x78] sm:$0xf]
    %v4507 = vld [vmem:[#allocation8 + $0x7c] sm:$0xf]
    %v4508 = vld [vmem:[#allocation10] sm:$0x1]
    %v4510 = vlaneseq
    %v4511 = vshrl.u32 %v4510, 7
    %v4512 = vsub.s32 0, %v4511
    %v4513 = vrot.slane %v4508, %v4512
    %v4547 = vunpack.c.l.b16 %v4476
    %v4548 = vunpack.c.l.b16 %v4477
    %v4549 = vunpack.c.l.b16 %v4478
    %v4550 = vunpack.c.l.b16 %v4479
    %v4551 = vunpack.c.l.b16 %v4480
    %v4552 = vunpack.c.l.b16 %v4481
    %v4553 = vunpack.c.l.b16 %v4482
    %v4554 = vunpack.c.l.b16 %v4483
    %v4555 = vunpack.c.l.b16 %v4484
    %v4556 = vunpack.c.l.b16 %v4485
    %v4557 = vunpack.c.l.b16 %v4486
    %v4558 = vunpack.c.l.b16 %v4487
    %v4559 = vunpack.c.l.b16 %v4488
    %v4560 = vunpack.c.l.b16 %v4489
    %v4561 = vunpack.c.l.b16 %v4490
    %v4562 = vunpack.c.l.b16 %v4491
    %v4563 = vunpack.c.l.b16 %v4492
    %v4564 = vunpack.c.l.b16 %v4493
    %v4565 = vunpack.c.l.b16 %v4494
    %v4566 = vunpack.c.l.b16 %v4495
    %v4567 = vunpack.c.l.b16 %v4496
    %v4568 = vunpack.c.l.b16 %v4497
    %v4569 = vunpack.c.l.b16 %v4498
    %v4570 = vunpack.c.l.b16 %v4499
    %v4571 = vunpack.c.l.b16 %v4500
    %v4572 = vunpack.c.l.b16 %v4501
    %v4573 = vunpack.c.l.b16 %v4502
    %v4574 = vunpack.c.l.b16 %v4503
    %v4575 = vunpack.c.l.b16 %v4504
    %v4576 = vunpack.c.l.b16 %v4505
    %v4577 = vunpack.c.l.b16 %v4506
    %v4578 = vunpack.c.l.b16 %v4507
    %v4579 = vpack.c.b16 %v4548, %v4547
    %v4580 = vpack.c.b16 %v4550, %v4549
    %v4581 = vpack.c.b16 %v4552, %v4551
    %v4582 = vpack.c.b16 %v4554, %v4553
    %v4583 = vpack.c.b16 %v4556, %v4555
    %v4584 = vpack.c.b16 %v4558, %v4557
    %v4585 = vpack.c.b16 %v4560, %v4559
    %v4586 = vpack.c.b16 %v4562, %v4561
    %v4587 = vpack.c.b16 %v4564, %v4563
    %v4588 = vpack.c.b16 %v4566, %v4565
    %v4589 = vpack.c.b16 %v4568, %v4567
    %v4590 = vpack.c.b16 %v4570, %v4569
    %v4591 = vpack.c.b16 %v4572, %v4571
    %v4592 = vpack.c.b16 %v4574, %v4573
    %v4593 = vpack.c.b16 %v4576, %v4575
    %v4594 = vpack.c.b16 %v4578, %v4577
    %4611 = vmatprep.subr.bf16.mxu0 0
    %4612 = vmatpush1.bf16.msra.mxu0 %v4586
    %4613 = vmatprep.subr.bf16.mxu0 0
    %4614 = vmatpush1.bf16.msra.mxu0 %v4585
    %4615 = vmatprep.subr.bf16.mxu0 0
    %4616 = vmatpush1.bf16.msra.mxu0 %v4584
    %4617 = vmatprep.subr.bf16.mxu0 0
    %4618 = vmatpush1.bf16.msra.mxu0 %v4583
    %4619 = vmatprep.subr.bf16.mxu0 0
    %4620 = vmatpush1.bf16.msra.mxu0 %v4582
    %4621 = vmatprep.subr.bf16.mxu0 0
    %4622 = vmatpush1.bf16.msra.mxu0 %v4581
    %4623 = vmatprep.subr.bf16.mxu0 0
    %4624 = vmatpush1.bf16.msra.mxu0 %v4580
    %4625 = vmatprep.subr.bf16.mxu0 0
    %4626 = vmatpush1.bf16.msra.mxu0 %v4579
    %4627 = vmatprep.subr.bf16.mxu0 0
    %4628 = vmatpush2.bf16.msra.mxu0 %v4594
    %4629 = vmatprep.subr.bf16.mxu0 0
    %4630 = vmatpush2.bf16.msra.mxu0 %v4593
    %4631 = vmatprep.subr.bf16.mxu0 0
    %4632 = vmatpush2.bf16.msra.mxu0 %v4592
    %4633 = vmatprep.subr.bf16.mxu0 0
    %4634 = vmatpush2.bf16.msra.mxu0 %v4591
    %4635 = vmatprep.subr.bf16.mxu0 0
    %4636 = vmatpush2.bf16.msra.mxu0 %v4590
    %4637 = vmatprep.subr.bf16.mxu0 0
    %4638 = vmatpush2.bf16.msra.mxu0 %v4589
    %4639 = vmatprep.subr.bf16.mxu0 0
    %4640 = vmatpush2.bf16.msra.mxu0 %v4588
    %4641 = vmatprep.subr.bf16.mxu0 0
    %4642 = vmatpush2.bf16.msra.mxu0 %v4587
    %4643 = vmatprep.mubr.bf16.mxu0 %v4475
    %4644 = vmatmul.mubr.bf16.gmra.mxu0 %v4474
    %v4645 = vpop.f32.mrf.mxu0
    %v4646 = vadd.f32 %v4513, %v4645
    %v4647 = vpop.f32.mrf.mxu0
    %v4648 = vpop.f32.mrf.mxu0
    %v4649 = vadd.f32 %v4513, %v4648
    %v4650 = vpop.f32.mrf.mxu0
    %4651 = vdwg.mxu0
    %v4652 = vpack.c.bf16 %v4649, %v4646
    %v4654 = vunpack.c.l.b16 %v4652
    %v4655 = vunpack.c.h.b16 %v4652
    %v4656 = vpack.c.b16 %v4654, %v4654
    %v4657 = vpack.c.b16 %v4655, %v4655
    %4660 = vst [vmem:[#allocation15] sm:$0xf] %v4656
    %4661 = vst [vmem:[#allocation15 + $0x4] sm:$0xf] %v4657
    %v4662 = vmax.f32 %v4646, 0.0
    %v4663 = vmax.f32 %v4649, 0.0
    %v4664 = vpack.c.bf16 %v4663, %v4662
    %v4665 = vld [vmem:[#allocation11] sm:$0xf]
    %v4666 = vld [vmem:[#allocation11 + $0x4] sm:$0xf]
    %v4667 = vld [vmem:[#allocation11 + $0x8] sm:$0xf]
    %v4668 = vld [vmem:[#allocation11 + $0xc] sm:$0xf]
    %v4669 = vld [vmem:[#allocation11 + $0x10] sm:$0xf]
    %v4670 = vld [vmem:[#allocation11 + $0x14] sm:$0xf]
    %v4671 = vld [vmem:[#allocation11 + $0x18] sm:$0xf]
    %v4672 = vld [vmem:[#allocation11 + $0x1c] sm:$0xf]
    %v4673 = vld [vmem:[#allocation11 + $0x20] sm:$0xf]
    %v4674 = vld [vmem:[#allocation11 + $0x24] sm:$0xf]
    %v4675 = vld [vmem:[#allocation11 + $0x28] sm:$0xf]
    %v4676 = vld [vmem:[#allocation11 + $0x2c] sm:$0xf]
    %v4677 = vld [vmem:[#allocation11 + $0x30] sm:$0xf]
    %v4678 = vld [vmem:[#allocation11 + $0x34] sm:$0xf]
    %v4679 = vld [vmem:[#allocation11 + $0x38] sm:$0xf]
    %v4680 = vld [vmem:[#allocation11 + $0x3c] sm:$0xf]
    %v4681 = vld [vmem:[#allocation13] sm:$0x1]
    %v4683 = vlaneseq
    %v4684 = vshrl.u32 %v4683, 7
    %v4685 = vsub.s32 0, %v4684
    %v4686 = vrot.slane %v4681, %v4685
    %v4704 = vunpack.c.l.b16 %v4665
    %v4705 = vunpack.c.l.b16 %v4666
    %v4706 = vunpack.c.l.b16 %v4667
    %v4707 = vunpack.c.l.b16 %v4668
    %v4708 = vunpack.c.l.b16 %v4669
    %v4709 = vunpack.c.l.b16 %v4670
    %v4710 = vunpack.c.l.b16 %v4671
    %v4711 = vunpack.c.l.b16 %v4672
    %v4712 = vunpack.c.l.b16 %v4673
    %v4713 = vunpack.c.l.b16 %v4674
    %v4714 = vunpack.c.l.b16 %v4675
    %v4715 = vunpack.c.l.b16 %v4676
    %v4716 = vunpack.c.l.b16 %v4677
    %v4717 = vunpack.c.l.b16 %v4678
    %v4718 = vunpack.c.l.b16 %v4679
    %v4719 = vunpack.c.l.b16 %v4680
    %v4720 = vpack.c.b16 %v4705, %v4704
    %v4721 = vpack.c.b16 %v4707, %v4706
    %v4722 = vpack.c.b16 %v4709, %v4708
    %v4723 = vpack.c.b16 %v4711, %v4710
    %v4724 = vpack.c.b16 %v4713, %v4712
    %v4725 = vpack.c.b16 %v4715, %v4714
    %v4726 = vpack.c.b16 %v4717, %v4716
    %v4727 = vpack.c.b16 %v4719, %v4718
    %4736 = vmatprep.subr.bf16.mxu0 0
    %4737 = vmatpush1.bf16.msra.mxu0 %v4727
    %4738 = vmatprep.subr.bf16.mxu0 0
    %4739 = vmatpush1.bf16.msra.mxu0 %v4726
    %4740 = vmatprep.subr.bf16.mxu0 0
    %4741 = vmatpush1.bf16.msra.mxu0 %v4725
    %4742 = vmatprep.subr.bf16.mxu0 0
    %4743 = vmatpush1.bf16.msra.mxu0 %v4724
    %4744 = vmatprep.subr.bf16.mxu0 0
    %4745 = vmatpush1.bf16.msra.mxu0 %v4723
    %4746 = vmatprep.subr.bf16.mxu0 0
    %4747 = vmatpush1.bf16.msra.mxu0 %v4722
    %4748 = vmatprep.subr.bf16.mxu0 0
    %4749 = vmatpush1.bf16.msra.mxu0 %v4721
    %4750 = vmatprep.subr.bf16.mxu0 0
    %4751 = vmatpush1.bf16.msra.mxu0 %v4720
    %4752 = vmatprep.subr.bf16.mxu0 0
    %4753 = vmatpush2.bf16.msra.mxu0 0
    %4754 = vmatprep.subr.bf16.mxu0 0
    %4755 = vmatpush2.bf16.msra.mxu0 0
    %4756 = vmatprep.subr.bf16.mxu0 0
    %4757 = vmatpush2.bf16.msra.mxu0 0
    %4758 = vmatprep.subr.bf16.mxu0 0
    %4759 = vmatpush2.bf16.msra.mxu0 0
    %4760 = vmatprep.subr.bf16.mxu0 0
    %4761 = vmatpush2.bf16.msra.mxu0 0
    %4762 = vmatprep.subr.bf16.mxu0 0
    %4763 = vmatpush2.bf16.msra.mxu0 0
    %4764 = vmatprep.subr.bf16.mxu0 0
    %4765 = vmatpush2.bf16.msra.mxu0 0
    %4766 = vmatprep.subr.bf16.mxu0 0
    %4767 = vmatpush2.bf16.msra.mxu0 0
    %4768 = vmatprep.mubr.bf16.mxu0 0
    %4769 = vmatmul.mubr.bf16.gmra.mxu0 %v4664
    %v4770 = vpop.f32.mrf.mxu0
    %v4771 = vadd.f32 %v4686, %v4770
    %v4772 = vpop.f32.mrf.mxu0
    %v4773 = vpop.f32.mrf.mxu0
    %v4774 = vadd.f32 %v4686, %v4773
    %v4775 = vpop.f32.mrf.mxu0
    %4776 = vdwg.mxu0
    %v4777 = vpack.c.bf16 %v4774, %v4771
    %v4779 = vunpack.c.l.b16 %v4777
    %v4780 = vunpack.c.h.b16 %v4777
    %v4781 = vpack.c.b16 %v4779, %v4779
    %v4782 = vpack.c.b16 %v4780, %v4780
    %4785 = vst [vmem:[#allocation14] sm:$0xf] %v4781
    %4786 = vst [vmem:[#allocation14 + $0x4] sm:$0xf] %v4782
    // Predicated region
    $region58: #{tpu_custom_call.1} parent=1 // pred_check
      _
    $region59: #{tpu_custom_call.1} parent=1 // pred_check_branch
      %4788 = sbr.rel (0) target = $region61
    $region60: #{tpu_custom_call.1} parent=1 // pred_region
      %s4790 = ssub.s32 128, 128
      %4791 = vsyncadd [#allocation4], %s4790
      %s4792 = sshll.u32 [#allocation14], 4
      %s4793 = int_to_ptr.vmem [resolvable:$true] %s4792
      %4798 = dma.vmem_to_hbm [thread:$0]  %s4793, 128, %s7, [#allocation4], 64, 64, 4
    $region61: #{tpu_custom_call.1} parent=1 // pred_fallthru
      _
    // Predicated region
    $region62: #{tpu_custom_call.1} parent=1 // pred_check
      _
    $region63: #{tpu_custom_call.1} parent=1 // pred_check_branch
      %4800 = sbr.rel (0) target = $region65
    $region64: #{tpu_custom_call.1} parent=1 // pred_region
      %s4802 = ssub.s32 128, 128
      %4803 = vsyncadd [#allocation16], %s4802
      %s4804 = sshll.u32 [#allocation15], 4
      %s4805 = int_to_ptr.vmem [resolvable:$true] %s4804
      %4810 = dma.vmem_to_hbm [thread:$0]  %s4805, 128, %s8, [#allocation16], 64, 64, 4
    $region65: #{tpu_custom_call.1} parent=1 // pred_fallthru
      _
    // Predicated region
    $region66: #{tpu_custom_call.1} parent=1 // pred_check
      _
    $region67: #{tpu_custom_call.1} parent=1 // pred_check_branch
      %4812 = sbr.rel (0) target = $region69
    $region68: #{tpu_custom_call.1} parent=1 // pred_region
      %4813 = dma.done [#allocation4], 128
    $region69: #{tpu_custom_call.1} parent=1 // pred_fallthru
      _
    // Predicated region
    $region70: #{tpu_custom_call.1} parent=1 // pred_check
      _
    $region71: #{tpu_custom_call.1} parent=1 // pred_check_branch
      %4815 = sbr.rel (0) target = $region73
    $region72: #{tpu_custom_call.1} parent=1 // pred_region
      %4816 = dma.done [#allocation16], 128
    $region73: #{tpu_custom_call.1} parent=1 // pred_fallthru
      _
    %4817 = vsyncpa [#allocation3], 1
    %4818 = vsyncpa [#allocation6], 1
    %4819 = vsyncpa [#allocation9], 1
    %4820 = vsyncpa [#allocation12], 1
    %4821 = vsyncpa [#allocation4], 1
    %4822 = vsyncpa [#allocation16], 1

</llo_original>
